<compile_context>
chip_gen: v5e
topology: v5e:2x2
jax: 0.10.0
libtpu: 0.0.40
codegen_flags: <defaults>
</compile_context>

<pallas_src>
import math

import jax
import jax.numpy as jnp
from jax.experimental import pallas as pl
from jax.experimental.pallas import tpu as pltpu

IN_CH = 4
OUT_CH = 2 * IN_CH            # the module requires out_channels == 2 * in_channels
H = 16
W = 16
BN_EPS = 1e-5

_PACKED_ORDER = ("w1a", "w1b", "w2", "wb3", "wct1", "wct2", "wct3", "wct4")


# ----------------------------------------------------------------------------
# Fused kernel
# ----------------------------------------------------------------------------
def _make_fused_kernel(h, w):
    hw = h * w
    assert (w & (w - 1)) == 0, "W must be a power of two for the column decode"
    # TODO(synk): general (non power-of-two) widths need a different col decode.
    margin = 128                      # lane-tile aligned pad; >= max shift (2*w+2)
    assert margin >= 2 * (w + 1)

    def kernel(x_ref, w1a_ref, w1b_ref, w2_ref, wb3_ref,
               wct1_ref, wct2_ref, wct3_ref, wct4_ref, o_ref):
        x = x_ref[0]                                   # (IN_CH, hw) f32

        # Flat-position decode for conv edge masks (column within a row).
        pos = jax.lax.broadcasted_iota(jnp.int32, (1, hw), 1)
        col = pos & (w - 1)                            # x-coordinate

        def edge_mask(dy, dx):
            """Validity of input position (y+dy, x+dx) for every output pixel."""
            conds = []
            if dx > 0:
                conds.append(col < (w - dx))
            elif dx < 0:
                conds.append(col >= -dx)
            if dy > 0:
                conds.append(pos < (h - dy) * w)       # y < h - dy
            elif dy < 0:
                conds.append(pos >= (-dy) * w)         # y >= -dy
            m = None
            for c in conds:
                m = c if m is None else jnp.logical_and(m, c)
            return m

        def channel_mix(acc, wmat, col0, blocks):
            """acc[co,:] += sum_ci wmat[co, col0+ci] * blocks[..][ci,:]  (VPU FMAs)."""
            c = col0
            for blk in blocks:
                for ci in range(blk.shape[0]):
                    acc = acc + wmat[:, c:c + 1] * blk[ci:ci + 1, :]
                    c += 1
            return acc

        def conv1x1(blocks, wmat, cout, *, relu=False, residual=None):
            """1x1 conv (+bias) over the channel-concat of `blocks`, without
            materializing the concat (partial products)."""
            ncols = sum(b.shape[0] for b in blocks)
            acc = jnp.broadcast_to(wmat[:, ncols:ncols + 1], (cout, hw))  # bias
            acc = channel_mix(acc, wmat, 0, blocks)
            if residual is not None:
                acc = acc + residual
            if relu:
                acc = jnp.maximum(acc, 0.0)
            return acc

        def conv_kxk(xin, wmat, k, cout, *, relu=False):
            """k x k 'same' conv, stride 1.  xin: (cin, hw);
            wmat: (cout, k*k*cin + 1) with BN scale folded in and bias last."""
            cin = xin.shape[0]
            pad = k // 2
            zeros = jnp.zeros((cin, margin), xin.dtype)
            # Lane-tile aligned pad -> the concat is pure vreg placement.
            xpad = jnp.concatenate([zeros, xin, zeros], axis=1)
            acc = jnp.broadcast_to(wmat[:, k * k * cin:k * k * cin + 1],
                                   (cout, hw))         # bias
            c = 0
            for dy in range(-pad, pad + 1):
                for dx in range(-pad, pad + 1):
                    if dy == 0 and dx == 0:
                        xs = xin
                    else:
                        s = dy * w + dx
                        shifted = xpad[:, margin + s:margin + s + hw]
                        xs = jnp.where(edge_mask(dy, dx), shifted, 0.0)
                    acc = channel_mix(acc, wmat, c, [xs])
                    c += cin
            if relu:
                acc = jnp.maximum(acc, 0.0)
            return acc

        w1a = w1a_ref[...]
        w1b = w1b_ref[...]
        w2 = w2_ref[...]
        wb3 = wb3_ref[...]
        wct1 = wct1_ref[...]
        wct2 = wct2_ref[...]
        wct3 = wct3_ref[...]
        wct4 = wct4_ref[...]

        # b1 = relu(x + channel_tran_1(branch_1(x)))
        t = conv_kxk(x, w1a, 3, OUT_CH, relu=True)
        t = conv_kxk(t, w1b, 3, OUT_CH, relu=True)
        b1 = conv1x1([t], wct1, IN_CH, relu=True, residual=x)

        # b2 = relu(x + channel_tran_2(cat(u, u)))  -- cat fold baked into wct2
        u = conv_kxk(x, w2, 5, OUT_CH, relu=True)
        b2 = conv1x1([u], wct2, IN_CH, relu=True, residual=x)

        # b3 = branch_3(x)   (1x1 conv with bias, no relu)
        b3 = conv1x1([x], wb3, IN_CH, relu=False)

        # b_cat = relu(x + channel_tran_3(cat(b1, b2, b3)))  -- partial products
        bcat = conv1x1([b1, b2, b3], wct3, IN_CH, relu=True, residual=x)

        # out = channel_tran_4(b_cat)
        out = conv1x1([bcat], wct4, OUT_CH, relu=False)
        o_ref[0] = out.astype(o_ref.dtype)

    return kernel


# ----------------------------------------------------------------------------
# Wrapper: NCHW in / NCHW out, one pallas_call, grid over the batch.
# ----------------------------------------------------------------------------
@jax.jit
def twobranches_conv(x_nchw, packed):
    n, c, h, w = x_nchw.shape
    assert c == IN_CH and h == H and w == W
    hw = h * w
    x = x_nchw.reshape(n, c, hw)                  # free reshape, no transpose
    w_list = [packed[k] for k in _PACKED_ORDER]

    kernel = _make_fused_kernel(h, w)
    in_specs = [pl.BlockSpec((1, IN_CH, hw), lambda i: (i, 0, 0))]
    in_specs += [pl.BlockSpec(wm.shape, lambda i: (0, 0)) for wm in w_list]

    out = pl.pallas_call(
        kernel,
        out_shape=jax.ShapeDtypeStruct((n, OUT_CH, hw), x_nchw.dtype),
        grid=(n,),
        in_specs=in_specs,
        out_specs=pl.BlockSpec((1, OUT_CH, hw), lambda i: (i, 0, 0)),
        compiler_params=pltpu.CompilerParams(
            dimension_semantics=("parallel",)),   # lets v7x use both TensorCores
    )(x, *w_list)
    return out.reshape(n, OUT_CH, h, w)


# ----------------------------------------------------------------------------
# Parameters (deterministic synthetic init; canonical layout) + kernel packing
# ----------------------------------------------------------------------------
def init_params(key):
    ks = jax.random.split(key, 16)

    def conv_w(k, kk, cin, cout, std):
        # canonical layout (K*K, Cin, Cout); tap index = ky*K + kx
        return std * jax.random.normal(k, (kk * kk, cin, cout), jnp.float32)

    def bn_fold(k, ch):
        k1, k2, k3 = jax.random.split(k, 3)
        gamma = 1.0 + 0.1 * jax.random.normal(k1, (ch,), jnp.float32)
        beta = 0.1 * jax.random.normal(k2, (ch,), jnp.float32)
        mean = 0.1 * jax.random.normal(k3, (ch,), jnp.float32)
        var = jnp.full((ch,), 0.9, jnp.float32)
        scale = gamma / jnp.sqrt(var + BN_EPS)
        bias = beta - mean * scale
        return scale, bias

    def b(k, ch):
        return 0.1 * jax.random.normal(k, (ch,), jnp.float32)

    p = {}
    p['w1a'] = conv_w(ks[0], 3, IN_CH, OUT_CH, 0.2)
    p['s1a'], p['b1a'] = bn_fold(ks[1], OUT_CH)
    p['w1b'] = conv_w(ks[2], 3, OUT_CH, OUT_CH, 0.15)
    p['s1b'], p['b1b'] = bn_fold(ks[3], OUT_CH)
    p['w2'] = conv_w(ks[4], 5, IN_CH, OUT_CH, 0.1)
    p['s2'], p['b2'] = bn_fold(ks[5], OUT_CH)
    p['w_b3'] = conv_w(ks[6], 1, IN_CH, IN_CH, 0.3)
    p['bias_b3'] = b(ks[7], IN_CH)
    p['w_ct1'] = conv_w(ks[8], 1, OUT_CH, IN_CH, 0.3)
    p['bias_ct1'] = b(ks[9], IN_CH)
    p['w_ct2'] = conv_w(ks[10], 1, 2 * OUT_CH, IN_CH, 0.2)
    p['bias_ct2'] = b(ks[11], IN_CH)
    p['w_ct3'] = conv_w(ks[12], 1, 3 * IN_CH, IN_CH, 0.3)
    p['bias_ct3'] = b(ks[13], IN_CH)
    p['w_ct4'] = conv_w(ks[14], 1, IN_CH, OUT_CH, 0.3)
    p['bias_ct4'] = b(ks[15], OUT_CH)
    return p


def pack_params(p):
    """One-time parameter prep: fold BN scale into the conv weights, fold the
    cat(u, u) duplication into channel_tran_2, append the bias as the last
    column, and transpose to the kernel layout (Cout, K*K*Cin + 1)."""

    def pack(wc, scale, bias):
        kk, cin, cout = wc.shape
        ws = wc * scale[None, None, :]
        mat = ws.transpose(2, 0, 1).reshape(cout, kk * cin)   # [co, t*cin+ci]
        return jnp.concatenate([mat, bias[:, None]], axis=1)

    ones_in = jnp.ones((IN_CH,), jnp.float32)
    ones_out = jnp.ones((OUT_CH,), jnp.float32)
    return {
        'w1a': pack(p['w1a'], p['s1a'], p['b1a']),
        'w1b': pack(p['w1b'], p['s1b'], p['b1b']),
        'w2': pack(p['w2'], p['s2'], p['b2']),
        'wb3': pack(p['w_b3'], ones_in, p['bias_b3']),
        'wct1': pack(p['w_ct1'], ones_in, p['bias_ct1']),
        # cat(u, u) @ W  ==  u @ (W[:, :OUT_CH] + W[:, OUT_CH:])
        'wct2': pack(p['w_ct2'][:, :OUT_CH, :] + p['w_ct2'][:, OUT_CH:, :],
                     ones_in, p['bias_ct2']),
        'wct3': pack(p['w_ct3'], ones_in, p['bias_ct3']),
        'wct4': pack(p['w_ct4'], ones_out, p['bias_ct4']),
    }


# ----------------------------------------------------------------------------
# Pure-JAX reference (literal translation of the PyTorch forward, eval-mode BN)
# ----------------------------------------------------------------------------
def _conv_ref(x, wc, *, scale=None, bias=None, relu=False):
    kk, cin, cout = wc.shape
    k = int(round(kk ** 0.5))
    w_oihw = wc.reshape(k, k, cin, cout).transpose(3, 2, 0, 1)
    y = jax.lax.conv_general_dilated(
        x, w_oihw, window_strides=(1, 1),
        padding=[(k // 2, k // 2)] * 2,
        dimension_numbers=('NCHW', 'OIHW', 'NCHW'))
    if scale is not None:
        y = y * scale[None, :, None, None]
    if bias is not None:
        y = y + bias[None, :, None, None]
    if relu:
        y = jnp.maximum(y, 0.0)
    return y


def twobranches_conv_ref(x, p):
    t = _conv_ref(x, p['w1a'], scale=p['s1a'], bias=p['b1a'], relu=True)
    t = _conv_ref(t, p['w1b'], scale=p['s1b'], bias=p['b1b'], relu=True)
    b1 = jnp.maximum(x + _conv_ref(t, p['w_ct1'], bias=p['bias_ct1']), 0.0)

    u = _conv_ref(x, p['w2'], scale=p['s2'], bias=p['b2'], relu=True)
    u2 = jnp.concatenate([u, u], axis=1)
    b2 = jnp.maximum(x + _conv_ref(u2, p['w_ct2'], bias=p['bias_ct2']), 0.0)

    b3 = _conv_ref(x, p['w_b3'], bias=p['bias_b3'])

    cat = jnp.concatenate([b1, b2, b3], axis=1)
    bcat = jnp.maximum(x + _conv_ref(cat, p['w_ct3'], bias=p['bias_ct3']), 0.0)

    return _conv_ref(bcat, p['w_ct4'], bias=p['bias_ct4'])


# ----------------------------------------------------------------------------
if __name__ == "__main__":
    key = jax.random.PRNGKey(0)
    kx, kp = jax.random.split(key)
    x = jax.random.normal(kx, (2, IN_CH, H, W), jnp.float32)   # NCHW
    params = init_params(kp)
    packed = pack_params(params)       # one-time prep (BN fold + cat(u,u) fold)

    out = twobranches_conv(x, packed)
    out = jax.block_until_ready(out)
    assert out.shape == (2, OUT_CH, H, W), out.shape

    ref = twobranches_conv_ref(x, params)
    err = float(jnp.max(jnp.abs(out - ref)))
    assert jnp.allclose(out, ref, atol=1e-4, rtol=1e-4), err
    print("KERNEL_OK")
</pallas_src>

<mosaic_0001>
module attributes {stable_mosaic.version = 11 : i64} {
  func.func @kernel(%arg0: i32, %arg1: memref<1x4x256xf32, #tpu.memory_space<vmem>>, %arg2: memref<8x37xf32, #tpu.memory_space<vmem>>, %arg3: memref<8x73xf32, #tpu.memory_space<vmem>>, %arg4: memref<8x101xf32, #tpu.memory_space<vmem>>, %arg5: memref<4x5xf32, #tpu.memory_space<vmem>>, %arg6: memref<4x9xf32, #tpu.memory_space<vmem>>, %arg7: memref<4x9xf32, #tpu.memory_space<vmem>>, %arg8: memref<4x13xf32, #tpu.memory_space<vmem>>, %arg9: memref<8x5xf32, #tpu.memory_space<vmem>>, %arg10: memref<1x8x256xf32, #tpu.memory_space<vmem>>) attributes {dimension_semantics = [#tpu.dimension_semantics<parallel>], iteration_bounds = array<i64: 2>, scalar_prefetch = 0 : i64, scratch_operands = 0 : i64, tpu.core_type = #tpu.core_type<tc>, window_params = [{transform_indices = @transform_0, window_bounds = array<i64: 1, 4, 256>}, {pipeline_mode = #tpu.pipeline_mode<synchronous>, transform_indices = @transform_1, window_bounds = array<i64: 8, 37>}, {pipeline_mode = #tpu.pipeline_mode<synchronous>, transform_indices = @transform_2, window_bounds = array<i64: 8, 73>}, {pipeline_mode = #tpu.pipeline_mode<synchronous>, transform_indices = @transform_3, window_bounds = array<i64: 8, 101>}, {pipeline_mode = #tpu.pipeline_mode<synchronous>, transform_indices = @transform_4, window_bounds = array<i64: 4, 5>}, {pipeline_mode = #tpu.pipeline_mode<synchronous>, transform_indices = @transform_5, window_bounds = array<i64: 4, 9>}, {pipeline_mode = #tpu.pipeline_mode<synchronous>, transform_indices = @transform_6, window_bounds = array<i64: 4, 9>}, {pipeline_mode = #tpu.pipeline_mode<synchronous>, transform_indices = @transform_7, window_bounds = array<i64: 4, 13>}, {pipeline_mode = #tpu.pipeline_mode<synchronous>, transform_indices = @transform_8, window_bounds = array<i64: 8, 5>}, {transform_indices = @transform_9, window_bounds = array<i64: 1, 8, 256>}]} {
    %c0 = arith.constant 0 : index
    %c0_0 = arith.constant 0 : index
    %c0_1 = arith.constant 0 : index
    %0 = vector.load %arg1[%c0, %c0_0, %c0_1] : memref<1x4x256xf32, #tpu.memory_space<vmem>>, vector<1x4x256xf32>
    %1 = vector.shape_cast %0 : vector<1x4x256xf32> to vector<4x256xf32>
    %2 = tpu.iota {dimensions = array<i32: 1>} : vector<1x256xi32>
    %c15_i32 = arith.constant 15 : i32
    %3 = vector.broadcast %c15_i32 : i32 to vector<1x256xi32>
    %4 = arith.andi %2, %3 : vector<1x256xi32>
    %c0_2 = arith.constant 0 : index
    %c0_3 = arith.constant 0 : index
    %5 = vector.load %arg2[%c0_2, %c0_3] : memref<8x37xf32, #tpu.memory_space<vmem>>, vector<8x37xf32>
    %c0_4 = arith.constant 0 : index
    %c0_5 = arith.constant 0 : index
    %6 = vector.load %arg3[%c0_4, %c0_5] : memref<8x73xf32, #tpu.memory_space<vmem>>, vector<8x73xf32>
    %c0_6 = arith.constant 0 : index
    %c0_7 = arith.constant 0 : index
    %7 = vector.load %arg4[%c0_6, %c0_7] : memref<8x101xf32, #tpu.memory_space<vmem>>, vector<8x101xf32>
    %c0_8 = arith.constant 0 : index
    %c0_9 = arith.constant 0 : index
    %8 = vector.load %arg5[%c0_8, %c0_9] : memref<4x5xf32, #tpu.memory_space<vmem>>, vector<4x5xf32>
    %c0_10 = arith.constant 0 : index
    %c0_11 = arith.constant 0 : index
    %9 = vector.load %arg6[%c0_10, %c0_11] : memref<4x9xf32, #tpu.memory_space<vmem>>, vector<4x9xf32>
    %c0_12 = arith.constant 0 : index
    %c0_13 = arith.constant 0 : index
    %10 = vector.load %arg7[%c0_12, %c0_13] : memref<4x9xf32, #tpu.memory_space<vmem>>, vector<4x9xf32>
    %c0_14 = arith.constant 0 : index
    %c0_15 = arith.constant 0 : index
    %11 = vector.load %arg8[%c0_14, %c0_15] : memref<4x13xf32, #tpu.memory_space<vmem>>, vector<4x13xf32>
    %c0_16 = arith.constant 0 : index
    %c0_17 = arith.constant 0 : index
    %12 = vector.load %arg9[%c0_16, %c0_17] : memref<8x5xf32, #tpu.memory_space<vmem>>, vector<8x5xf32>
    %cst = arith.constant 0.000000e+00 : f32
    %13 = vector.broadcast %cst : f32 to vector<4x128xf32>
    %14 = tpu.concatenate %13, %1, %13 in 1 : vector<4x128xf32>, vector<4x256xf32>, vector<4x128xf32> -> vector<4x512xf32>
    %15 = vector.extract_strided_slice %5 {offsets = [0, 36], sizes = [8, 1], strides = [1, 1]} : vector<8x37xf32> to vector<8x1xf32>
    %16 = vector.shape_cast %15 : vector<8x1xf32> to vector<8x1xf32>
    %17 = vector.broadcast %16 : vector<8x1xf32> to vector<8x256xf32>
    %18 = vector.extract_strided_slice %14 {offsets = [0, 111], sizes = [4, 256], strides = [1, 1]} : vector<4x512xf32> to vector<4x256xf32>
    %c1_i32 = arith.constant 1 : i32
    %19 = vector.broadcast %c1_i32 : i32 to vector<1x256xi32>
    %20 = arith.cmpi sge, %4, %19 : vector<1x256xi32>
    %c16_i32 = arith.constant 16 : i32
    %21 = vector.broadcast %c16_i32 : i32 to vector<1x256xi32>
    %22 = arith.cmpi sge, %2, %21 : vector<1x256xi32>
    %23 = arith.andi %20, %22 : vector<1x256xi1>
    %cst_18 = arith.constant 0.000000e+00 : f32
    %24 = vector.shape_cast %23 : vector<1x256xi1> to vector<1x256xi1>
    %25 = vector.broadcast %24 : vector<1x256xi1> to vector<4x256xi1>
    %26 = vector.broadcast %cst_18 : f32 to vector<4x256xf32>
    %27 = arith.select %25, %18, %26 : vector<4x256xi1>, vector<4x256xf32>
    %28 = vector.extract_strided_slice %5 {offsets = [0, 0], sizes = [8, 1], strides = [1, 1]} : vector<8x37xf32> to vector<8x1xf32>
    %29 = vector.extract_strided_slice %27 {offsets = [0, 0], sizes = [1, 256], strides = [1, 1]} : vector<4x256xf32> to vector<1x256xf32>
    %30 = vector.broadcast %28 : vector<8x1xf32> to vector<8x256xf32>
    %31 = vector.broadcast %29 : vector<1x256xf32> to vector<8x256xf32>
    %32 = arith.mulf %30, %31 : vector<8x256xf32>
    %33 = arith.addf %17, %32 : vector<8x256xf32>
    %34 = vector.extract_strided_slice %5 {offsets = [0, 1], sizes = [8, 1], strides = [1, 1]} : vector<8x37xf32> to vector<8x1xf32>
    %35 = vector.extract_strided_slice %27 {offsets = [1, 0], sizes = [1, 256], strides = [1, 1]} : vector<4x256xf32> to vector<1x256xf32>
    %36 = vector.broadcast %34 : vector<8x1xf32> to vector<8x256xf32>
    %37 = vector.broadcast %35 : vector<1x256xf32> to vector<8x256xf32>
    %38 = arith.mulf %36, %37 : vector<8x256xf32>
    %39 = arith.addf %33, %38 : vector<8x256xf32>
    %40 = vector.extract_strided_slice %5 {offsets = [0, 2], sizes = [8, 1], strides = [1, 1]} : vector<8x37xf32> to vector<8x1xf32>
    %41 = vector.extract_strided_slice %27 {offsets = [2, 0], sizes = [1, 256], strides = [1, 1]} : vector<4x256xf32> to vector<1x256xf32>
    %42 = vector.broadcast %40 : vector<8x1xf32> to vector<8x256xf32>
    %43 = vector.broadcast %41 : vector<1x256xf32> to vector<8x256xf32>
    %44 = arith.mulf %42, %43 : vector<8x256xf32>
    %45 = arith.addf %39, %44 : vector<8x256xf32>
    %46 = vector.extract_strided_slice %5 {offsets = [0, 3], sizes = [8, 1], strides = [1, 1]} : vector<8x37xf32> to vector<8x1xf32>
    %47 = vector.extract_strided_slice %27 {offsets = [3, 0], sizes = [1, 256], strides = [1, 1]} : vector<4x256xf32> to vector<1x256xf32>
    %48 = vector.broadcast %46 : vector<8x1xf32> to vector<8x256xf32>
    %49 = vector.broadcast %47 : vector<1x256xf32> to vector<8x256xf32>
    %50 = arith.mulf %48, %49 : vector<8x256xf32>
    %51 = arith.addf %45, %50 : vector<8x256xf32>
    %52 = vector.extract_strided_slice %14 {offsets = [0, 112], sizes = [4, 256], strides = [1, 1]} : vector<4x512xf32> to vector<4x256xf32>
    %c16_i32_19 = arith.constant 16 : i32
    %53 = vector.broadcast %c16_i32_19 : i32 to vector<1x256xi32>
    %54 = arith.cmpi sge, %2, %53 : vector<1x256xi32>
    %cst_20 = arith.constant 0.000000e+00 : f32
    %55 = vector.shape_cast %54 : vector<1x256xi1> to vector<1x256xi1>
    %56 = vector.broadcast %55 : vector<1x256xi1> to vector<4x256xi1>
    %57 = vector.broadcast %cst_20 : f32 to vector<4x256xf32>
    %58 = arith.select %56, %52, %57 : vector<4x256xi1>, vector<4x256xf32>
    %59 = vector.extract_strided_slice %5 {offsets = [0, 4], sizes = [8, 1], strides = [1, 1]} : vector<8x37xf32> to vector<8x1xf32>
    %60 = vector.extract_strided_slice %58 {offsets = [0, 0], sizes = [1, 256], strides = [1, 1]} : vector<4x256xf32> to vector<1x256xf32>
    %61 = vector.broadcast %59 : vector<8x1xf32> to vector<8x256xf32>
    %62 = vector.broadcast %60 : vector<1x256xf32> to vector<8x256xf32>
    %63 = arith.mulf %61, %62 : vector<8x256xf32>
    %64 = arith.addf %51, %63 : vector<8x256xf32>
    %65 = vector.extract_strided_slice %5 {offsets = [0, 5], sizes = [8, 1], strides = [1, 1]} : vector<8x37xf32> to vector<8x1xf32>
    %66 = vector.extract_strided_slice %58 {offsets = [1, 0], sizes = [1, 256], strides = [1, 1]} : vector<4x256xf32> to vector<1x256xf32>
    %67 = vector.broadcast %65 : vector<8x1xf32> to vector<8x256xf32>
    %68 = vector.broadcast %66 : vector<1x256xf32> to vector<8x256xf32>
    %69 = arith.mulf %67, %68 : vector<8x256xf32>
    %70 = arith.addf %64, %69 : vector<8x256xf32>
    %71 = vector.extract_strided_slice %5 {offsets = [0, 6], sizes = [8, 1], strides = [1, 1]} : vector<8x37xf32> to vector<8x1xf32>
    %72 = vector.extract_strided_slice %58 {offsets = [2, 0], sizes = [1, 256], strides = [1, 1]} : vector<4x256xf32> to vector<1x256xf32>
    %73 = vector.broadcast %71 : vector<8x1xf32> to vector<8x256xf32>
    %74 = vector.broadcast %72 : vector<1x256xf32> to vector<8x256xf32>
    %75 = arith.mulf %73, %74 : vector<8x256xf32>
    %76 = arith.addf %70, %75 : vector<8x256xf32>
    %77 = vector.extract_strided_slice %5 {offsets = [0, 7], sizes = [8, 1], strides = [1, 1]} : vector<8x37xf32> to vector<8x1xf32>
    %78 = vector.extract_strided_slice %58 {offsets = [3, 0], sizes = [1, 256], strides = [1, 1]} : vector<4x256xf32> to vector<1x256xf32>
    %79 = vector.broadcast %77 : vector<8x1xf32> to vector<8x256xf32>
    %80 = vector.broadcast %78 : vector<1x256xf32> to vector<8x256xf32>
    %81 = arith.mulf %79, %80 : vector<8x256xf32>
    %82 = arith.addf %76, %81 : vector<8x256xf32>
    %83 = vector.extract_strided_slice %14 {offsets = [0, 113], sizes = [4, 256], strides = [1, 1]} : vector<4x512xf32> to vector<4x256xf32>
    %c15_i32_21 = arith.constant 15 : i32
    %84 = vector.broadcast %c15_i32_21 : i32 to vector<1x256xi32>
    %85 = arith.cmpi slt, %4, %84 : vector<1x256xi32>
    %c16_i32_22 = arith.constant 16 : i32
    %86 = vector.broadcast %c16_i32_22 : i32 to vector<1x256xi32>
    %87 = arith.cmpi sge, %2, %86 : vector<1x256xi32>
    %88 = arith.andi %85, %87 : vector<1x256xi1>
    %cst_23 = arith.constant 0.000000e+00 : f32
    %89 = vector.shape_cast %88 : vector<1x256xi1> to vector<1x256xi1>
    %90 = vector.broadcast %89 : vector<1x256xi1> to vector<4x256xi1>
    %91 = vector.broadcast %cst_23 : f32 to vector<4x256xf32>
    %92 = arith.select %90, %83, %91 : vector<4x256xi1>, vector<4x256xf32>
    %93 = vector.extract_strided_slice %5 {offsets = [0, 8], sizes = [8, 1], strides = [1, 1]} : vector<8x37xf32> to vector<8x1xf32>
    %94 = vector.extract_strided_slice %92 {offsets = [0, 0], sizes = [1, 256], strides = [1, 1]} : vector<4x256xf32> to vector<1x256xf32>
    %95 = vector.broadcast %93 : vector<8x1xf32> to vector<8x256xf32>
    %96 = vector.broadcast %94 : vector<1x256xf32> to vector<8x256xf32>
    %97 = arith.mulf %95, %96 : vector<8x256xf32>
    %98 = arith.addf %82, %97 : vector<8x256xf32>
    %99 = vector.extract_strided_slice %5 {offsets = [0, 9], sizes = [8, 1], strides = [1, 1]} : vector<8x37xf32> to vector<8x1xf32>
    %100 = vector.extract_strided_slice %92 {offsets = [1, 0], sizes = [1, 256], strides = [1, 1]} : vector<4x256xf32> to vector<1x256xf32>
    %101 = vector.broadcast %99 : vector<8x1xf32> to vector<8x256xf32>
    %102 = vector.broadcast %100 : vector<1x256xf32> to vector<8x256xf32>
    %103 = arith.mulf %101, %102 : vector<8x256xf32>
    %104 = arith.addf %98, %103 : vector<8x256xf32>
    %105 = vector.extract_strided_slice %5 {offsets = [0, 10], sizes = [8, 1], strides = [1, 1]} : vector<8x37xf32> to vector<8x1xf32>
    %106 = vector.extract_strided_slice %92 {offsets = [2, 0], sizes = [1, 256], strides = [1, 1]} : vector<4x256xf32> to vector<1x256xf32>
    %107 = vector.broadcast %105 : vector<8x1xf32> to vector<8x256xf32>
    %108 = vector.broadcast %106 : vector<1x256xf32> to vector<8x256xf32>
    %109 = arith.mulf %107, %108 : vector<8x256xf32>
    %110 = arith.addf %104, %109 : vector<8x256xf32>
    %111 = vector.extract_strided_slice %5 {offsets = [0, 11], sizes = [8, 1], strides = [1, 1]} : vector<8x37xf32> to vector<8x1xf32>
    %112 = vector.extract_strided_slice %92 {offsets = [3, 0], sizes = [1, 256], strides = [1, 1]} : vector<4x256xf32> to vector<1x256xf32>
    %113 = vector.broadcast %111 : vector<8x1xf32> to vector<8x256xf32>
    %114 = vector.broadcast %112 : vector<1x256xf32> to vector<8x256xf32>
    %115 = arith.mulf %113, %114 : vector<8x256xf32>
    %116 = arith.addf %110, %115 : vector<8x256xf32>
    %117 = vector.extract_strided_slice %14 {offsets = [0, 127], sizes = [4, 256], strides = [1, 1]} : vector<4x512xf32> to vector<4x256xf32>
    %c1_i32_24 = arith.constant 1 : i32
    %118 = vector.broadcast %c1_i32_24 : i32 to vector<1x256xi32>
    %119 = arith.cmpi sge, %4, %118 : vector<1x256xi32>
    %cst_25 = arith.constant 0.000000e+00 : f32
    %120 = vector.shape_cast %119 : vector<1x256xi1> to vector<1x256xi1>
    %121 = vector.broadcast %120 : vector<1x256xi1> to vector<4x256xi1>
    %122 = vector.broadcast %cst_25 : f32 to vector<4x256xf32>
    %123 = arith.select %121, %117, %122 : vector<4x256xi1>, vector<4x256xf32>
    %124 = vector.extract_strided_slice %5 {offsets = [0, 12], sizes = [8, 1], strides = [1, 1]} : vector<8x37xf32> to vector<8x1xf32>
    %125 = vector.extract_strided_slice %123 {offsets = [0, 0], sizes = [1, 256], strides = [1, 1]} : vector<4x256xf32> to vector<1x256xf32>
    %126 = vector.broadcast %124 : vector<8x1xf32> to vector<8x256xf32>
    %127 = vector.broadcast %125 : vector<1x256xf32> to vector<8x256xf32>
    %128 = arith.mulf %126, %127 : vector<8x256xf32>
    %129 = arith.addf %116, %128 : vector<8x256xf32>
    %130 = vector.extract_strided_slice %5 {offsets = [0, 13], sizes = [8, 1], strides = [1, 1]} : vector<8x37xf32> to vector<8x1xf32>
    %131 = vector.extract_strided_slice %123 {offsets = [1, 0], sizes = [1, 256], strides = [1, 1]} : vector<4x256xf32> to vector<1x256xf32>
    %132 = vector.broadcast %130 : vector<8x1xf32> to vector<8x256xf32>
    %133 = vector.broadcast %131 : vector<1x256xf32> to vector<8x256xf32>
    %134 = arith.mulf %132, %133 : vector<8x256xf32>
    %135 = arith.addf %129, %134 : vector<8x256xf32>
    %136 = vector.extract_strided_slice %5 {offsets = [0, 14], sizes = [8, 1], strides = [1, 1]} : vector<8x37xf32> to vector<8x1xf32>
    %137 = vector.extract_strided_slice %123 {offsets = [2, 0], sizes = [1, 256], strides = [1, 1]} : vector<4x256xf32> to vector<1x256xf32>
    %138 = vector.broadcast %136 : vector<8x1xf32> to vector<8x256xf32>
    %139 = vector.broadcast %137 : vector<1x256xf32> to vector<8x256xf32>
    %140 = arith.mulf %138, %139 : vector<8x256xf32>
    %141 = arith.addf %135, %140 : vector<8x256xf32>
    %142 = vector.extract_strided_slice %5 {offsets = [0, 15], sizes = [8, 1], strides = [1, 1]} : vector<8x37xf32> to vector<8x1xf32>
    %143 = vector.extract_strided_slice %123 {offsets = [3, 0], sizes = [1, 256], strides = [1, 1]} : vector<4x256xf32> to vector<1x256xf32>
    %144 = vector.broadcast %142 : vector<8x1xf32> to vector<8x256xf32>
    %145 = vector.broadcast %143 : vector<1x256xf32> to vector<8x256xf32>
    %146 = arith.mulf %144, %145 : vector<8x256xf32>
    %147 = arith.addf %141, %146 : vector<8x256xf32>
    %148 = vector.extract_strided_slice %5 {offsets = [0, 16], sizes = [8, 1], strides = [1, 1]} : vector<8x37xf32> to vector<8x1xf32>
    %149 = vector.extract_strided_slice %1 {offsets = [0, 0], sizes = [1, 256], strides = [1, 1]} : vector<4x256xf32> to vector<1x256xf32>
    %150 = vector.broadcast %148 : vector<8x1xf32> to vector<8x256xf32>
    %151 = vector.broadcast %149 : vector<1x256xf32> to vector<8x256xf32>
    %152 = arith.mulf %150, %151 : vector<8x256xf32>
    %153 = arith.addf %147, %152 : vector<8x256xf32>
    %154 = vector.extract_strided_slice %5 {offsets = [0, 17], sizes = [8, 1], strides = [1, 1]} : vector<8x37xf32> to vector<8x1xf32>
    %155 = vector.extract_strided_slice %1 {offsets = [1, 0], sizes = [1, 256], strides = [1, 1]} : vector<4x256xf32> to vector<1x256xf32>
    %156 = vector.broadcast %154 : vector<8x1xf32> to vector<8x256xf32>
    %157 = vector.broadcast %155 : vector<1x256xf32> to vector<8x256xf32>
    %158 = arith.mulf %156, %157 : vector<8x256xf32>
    %159 = arith.addf %153, %158 : vector<8x256xf32>
    %160 = vector.extract_strided_slice %5 {offsets = [0, 18], sizes = [8, 1], strides = [1, 1]} : vector<8x37xf32> to vector<8x1xf32>
    %161 = vector.extract_strided_slice %1 {offsets = [2, 0], sizes = [1, 256], strides = [1, 1]} : vector<4x256xf32> to vector<1x256xf32>
    %162 = vector.broadcast %160 : vector<8x1xf32> to vector<8x256xf32>
    %163 = vector.broadcast %161 : vector<1x256xf32> to vector<8x256xf32>
    %164 = arith.mulf %162, %163 : vector<8x256xf32>
    %165 = arith.addf %159, %164 : vector<8x256xf32>
    %166 = vector.extract_strided_slice %5 {offsets = [0, 19], sizes = [8, 1], strides = [1, 1]} : vector<8x37xf32> to vector<8x1xf32>
    %167 = vector.extract_strided_slice %1 {offsets = [3, 0], sizes = [1, 256], strides = [1, 1]} : vector<4x256xf32> to vector<1x256xf32>
    %168 = vector.broadcast %166 : vector<8x1xf32> to vector<8x256xf32>
    %169 = vector.broadcast %167 : vector<1x256xf32> to vector<8x256xf32>
    %170 = arith.mulf %168, %169 : vector<8x256xf32>
    %171 = arith.addf %165, %170 : vector<8x256xf32>
    %172 = vector.extract_strided_slice %14 {offsets = [0, 129], sizes = [4, 256], strides = [1, 1]} : vector<4x512xf32> to vector<4x256xf32>
    %c15_i32_26 = arith.constant 15 : i32
    %173 = vector.broadcast %c15_i32_26 : i32 to vector<1x256xi32>
    %174 = arith.cmpi slt, %4, %173 : vector<1x256xi32>
    %cst_27 = arith.constant 0.000000e+00 : f32
    %175 = vector.shape_cast %174 : vector<1x256xi1> to vector<1x256xi1>
    %176 = vector.broadcast %175 : vector<1x256xi1> to vector<4x256xi1>
    %177 = vector.broadcast %cst_27 : f32 to vector<4x256xf32>
    %178 = arith.select %176, %172, %177 : vector<4x256xi1>, vector<4x256xf32>
    %179 = vector.extract_strided_slice %5 {offsets = [0, 20], sizes = [8, 1], strides = [1, 1]} : vector<8x37xf32> to vector<8x1xf32>
    %180 = vector.extract_strided_slice %178 {offsets = [0, 0], sizes = [1, 256], strides = [1, 1]} : vector<4x256xf32> to vector<1x256xf32>
    %181 = vector.broadcast %179 : vector<8x1xf32> to vector<8x256xf32>
    %182 = vector.broadcast %180 : vector<1x256xf32> to vector<8x256xf32>
    %183 = arith.mulf %181, %182 : vector<8x256xf32>
    %184 = arith.addf %171, %183 : vector<8x256xf32>
    %185 = vector.extract_strided_slice %5 {offsets = [0, 21], sizes = [8, 1], strides = [1, 1]} : vector<8x37xf32> to vector<8x1xf32>
    %186 = vector.extract_strided_slice %178 {offsets = [1, 0], sizes = [1, 256], strides = [1, 1]} : vector<4x256xf32> to vector<1x256xf32>
    %187 = vector.broadcast %185 : vector<8x1xf32> to vector<8x256xf32>
    %188 = vector.broadcast %186 : vector<1x256xf32> to vector<8x256xf32>
    %189 = arith.mulf %187, %188 : vector<8x256xf32>
    %190 = arith.addf %184, %189 : vector<8x256xf32>
    %191 = vector.extract_strided_slice %5 {offsets = [0, 22], sizes = [8, 1], strides = [1, 1]} : vector<8x37xf32> to vector<8x1xf32>
    %192 = vector.extract_strided_slice %178 {offsets = [2, 0], sizes = [1, 256], strides = [1, 1]} : vector<4x256xf32> to vector<1x256xf32>
    %193 = vector.broadcast %191 : vector<8x1xf32> to vector<8x256xf32>
    %194 = vector.broadcast %192 : vector<1x256xf32> to vector<8x256xf32>
    %195 = arith.mulf %193, %194 : vector<8x256xf32>
    %196 = arith.addf %190, %195 : vector<8x256xf32>
    %197 = vector.extract_strided_slice %5 {offsets = [0, 23], sizes = [8, 1], strides = [1, 1]} : vector<8x37xf32> to vector<8x1xf32>
    %198 = vector.extract_strided_slice %178 {offsets = [3, 0], sizes = [1, 256], strides = [1, 1]} : vector<4x256xf32> to vector<1x256xf32>
    %199 = vector.broadcast %197 : vector<8x1xf32> to vector<8x256xf32>
    %200 = vector.broadcast %198 : vector<1x256xf32> to vector<8x256xf32>
    %201 = arith.mulf %199, %200 : vector<8x256xf32>
    %202 = arith.addf %196, %201 : vector<8x256xf32>
    %203 = vector.extract_strided_slice %14 {offsets = [0, 143], sizes = [4, 256], strides = [1, 1]} : vector<4x512xf32> to vector<4x256xf32>
    %c1_i32_28 = arith.constant 1 : i32
    %204 = vector.broadcast %c1_i32_28 : i32 to vector<1x256xi32>
    %205 = arith.cmpi sge, %4, %204 : vector<1x256xi32>
    %c240_i32 = arith.constant 240 : i32
    %206 = vector.broadcast %c240_i32 : i32 to vector<1x256xi32>
    %207 = arith.cmpi slt, %2, %206 : vector<1x256xi32>
    %208 = arith.andi %205, %207 : vector<1x256xi1>
    %cst_29 = arith.constant 0.000000e+00 : f32
    %209 = vector.shape_cast %208 : vector<1x256xi1> to vector<1x256xi1>
    %210 = vector.broadcast %209 : vector<1x256xi1> to vector<4x256xi1>
    %211 = vector.broadcast %cst_29 : f32 to vector<4x256xf32>
    %212 = arith.select %210, %203, %211 : vector<4x256xi1>, vector<4x256xf32>
    %213 = vector.extract_strided_slice %5 {offsets = [0, 24], sizes = [8, 1], strides = [1, 1]} : vector<8x37xf32> to vector<8x1xf32>
    %214 = vector.extract_strided_slice %212 {offsets = [0, 0], sizes = [1, 256], strides = [1, 1]} : vector<4x256xf32> to vector<1x256xf32>
    %215 = vector.broadcast %213 : vector<8x1xf32> to vector<8x256xf32>
    %216 = vector.broadcast %214 : vector<1x256xf32> to vector<8x256xf32>
    %217 = arith.mulf %215, %216 : vector<8x256xf32>
    %218 = arith.addf %202, %217 : vector<8x256xf32>
    %219 = vector.extract_strided_slice %5 {offsets = [0, 25], sizes = [8, 1], strides = [1, 1]} : vector<8x37xf32> to vector<8x1xf32>
    %220 = vector.extract_strided_slice %212 {offsets = [1, 0], sizes = [1, 256], strides = [1, 1]} : vector<4x256xf32> to vector<1x256xf32>
    %221 = vector.broadcast %219 : vector<8x1xf32> to vector<8x256xf32>
    %222 = vector.broadcast %220 : vector<1x256xf32> to vector<8x256xf32>
    %223 = arith.mulf %221, %222 : vector<8x256xf32>
    %224 = arith.addf %218, %223 : vector<8x256xf32>
    %225 = vector.extract_strided_slice %5 {offsets = [0, 26], sizes = [8, 1], strides = [1, 1]} : vector<8x37xf32> to vector<8x1xf32>
    %226 = vector.extract_strided_slice %212 {offsets = [2, 0], sizes = [1, 256], strides = [1, 1]} : vector<4x256xf32> to vector<1x256xf32>
    %227 = vector.broadcast %225 : vector<8x1xf32> to vector<8x256xf32>
    %228 = vector.broadcast %226 : vector<1x256xf32> to vector<8x256xf32>
    %229 = arith.mulf %227, %228 : vector<8x256xf32>
    %230 = arith.addf %224, %229 : vector<8x256xf32>
    %231 = vector.extract_strided_slice %5 {offsets = [0, 27], sizes = [8, 1], strides = [1, 1]} : vector<8x37xf32> to vector<8x1xf32>
    %232 = vector.extract_strided_slice %212 {offsets = [3, 0], sizes = [1, 256], strides = [1, 1]} : vector<4x256xf32> to vector<1x256xf32>
    %233 = vector.broadcast %231 : vector<8x1xf32> to vector<8x256xf32>
    %234 = vector.broadcast %232 : vector<1x256xf32> to vector<8x256xf32>
    %235 = arith.mulf %233, %234 : vector<8x256xf32>
    %236 = arith.addf %230, %235 : vector<8x256xf32>
    %237 = vector.extract_strided_slice %14 {offsets = [0, 144], sizes = [4, 256], strides = [1, 1]} : vector<4x512xf32> to vector<4x256xf32>
    %c240_i32_30 = arith.constant 240 : i32
    %238 = vector.broadcast %c240_i32_30 : i32 to vector<1x256xi32>
    %239 = arith.cmpi slt, %2, %238 : vector<1x256xi32>
    %cst_31 = arith.constant 0.000000e+00 : f32
    %240 = vector.shape_cast %239 : vector<1x256xi1> to vector<1x256xi1>
    %241 = vector.broadcast %240 : vector<1x256xi1> to vector<4x256xi1>
    %242 = vector.broadcast %cst_31 : f32 to vector<4x256xf32>
    %243 = arith.select %241, %237, %242 : vector<4x256xi1>, vector<4x256xf32>
    %244 = vector.extract_strided_slice %5 {offsets = [0, 28], sizes = [8, 1], strides = [1, 1]} : vector<8x37xf32> to vector<8x1xf32>
    %245 = vector.extract_strided_slice %243 {offsets = [0, 0], sizes = [1, 256], strides = [1, 1]} : vector<4x256xf32> to vector<1x256xf32>
    %246 = vector.broadcast %244 : vector<8x1xf32> to vector<8x256xf32>
    %247 = vector.broadcast %245 : vector<1x256xf32> to vector<8x256xf32>
    %248 = arith.mulf %246, %247 : vector<8x256xf32>
    %249 = arith.addf %236, %248 : vector<8x256xf32>
    %250 = vector.extract_strided_slice %5 {offsets = [0, 29], sizes = [8, 1], strides = [1, 1]} : vector<8x37xf32> to vector<8x1xf32>
    %251 = vector.extract_strided_slice %243 {offsets = [1, 0], sizes = [1, 256], strides = [1, 1]} : vector<4x256xf32> to vector<1x256xf32>
    %252 = vector.broadcast %250 : vector<8x1xf32> to vector<8x256xf32>
    %253 = vector.broadcast %251 : vector<1x256xf32> to vector<8x256xf32>
    %254 = arith.mulf %252, %253 : vector<8x256xf32>
    %255 = arith.addf %249, %254 : vector<8x256xf32>
    %256 = vector.extract_strided_slice %5 {offsets = [0, 30], sizes = [8, 1], strides = [1, 1]} : vector<8x37xf32> to vector<8x1xf32>
    %257 = vector.extract_strided_slice %243 {offsets = [2, 0], sizes = [1, 256], strides = [1, 1]} : vector<4x256xf32> to vector<1x256xf32>
    %258 = vector.broadcast %256 : vector<8x1xf32> to vector<8x256xf32>
    %259 = vector.broadcast %257 : vector<1x256xf32> to vector<8x256xf32>
    %260 = arith.mulf %258, %259 : vector<8x256xf32>
    %261 = arith.addf %255, %260 : vector<8x256xf32>
    %262 = vector.extract_strided_slice %5 {offsets = [0, 31], sizes = [8, 1], strides = [1, 1]} : vector<8x37xf32> to vector<8x1xf32>
    %263 = vector.extract_strided_slice %243 {offsets = [3, 0], sizes = [1, 256], strides = [1, 1]} : vector<4x256xf32> to vector<1x256xf32>
    %264 = vector.broadcast %262 : vector<8x1xf32> to vector<8x256xf32>
    %265 = vector.broadcast %263 : vector<1x256xf32> to vector<8x256xf32>
    %266 = arith.mulf %264, %265 : vector<8x256xf32>
    %267 = arith.addf %261, %266 : vector<8x256xf32>
    %268 = vector.extract_strided_slice %14 {offsets = [0, 145], sizes = [4, 256], strides = [1, 1]} : vector<4x512xf32> to vector<4x256xf32>
    %c15_i32_32 = arith.constant 15 : i32
    %269 = vector.broadcast %c15_i32_32 : i32 to vector<1x256xi32>
    %270 = arith.cmpi slt, %4, %269 : vector<1x256xi32>
    %c240_i32_33 = arith.constant 240 : i32
    %271 = vector.broadcast %c240_i32_33 : i32 to vector<1x256xi32>
    %272 = arith.cmpi slt, %2, %271 : vector<1x256xi32>
    %273 = arith.andi %270, %272 : vector<1x256xi1>
    %cst_34 = arith.constant 0.000000e+00 : f32
    %274 = vector.shape_cast %273 : vector<1x256xi1> to vector<1x256xi1>
    %275 = vector.broadcast %274 : vector<1x256xi1> to vector<4x256xi1>
    %276 = vector.broadcast %cst_34 : f32 to vector<4x256xf32>
    %277 = arith.select %275, %268, %276 : vector<4x256xi1>, vector<4x256xf32>
    %278 = vector.extract_strided_slice %5 {offsets = [0, 32], sizes = [8, 1], strides = [1, 1]} : vector<8x37xf32> to vector<8x1xf32>
    %279 = vector.extract_strided_slice %277 {offsets = [0, 0], sizes = [1, 256], strides = [1, 1]} : vector<4x256xf32> to vector<1x256xf32>
    %280 = vector.broadcast %278 : vector<8x1xf32> to vector<8x256xf32>
    %281 = vector.broadcast %279 : vector<1x256xf32> to vector<8x256xf32>
    %282 = arith.mulf %280, %281 : vector<8x256xf32>
    %283 = arith.addf %267, %282 : vector<8x256xf32>
    %284 = vector.extract_strided_slice %5 {offsets = [0, 33], sizes = [8, 1], strides = [1, 1]} : vector<8x37xf32> to vector<8x1xf32>
    %285 = vector.extract_strided_slice %277 {offsets = [1, 0], sizes = [1, 256], strides = [1, 1]} : vector<4x256xf32> to vector<1x256xf32>
    %286 = vector.broadcast %284 : vector<8x1xf32> to vector<8x256xf32>
    %287 = vector.broadcast %285 : vector<1x256xf32> to vector<8x256xf32>
    %288 = arith.mulf %286, %287 : vector<8x256xf32>
    %289 = arith.addf %283, %288 : vector<8x256xf32>
    %290 = vector.extract_strided_slice %5 {offsets = [0, 34], sizes = [8, 1], strides = [1, 1]} : vector<8x37xf32> to vector<8x1xf32>
    %291 = vector.extract_strided_slice %277 {offsets = [2, 0], sizes = [1, 256], strides = [1, 1]} : vector<4x256xf32> to vector<1x256xf32>
    %292 = vector.broadcast %290 : vector<8x1xf32> to vector<8x256xf32>
    %293 = vector.broadcast %291 : vector<1x256xf32> to vector<8x256xf32>
    %294 = arith.mulf %292, %293 : vector<8x256xf32>
    %295 = arith.addf %289, %294 : vector<8x256xf32>
    %296 = vector.extract_strided_slice %5 {offsets = [0, 35], sizes = [8, 1], strides = [1, 1]} : vector<8x37xf32> to vector<8x1xf32>
    %297 = vector.extract_strided_slice %277 {offsets = [3, 0], sizes = [1, 256], strides = [1, 1]} : vector<4x256xf32> to vector<1x256xf32>
    %298 = vector.broadcast %296 : vector<8x1xf32> to vector<8x256xf32>
    %299 = vector.broadcast %297 : vector<1x256xf32> to vector<8x256xf32>
    %300 = arith.mulf %298, %299 : vector<8x256xf32>
    %301 = arith.addf %295, %300 : vector<8x256xf32>
    %cst_35 = arith.constant 0.000000e+00 : f32
    %302 = vector.broadcast %cst_35 : f32 to vector<8x256xf32>
    %303 = arith.maximumf %301, %302 : vector<8x256xf32>
    %cst_36 = arith.constant 0.000000e+00 : f32
    %304 = vector.broadcast %cst_36 : f32 to vector<8x128xf32>
    %305 = tpu.concatenate %304, %303, %304 in 1 : vector<8x128xf32>, vector<8x256xf32>, vector<8x128xf32> -> vector<8x512xf32>
    %306 = vector.extract_strided_slice %6 {offsets = [0, 72], sizes = [8, 1], strides = [1, 1]} : vector<8x73xf32> to vector<8x1xf32>
    %307 = vector.shape_cast %306 : vector<8x1xf32> to vector<8x1xf32>
    %308 = vector.broadcast %307 : vector<8x1xf32> to vector<8x256xf32>
    %309 = vector.extract_strided_slice %305 {offsets = [0, 111], sizes = [8, 256], strides = [1, 1]} : vector<8x512xf32> to vector<8x256xf32>
    %c1_i32_37 = arith.constant 1 : i32
    %310 = vector.broadcast %c1_i32_37 : i32 to vector<1x256xi32>
    %311 = arith.cmpi sge, %4, %310 : vector<1x256xi32>
    %c16_i32_38 = arith.constant 16 : i32
    %312 = vector.broadcast %c16_i32_38 : i32 to vector<1x256xi32>
    %313 = arith.cmpi sge, %2, %312 : vector<1x256xi32>
    %314 = arith.andi %311, %313 : vector<1x256xi1>
    %cst_39 = arith.constant 0.000000e+00 : f32
    %315 = vector.shape_cast %314 : vector<1x256xi1> to vector<1x256xi1>
    %316 = vector.broadcast %315 : vector<1x256xi1> to vector<8x256xi1>
    %317 = vector.broadcast %cst_39 : f32 to vector<8x256xf32>
    %318 = arith.select %316, %309, %317 : vector<8x256xi1>, vector<8x256xf32>
    %319 = vector.extract_strided_slice %6 {offsets = [0, 0], sizes = [8, 1], strides = [1, 1]} : vector<8x73xf32> to vector<8x1xf32>
    %320 = vector.extract_strided_slice %318 {offsets = [0, 0], sizes = [1, 256], strides = [1, 1]} : vector<8x256xf32> to vector<1x256xf32>
    %321 = vector.broadcast %319 : vector<8x1xf32> to vector<8x256xf32>
    %322 = vector.broadcast %320 : vector<1x256xf32> to vector<8x256xf32>
    %323 = arith.mulf %321, %322 : vector<8x256xf32>
    %324 = arith.addf %308, %323 : vector<8x256xf32>
    %325 = vector.extract_strided_slice %6 {offsets = [0, 1], sizes = [8, 1], strides = [1, 1]} : vector<8x73xf32> to vector<8x1xf32>
    %326 = vector.extract_strided_slice %318 {offsets = [1, 0], sizes = [1, 256], strides = [1, 1]} : vector<8x256xf32> to vector<1x256xf32>
    %327 = vector.broadcast %325 : vector<8x1xf32> to vector<8x256xf32>
    %328 = vector.broadcast %326 : vector<1x256xf32> to vector<8x256xf32>
    %329 = arith.mulf %327, %328 : vector<8x256xf32>
    %330 = arith.addf %324, %329 : vector<8x256xf32>
    %331 = vector.extract_strided_slice %6 {offsets = [0, 2], sizes = [8, 1], strides = [1, 1]} : vector<8x73xf32> to vector<8x1xf32>
    %332 = vector.extract_strided_slice %318 {offsets = [2, 0], sizes = [1, 256], strides = [1, 1]} : vector<8x256xf32> to vector<1x256xf32>
    %333 = vector.broadcast %331 : vector<8x1xf32> to vector<8x256xf32>
    %334 = vector.broadcast %332 : vector<1x256xf32> to vector<8x256xf32>
    %335 = arith.mulf %333, %334 : vector<8x256xf32>
    %336 = arith.addf %330, %335 : vector<8x256xf32>
    %337 = vector.extract_strided_slice %6 {offsets = [0, 3], sizes = [8, 1], strides = [1, 1]} : vector<8x73xf32> to vector<8x1xf32>
    %338 = vector.extract_strided_slice %318 {offsets = [3, 0], sizes = [1, 256], strides = [1, 1]} : vector<8x256xf32> to vector<1x256xf32>
    %339 = vector.broadcast %337 : vector<8x1xf32> to vector<8x256xf32>
    %340 = vector.broadcast %338 : vector<1x256xf32> to vector<8x256xf32>
    %341 = arith.mulf %339, %340 : vector<8x256xf32>
    %342 = arith.addf %336, %341 : vector<8x256xf32>
    %343 = vector.extract_strided_slice %6 {offsets = [0, 4], sizes = [8, 1], strides = [1, 1]} : vector<8x73xf32> to vector<8x1xf32>
    %344 = vector.extract_strided_slice %318 {offsets = [4, 0], sizes = [1, 256], strides = [1, 1]} : vector<8x256xf32> to vector<1x256xf32>
    %345 = vector.broadcast %343 : vector<8x1xf32> to vector<8x256xf32>
    %346 = vector.broadcast %344 : vector<1x256xf32> to vector<8x256xf32>
    %347 = arith.mulf %345, %346 : vector<8x256xf32>
    %348 = arith.addf %342, %347 : vector<8x256xf32>
    %349 = vector.extract_strided_slice %6 {offsets = [0, 5], sizes = [8, 1], strides = [1, 1]} : vector<8x73xf32> to vector<8x1xf32>
    %350 = vector.extract_strided_slice %318 {offsets = [5, 0], sizes = [1, 256], strides = [1, 1]} : vector<8x256xf32> to vector<1x256xf32>
    %351 = vector.broadcast %349 : vector<8x1xf32> to vector<8x256xf32>
    %352 = vector.broadcast %350 : vector<1x256xf32> to vector<8x256xf32>
    %353 = arith.mulf %351, %352 : vector<8x256xf32>
    %354 = arith.addf %348, %353 : vector<8x256xf32>
    %355 = vector.extract_strided_slice %6 {offsets = [0, 6], sizes = [8, 1], strides = [1, 1]} : vector<8x73xf32> to vector<8x1xf32>
    %356 = vector.extract_strided_slice %318 {offsets = [6, 0], sizes = [1, 256], strides = [1, 1]} : vector<8x256xf32> to vector<1x256xf32>
    %357 = vector.broadcast %355 : vector<8x1xf32> to vector<8x256xf32>
    %358 = vector.broadcast %356 : vector<1x256xf32> to vector<8x256xf32>
    %359 = arith.mulf %357, %358 : vector<8x256xf32>
    %360 = arith.addf %354, %359 : vector<8x256xf32>
    %361 = vector.extract_strided_slice %6 {offsets = [0, 7], sizes = [8, 1], strides = [1, 1]} : vector<8x73xf32> to vector<8x1xf32>
    %362 = vector.extract_strided_slice %318 {offsets = [7, 0], sizes = [1, 256], strides = [1, 1]} : vector<8x256xf32> to vector<1x256xf32>
    %363 = vector.broadcast %361 : vector<8x1xf32> to vector<8x256xf32>
    %364 = vector.broadcast %362 : vector<1x256xf32> to vector<8x256xf32>
    %365 = arith.mulf %363, %364 : vector<8x256xf32>
    %366 = arith.addf %360, %365 : vector<8x256xf32>
    %367 = vector.extract_strided_slice %305 {offsets = [0, 112], sizes = [8, 256], strides = [1, 1]} : vector<8x512xf32> to vector<8x256xf32>
    %c16_i32_40 = arith.constant 16 : i32
    %368 = vector.broadcast %c16_i32_40 : i32 to vector<1x256xi32>
    %369 = arith.cmpi sge, %2, %368 : vector<1x256xi32>
    %cst_41 = arith.constant 0.000000e+00 : f32
    %370 = vector.shape_cast %369 : vector<1x256xi1> to vector<1x256xi1>
    %371 = vector.broadcast %370 : vector<1x256xi1> to vector<8x256xi1>
    %372 = vector.broadcast %cst_41 : f32 to vector<8x256xf32>
    %373 = arith.select %371, %367, %372 : vector<8x256xi1>, vector<8x256xf32>
    %374 = vector.extract_strided_slice %6 {offsets = [0, 8], sizes = [8, 1], strides = [1, 1]} : vector<8x73xf32> to vector<8x1xf32>
    %375 = vector.extract_strided_slice %373 {offsets = [0, 0], sizes = [1, 256], strides = [1, 1]} : vector<8x256xf32> to vector<1x256xf32>
    %376 = vector.broadcast %374 : vector<8x1xf32> to vector<8x256xf32>
    %377 = vector.broadcast %375 : vector<1x256xf32> to vector<8x256xf32>
    %378 = arith.mulf %376, %377 : vector<8x256xf32>
    %379 = arith.addf %366, %378 : vector<8x256xf32>
    %380 = vector.extract_strided_slice %6 {offsets = [0, 9], sizes = [8, 1], strides = [1, 1]} : vector<8x73xf32> to vector<8x1xf32>
    %381 = vector.extract_strided_slice %373 {offsets = [1, 0], sizes = [1, 256], strides = [1, 1]} : vector<8x256xf32> to vector<1x256xf32>
    %382 = vector.broadcast %380 : vector<8x1xf32> to vector<8x256xf32>
    %383 = vector.broadcast %381 : vector<1x256xf32> to vector<8x256xf32>
    %384 = arith.mulf %382, %383 : vector<8x256xf32>
    %385 = arith.addf %379, %384 : vector<8x256xf32>
    %386 = vector.extract_strided_slice %6 {offsets = [0, 10], sizes = [8, 1], strides = [1, 1]} : vector<8x73xf32> to vector<8x1xf32>
    %387 = vector.extract_strided_slice %373 {offsets = [2, 0], sizes = [1, 256], strides = [1, 1]} : vector<8x256xf32> to vector<1x256xf32>
    %388 = vector.broadcast %386 : vector<8x1xf32> to vector<8x256xf32>
    %389 = vector.broadcast %387 : vector<1x256xf32> to vector<8x256xf32>
    %390 = arith.mulf %388, %389 : vector<8x256xf32>
    %391 = arith.addf %385, %390 : vector<8x256xf32>
    %392 = vector.extract_strided_slice %6 {offsets = [0, 11], sizes = [8, 1], strides = [1, 1]} : vector<8x73xf32> to vector<8x1xf32>
    %393 = vector.extract_strided_slice %373 {offsets = [3, 0], sizes = [1, 256], strides = [1, 1]} : vector<8x256xf32> to vector<1x256xf32>
    %394 = vector.broadcast %392 : vector<8x1xf32> to vector<8x256xf32>
    %395 = vector.broadcast %393 : vector<1x256xf32> to vector<8x256xf32>
    %396 = arith.mulf %394, %395 : vector<8x256xf32>
    %397 = arith.addf %391, %396 : vector<8x256xf32>
    %398 = vector.extract_strided_slice %6 {offsets = [0, 12], sizes = [8, 1], strides = [1, 1]} : vector<8x73xf32> to vector<8x1xf32>
    %399 = vector.extract_strided_slice %373 {offsets = [4, 0], sizes = [1, 256], strides = [1, 1]} : vector<8x256xf32> to vector<1x256xf32>
    %400 = vector.broadcast %398 : vector<8x1xf32> to vector<8x256xf32>
    %401 = vector.broadcast %399 : vector<1x256xf32> to vector<8x256xf32>
    %402 = arith.mulf %400, %401 : vector<8x256xf32>
    %403 = arith.addf %397, %402 : vector<8x256xf32>
    %404 = vector.extract_strided_slice %6 {offsets = [0, 13], sizes = [8, 1], strides = [1, 1]} : vector<8x73xf32> to vector<8x1xf32>
    %405 = vector.extract_strided_slice %373 {offsets = [5, 0], sizes = [1, 256], strides = [1, 1]} : vector<8x256xf32> to vector<1x256xf32>
    %406 = vector.broadcast %404 : vector<8x1xf32> to vector<8x256xf32>
    %407 = vector.broadcast %405 : vector<1x256xf32> to vector<8x256xf32>
    %408 = arith.mulf %406, %407 : vector<8x256xf32>
    %409 = arith.addf %403, %408 : vector<8x256xf32>
    %410 = vector.extract_strided_slice %6 {offsets = [0, 14], sizes = [8, 1], strides = [1, 1]} : vector<8x73xf32> to vector<8x1xf32>
    %411 = vector.extract_strided_slice %373 {offsets = [6, 0], sizes = [1, 256], strides = [1, 1]} : vector<8x256xf32> to vector<1x256xf32>
    %412 = vector.broadcast %410 : vector<8x1xf32> to vector<8x256xf32>
    %413 = vector.broadcast %411 : vector<1x256xf32> to vector<8x256xf32>
    %414 = arith.mulf %412, %413 : vector<8x256xf32>
    %415 = arith.addf %409, %414 : vector<8x256xf32>
    %416 = vector.extract_strided_slice %6 {offsets = [0, 15], sizes = [8, 1], strides = [1, 1]} : vector<8x73xf32> to vector<8x1xf32>
    %417 = vector.extract_strided_slice %373 {offsets = [7, 0], sizes = [1, 256], strides = [1, 1]} : vector<8x256xf32> to vector<1x256xf32>
    %418 = vector.broadcast %416 : vector<8x1xf32> to vector<8x256xf32>
    %419 = vector.broadcast %417 : vector<1x256xf32> to vector<8x256xf32>
    %420 = arith.mulf %418, %419 : vector<8x256xf32>
    %421 = arith.addf %415, %420 : vector<8x256xf32>
    %422 = vector.extract_strided_slice %305 {offsets = [0, 113], sizes = [8, 256], strides = [1, 1]} : vector<8x512xf32> to vector<8x256xf32>
    %c15_i32_42 = arith.constant 15 : i32
    %423 = vector.broadcast %c15_i32_42 : i32 to vector<1x256xi32>
    %424 = arith.cmpi slt, %4, %423 : vector<1x256xi32>
    %c16_i32_43 = arith.constant 16 : i32
    %425 = vector.broadcast %c16_i32_43 : i32 to vector<1x256xi32>
    %426 = arith.cmpi sge, %2, %425 : vector<1x256xi32>
    %427 = arith.andi %424, %426 : vector<1x256xi1>
    %cst_44 = arith.constant 0.000000e+00 : f32
    %428 = vector.shape_cast %427 : vector<1x256xi1> to vector<1x256xi1>
    %429 = vector.broadcast %428 : vector<1x256xi1> to vector<8x256xi1>
    %430 = vector.broadcast %cst_44 : f32 to vector<8x256xf32>
    %431 = arith.select %429, %422, %430 : vector<8x256xi1>, vector<8x256xf32>
    %432 = vector.extract_strided_slice %6 {offsets = [0, 16], sizes = [8, 1], strides = [1, 1]} : vector<8x73xf32> to vector<8x1xf32>
    %433 = vector.extract_strided_slice %431 {offsets = [0, 0], sizes = [1, 256], strides = [1, 1]} : vector<8x256xf32> to vector<1x256xf32>
    %434 = vector.broadcast %432 : vector<8x1xf32> to vector<8x256xf32>
    %435 = vector.broadcast %433 : vector<1x256xf32> to vector<8x256xf32>
    %436 = arith.mulf %434, %435 : vector<8x256xf32>
    %437 = arith.addf %421, %436 : vector<8x256xf32>
    %438 = vector.extract_strided_slice %6 {offsets = [0, 17], sizes = [8, 1], strides = [1, 1]} : vector<8x73xf32> to vector<8x1xf32>
    %439 = vector.extract_strided_slice %431 {offsets = [1, 0], sizes = [1, 256], strides = [1, 1]} : vector<8x256xf32> to vector<1x256xf32>
    %440 = vector.broadcast %438 : vector<8x1xf32> to vector<8x256xf32>
    %441 = vector.broadcast %439 : vector<1x256xf32> to vector<8x256xf32>
    %442 = arith.mulf %440, %441 : vector<8x256xf32>
    %443 = arith.addf %437, %442 : vector<8x256xf32>
    %444 = vector.extract_strided_slice %6 {offsets = [0, 18], sizes = [8, 1], strides = [1, 1]} : vector<8x73xf32> to vector<8x1xf32>
    %445 = vector.extract_strided_slice %431 {offsets = [2, 0], sizes = [1, 256], strides = [1, 1]} : vector<8x256xf32> to vector<1x256xf32>
    %446 = vector.broadcast %444 : vector<8x1xf32> to vector<8x256xf32>
    %447 = vector.broadcast %445 : vector<1x256xf32> to vector<8x256xf32>
    %448 = arith.mulf %446, %447 : vector<8x256xf32>
    %449 = arith.addf %443, %448 : vector<8x256xf32>
    %450 = vector.extract_strided_slice %6 {offsets = [0, 19], sizes = [8, 1], strides = [1, 1]} : vector<8x73xf32> to vector<8x1xf32>
    %451 = vector.extract_strided_slice %431 {offsets = [3, 0], sizes = [1, 256], strides = [1, 1]} : vector<8x256xf32> to vector<1x256xf32>
    %452 = vector.broadcast %450 : vector<8x1xf32> to vector<8x256xf32>
    %453 = vector.broadcast %451 : vector<1x256xf32> to vector<8x256xf32>
    %454 = arith.mulf %452, %453 : vector<8x256xf32>
    %455 = arith.addf %449, %454 : vector<8x256xf32>
    %456 = vector.extract_strided_slice %6 {offsets = [0, 20], sizes = [8, 1], strides = [1, 1]} : vector<8x73xf32> to vector<8x1xf32>
    %457 = vector.extract_strided_slice %431 {offsets = [4, 0], sizes = [1, 256], strides = [1, 1]} : vector<8x256xf32> to vector<1x256xf32>
    %458 = vector.broadcast %456 : vector<8x1xf32> to vector<8x256xf32>
    %459 = vector.broadcast %457 : vector<1x256xf32> to vector<8x256xf32>
    %460 = arith.mulf %458, %459 : vector<8x256xf32>
    %461 = arith.addf %455, %460 : vector<8x256xf32>
    %462 = vector.extract_strided_slice %6 {offsets = [0, 21], sizes = [8, 1], strides = [1, 1]} : vector<8x73xf32> to vector<8x1xf32>
    %463 = vector.extract_strided_slice %431 {offsets = [5, 0], sizes = [1, 256], strides = [1, 1]} : vector<8x256xf32> to vector<1x256xf32>
    %464 = vector.broadcast %462 : vector<8x1xf32> to vector<8x256xf32>
    %465 = vector.broadcast %463 : vector<1x256xf32> to vector<8x256xf32>
    %466 = arith.mulf %464, %465 : vector<8x256xf32>
    %467 = arith.addf %461, %466 : vector<8x256xf32>
    %468 = vector.extract_strided_slice %6 {offsets = [0, 22], sizes = [8, 1], strides = [1, 1]} : vector<8x73xf32> to vector<8x1xf32>
    %469 = vector.extract_strided_slice %431 {offsets = [6, 0], sizes = [1, 256], strides = [1, 1]} : vector<8x256xf32> to vector<1x256xf32>
    %470 = vector.broadcast %468 : vector<8x1xf32> to vector<8x256xf32>
    %471 = vector.broadcast %469 : vector<1x256xf32> to vector<8x256xf32>
    %472 = arith.mulf %470, %471 : vector<8x256xf32>
    %473 = arith.addf %467, %472 : vector<8x256xf32>
    %474 = vector.extract_strided_slice %6 {offsets = [0, 23], sizes = [8, 1], strides = [1, 1]} : vector<8x73xf32> to vector<8x1xf32>
    %475 = vector.extract_strided_slice %431 {offsets = [7, 0], sizes = [1, 256], strides = [1, 1]} : vector<8x256xf32> to vector<1x256xf32>
    %476 = vector.broadcast %474 : vector<8x1xf32> to vector<8x256xf32>
    %477 = vector.broadcast %475 : vector<1x256xf32> to vector<8x256xf32>
    %478 = arith.mulf %476, %477 : vector<8x256xf32>
    %479 = arith.addf %473, %478 : vector<8x256xf32>
    %480 = vector.extract_strided_slice %305 {offsets = [0, 127], sizes = [8, 256], strides = [1, 1]} : vector<8x512xf32> to vector<8x256xf32>
    %c1_i32_45 = arith.constant 1 : i32
    %481 = vector.broadcast %c1_i32_45 : i32 to vector<1x256xi32>
    %482 = arith.cmpi sge, %4, %481 : vector<1x256xi32>
    %cst_46 = arith.constant 0.000000e+00 : f32
    %483 = vector.shape_cast %482 : vector<1x256xi1> to vector<1x256xi1>
    %484 = vector.broadcast %483 : vector<1x256xi1> to vector<8x256xi1>
    %485 = vector.broadcast %cst_46 : f32 to vector<8x256xf32>
    %486 = arith.select %484, %480, %485 : vector<8x256xi1>, vector<8x256xf32>
    %487 = vector.extract_strided_slice %6 {offsets = [0, 24], sizes = [8, 1], strides = [1, 1]} : vector<8x73xf32> to vector<8x1xf32>
    %488 = vector.extract_strided_slice %486 {offsets = [0, 0], sizes = [1, 256], strides = [1, 1]} : vector<8x256xf32> to vector<1x256xf32>
    %489 = vector.broadcast %487 : vector<8x1xf32> to vector<8x256xf32>
    %490 = vector.broadcast %488 : vector<1x256xf32> to vector<8x256xf32>
    %491 = arith.mulf %489, %490 : vector<8x256xf32>
    %492 = arith.addf %479, %491 : vector<8x256xf32>
    %493 = vector.extract_strided_slice %6 {offsets = [0, 25], sizes = [8, 1], strides = [1, 1]} : vector<8x73xf32> to vector<8x1xf32>
    %494 = vector.extract_strided_slice %486 {offsets = [1, 0], sizes = [1, 256], strides = [1, 1]} : vector<8x256xf32> to vector<1x256xf32>
    %495 = vector.broadcast %493 : vector<8x1xf32> to vector<8x256xf32>
    %496 = vector.broadcast %494 : vector<1x256xf32> to vector<8x256xf32>
    %497 = arith.mulf %495, %496 : vector<8x256xf32>
    %498 = arith.addf %492, %497 : vector<8x256xf32>
    %499 = vector.extract_strided_slice %6 {offsets = [0, 26], sizes = [8, 1], strides = [1, 1]} : vector<8x73xf32> to vector<8x1xf32>
    %500 = vector.extract_strided_slice %486 {offsets = [2, 0], sizes = [1, 256], strides = [1, 1]} : vector<8x256xf32> to vector<1x256xf32>
    %501 = vector.broadcast %499 : vector<8x1xf32> to vector<8x256xf32>
    %502 = vector.broadcast %500 : vector<1x256xf32> to vector<8x256xf32>
    %503 = arith.mulf %501, %502 : vector<8x256xf32>
    %504 = arith.addf %498, %503 : vector<8x256xf32>
    %505 = vector.extract_strided_slice %6 {offsets = [0, 27], sizes = [8, 1], strides = [1, 1]} : vector<8x73xf32> to vector<8x1xf32>
    %506 = vector.extract_strided_slice %486 {offsets = [3, 0], sizes = [1, 256], strides = [1, 1]} : vector<8x256xf32> to vector<1x256xf32>
    %507 = vector.broadcast %505 : vector<8x1xf32> to vector<8x256xf32>
    %508 = vector.broadcast %506 : vector<1x256xf32> to vector<8x256xf32>
    %509 = arith.mulf %507, %508 : vector<8x256xf32>
    %510 = arith.addf %504, %509 : vector<8x256xf32>
    %511 = vector.extract_strided_slice %6 {offsets = [0, 28], sizes = [8, 1], strides = [1, 1]} : vector<8x73xf32> to vector<8x1xf32>
    %512 = vector.extract_strided_slice %486 {offsets = [4, 0], sizes = [1, 256], strides = [1, 1]} : vector<8x256xf32> to vector<1x256xf32>
    %513 = vector.broadcast %511 : vector<8x1xf32> to vector<8x256xf32>
    %514 = vector.broadcast %512 : vector<1x256xf32> to vector<8x256xf32>
    %515 = arith.mulf %513, %514 : vector<8x256xf32>
    %516 = arith.addf %510, %515 : vector<8x256xf32>
    %517 = vector.extract_strided_slice %6 {offsets = [0, 29], sizes = [8, 1], strides = [1, 1]} : vector<8x73xf32> to vector<8x1xf32>
    %518 = vector.extract_strided_slice %486 {offsets = [5, 0], sizes = [1, 256], strides = [1, 1]} : vector<8x256xf32> to vector<1x256xf32>
    %519 = vector.broadcast %517 : vector<8x1xf32> to vector<8x256xf32>
    %520 = vector.broadcast %518 : vector<1x256xf32> to vector<8x256xf32>
    %521 = arith.mulf %519, %520 : vector<8x256xf32>
    %522 = arith.addf %516, %521 : vector<8x256xf32>
    %523 = vector.extract_strided_slice %6 {offsets = [0, 30], sizes = [8, 1], strides = [1, 1]} : vector<8x73xf32> to vector<8x1xf32>
    %524 = vector.extract_strided_slice %486 {offsets = [6, 0], sizes = [1, 256], strides = [1, 1]} : vector<8x256xf32> to vector<1x256xf32>
    %525 = vector.broadcast %523 : vector<8x1xf32> to vector<8x256xf32>
    %526 = vector.broadcast %524 : vector<1x256xf32> to vector<8x256xf32>
    %527 = arith.mulf %525, %526 : vector<8x256xf32>
    %528 = arith.addf %522, %527 : vector<8x256xf32>
    %529 = vector.extract_strided_slice %6 {offsets = [0, 31], sizes = [8, 1], strides = [1, 1]} : vector<8x73xf32> to vector<8x1xf32>
    %530 = vector.extract_strided_slice %486 {offsets = [7, 0], sizes = [1, 256], strides = [1, 1]} : vector<8x256xf32> to vector<1x256xf32>
    %531 = vector.broadcast %529 : vector<8x1xf32> to vector<8x256xf32>
    %532 = vector.broadcast %530 : vector<1x256xf32> to vector<8x256xf32>
    %533 = arith.mulf %531, %532 : vector<8x256xf32>
    %534 = arith.addf %528, %533 : vector<8x256xf32>
    %535 = vector.extract_strided_slice %6 {offsets = [0, 32], sizes = [8, 1], strides = [1, 1]} : vector<8x73xf32> to vector<8x1xf32>
    %536 = vector.extract_strided_slice %303 {offsets = [0, 0], sizes = [1, 256], strides = [1, 1]} : vector<8x256xf32> to vector<1x256xf32>
    %537 = vector.broadcast %535 : vector<8x1xf32> to vector<8x256xf32>
    %538 = vector.broadcast %536 : vector<1x256xf32> to vector<8x256xf32>
    %539 = arith.mulf %537, %538 : vector<8x256xf32>
    %540 = arith.addf %534, %539 : vector<8x256xf32>
    %541 = vector.extract_strided_slice %6 {offsets = [0, 33], sizes = [8, 1], strides = [1, 1]} : vector<8x73xf32> to vector<8x1xf32>
    %542 = vector.extract_strided_slice %303 {offsets = [1, 0], sizes = [1, 256], strides = [1, 1]} : vector<8x256xf32> to vector<1x256xf32>
    %543 = vector.broadcast %541 : vector<8x1xf32> to vector<8x256xf32>
    %544 = vector.broadcast %542 : vector<1x256xf32> to vector<8x256xf32>
    %545 = arith.mulf %543, %544 : vector<8x256xf32>
    %546 = arith.addf %540, %545 : vector<8x256xf32>
    %547 = vector.extract_strided_slice %6 {offsets = [0, 34], sizes = [8, 1], strides = [1, 1]} : vector<8x73xf32> to vector<8x1xf32>
    %548 = vector.extract_strided_slice %303 {offsets = [2, 0], sizes = [1, 256], strides = [1, 1]} : vector<8x256xf32> to vector<1x256xf32>
    %549 = vector.broadcast %547 : vector<8x1xf32> to vector<8x256xf32>
    %550 = vector.broadcast %548 : vector<1x256xf32> to vector<8x256xf32>
    %551 = arith.mulf %549, %550 : vector<8x256xf32>
    %552 = arith.addf %546, %551 : vector<8x256xf32>
    %553 = vector.extract_strided_slice %6 {offsets = [0, 35], sizes = [8, 1], strides = [1, 1]} : vector<8x73xf32> to vector<8x1xf32>
    %554 = vector.extract_strided_slice %303 {offsets = [3, 0], sizes = [1, 256], strides = [1, 1]} : vector<8x256xf32> to vector<1x256xf32>
    %555 = vector.broadcast %553 : vector<8x1xf32> to vector<8x256xf32>
    %556 = vector.broadcast %554 : vector<1x256xf32> to vector<8x256xf32>
    %557 = arith.mulf %555, %556 : vector<8x256xf32>
    %558 = arith.addf %552, %557 : vector<8x256xf32>
    %559 = vector.extract_strided_slice %6 {offsets = [0, 36], sizes = [8, 1], strides = [1, 1]} : vector<8x73xf32> to vector<8x1xf32>
    %560 = vector.extract_strided_slice %303 {offsets = [4, 0], sizes = [1, 256], strides = [1, 1]} : vector<8x256xf32> to vector<1x256xf32>
    %561 = vector.broadcast %559 : vector<8x1xf32> to vector<8x256xf32>
    %562 = vector.broadcast %560 : vector<1x256xf32> to vector<8x256xf32>
    %563 = arith.mulf %561, %562 : vector<8x256xf32>
    %564 = arith.addf %558, %563 : vector<8x256xf32>
    %565 = vector.extract_strided_slice %6 {offsets = [0, 37], sizes = [8, 1], strides = [1, 1]} : vector<8x73xf32> to vector<8x1xf32>
    %566 = vector.extract_strided_slice %303 {offsets = [5, 0], sizes = [1, 256], strides = [1, 1]} : vector<8x256xf32> to vector<1x256xf32>
    %567 = vector.broadcast %565 : vector<8x1xf32> to vector<8x256xf32>
    %568 = vector.broadcast %566 : vector<1x256xf32> to vector<8x256xf32>
    %569 = arith.mulf %567, %568 : vector<8x256xf32>
    %570 = arith.addf %564, %569 : vector<8x256xf32>
    %571 = vector.extract_strided_slice %6 {offsets = [0, 38], sizes = [8, 1], strides = [1, 1]} : vector<8x73xf32> to vector<8x1xf32>
    %572 = vector.extract_strided_slice %303 {offsets = [6, 0], sizes = [1, 256], strides = [1, 1]} : vector<8x256xf32> to vector<1x256xf32>
    %573 = vector.broadcast %571 : vector<8x1xf32> to vector<8x256xf32>
    %574 = vector.broadcast %572 : vector<1x256xf32> to vector<8x256xf32>
    %575 = arith.mulf %573, %574 : vector<8x256xf32>
    %576 = arith.addf %570, %575 : vector<8x256xf32>
    %577 = vector.extract_strided_slice %6 {offsets = [0, 39], sizes = [8, 1], strides = [1, 1]} : vector<8x73xf32> to vector<8x1xf32>
    %578 = vector.extract_strided_slice %303 {offsets = [7, 0], sizes = [1, 256], strides = [1, 1]} : vector<8x256xf32> to vector<1x256xf32>
    %579 = vector.broadcast %577 : vector<8x1xf32> to vector<8x256xf32>
    %580 = vector.broadcast %578 : vector<1x256xf32> to vector<8x256xf32>
    %581 = arith.mulf %579, %580 : vector<8x256xf32>
    %582 = arith.addf %576, %581 : vector<8x256xf32>
    %583 = vector.extract_strided_slice %305 {offsets = [0, 129], sizes = [8, 256], strides = [1, 1]} : vector<8x512xf32> to vector<8x256xf32>
    %c15_i32_47 = arith.constant 15 : i32
    %584 = vector.broadcast %c15_i32_47 : i32 to vector<1x256xi32>
    %585 = arith.cmpi slt, %4, %584 : vector<1x256xi32>
    %cst_48 = arith.constant 0.000000e+00 : f32
    %586 = vector.shape_cast %585 : vector<1x256xi1> to vector<1x256xi1>
    %587 = vector.broadcast %586 : vector<1x256xi1> to vector<8x256xi1>
    %588 = vector.broadcast %cst_48 : f32 to vector<8x256xf32>
    %589 = arith.select %587, %583, %588 : vector<8x256xi1>, vector<8x256xf32>
    %590 = vector.extract_strided_slice %6 {offsets = [0, 40], sizes = [8, 1], strides = [1, 1]} : vector<8x73xf32> to vector<8x1xf32>
    %591 = vector.extract_strided_slice %589 {offsets = [0, 0], sizes = [1, 256], strides = [1, 1]} : vector<8x256xf32> to vector<1x256xf32>
    %592 = vector.broadcast %590 : vector<8x1xf32> to vector<8x256xf32>
    %593 = vector.broadcast %591 : vector<1x256xf32> to vector<8x256xf32>
    %594 = arith.mulf %592, %593 : vector<8x256xf32>
    %595 = arith.addf %582, %594 : vector<8x256xf32>
    %596 = vector.extract_strided_slice %6 {offsets = [0, 41], sizes = [8, 1], strides = [1, 1]} : vector<8x73xf32> to vector<8x1xf32>
    %597 = vector.extract_strided_slice %589 {offsets = [1, 0], sizes = [1, 256], strides = [1, 1]} : vector<8x256xf32> to vector<1x256xf32>
    %598 = vector.broadcast %596 : vector<8x1xf32> to vector<8x256xf32>
    %599 = vector.broadcast %597 : vector<1x256xf32> to vector<8x256xf32>
    %600 = arith.mulf %598, %599 : vector<8x256xf32>
    %601 = arith.addf %595, %600 : vector<8x256xf32>
    %602 = vector.extract_strided_slice %6 {offsets = [0, 42], sizes = [8, 1], strides = [1, 1]} : vector<8x73xf32> to vector<8x1xf32>
    %603 = vector.extract_strided_slice %589 {offsets = [2, 0], sizes = [1, 256], strides = [1, 1]} : vector<8x256xf32> to vector<1x256xf32>
    %604 = vector.broadcast %602 : vector<8x1xf32> to vector<8x256xf32>
    %605 = vector.broadcast %603 : vector<1x256xf32> to vector<8x256xf32>
    %606 = arith.mulf %604, %605 : vector<8x256xf32>
    %607 = arith.addf %601, %606 : vector<8x256xf32>
    %608 = vector.extract_strided_slice %6 {offsets = [0, 43], sizes = [8, 1], strides = [1, 1]} : vector<8x73xf32> to vector<8x1xf32>
    %609 = vector.extract_strided_slice %589 {offsets = [3, 0], sizes = [1, 256], strides = [1, 1]} : vector<8x256xf32> to vector<1x256xf32>
    %610 = vector.broadcast %608 : vector<8x1xf32> to vector<8x256xf32>
    %611 = vector.broadcast %609 : vector<1x256xf32> to vector<8x256xf32>
    %612 = arith.mulf %610, %611 : vector<8x256xf32>
    %613 = arith.addf %607, %612 : vector<8x256xf32>
    %614 = vector.extract_strided_slice %6 {offsets = [0, 44], sizes = [8, 1], strides = [1, 1]} : vector<8x73xf32> to vector<8x1xf32>
    %615 = vector.extract_strided_slice %589 {offsets = [4, 0], sizes = [1, 256], strides = [1, 1]} : vector<8x256xf32> to vector<1x256xf32>
    %616 = vector.broadcast %614 : vector<8x1xf32> to vector<8x256xf32>
    %617 = vector.broadcast %615 : vector<1x256xf32> to vector<8x256xf32>
    %618 = arith.mulf %616, %617 : vector<8x256xf32>
    %619 = arith.addf %613, %618 : vector<8x256xf32>
    %620 = vector.extract_strided_slice %6 {offsets = [0, 45], sizes = [8, 1], strides = [1, 1]} : vector<8x73xf32> to vector<8x1xf32>
    %621 = vector.extract_strided_slice %589 {offsets = [5, 0], sizes = [1, 256], strides = [1, 1]} : vector<8x256xf32> to vector<1x256xf32>
    %622 = vector.broadcast %620 : vector<8x1xf32> to vector<8x256xf32>
    %623 = vector.broadcast %621 : vector<1x256xf32> to vector<8x256xf32>
    %624 = arith.mulf %622, %623 : vector<8x256xf32>
    %625 = arith.addf %619, %624 : vector<8x256xf32>
    %626 = vector.extract_strided_slice %6 {offsets = [0, 46], sizes = [8, 1], strides = [1, 1]} : vector<8x73xf32> to vector<8x1xf32>
    %627 = vector.extract_strided_slice %589 {offsets = [6, 0], sizes = [1, 256], strides = [1, 1]} : vector<8x256xf32> to vector<1x256xf32>
    %628 = vector.broadcast %626 : vector<8x1xf32> to vector<8x256xf32>
    %629 = vector.broadcast %627 : vector<1x256xf32> to vector<8x256xf32>
    %630 = arith.mulf %628, %629 : vector<8x256xf32>
    %631 = arith.addf %625, %630 : vector<8x256xf32>
    %632 = vector.extract_strided_slice %6 {offsets = [0, 47], sizes = [8, 1], strides = [1, 1]} : vector<8x73xf32> to vector<8x1xf32>
    %633 = vector.extract_strided_slice %589 {offsets = [7, 0], sizes = [1, 256], strides = [1, 1]} : vector<8x256xf32> to vector<1x256xf32>
    %634 = vector.broadcast %632 : vector<8x1xf32> to vector<8x256xf32>
    %635 = vector.broadcast %633 : vector<1x256xf32> to vector<8x256xf32>
    %636 = arith.mulf %634, %635 : vector<8x256xf32>
    %637 = arith.addf %631, %636 : vector<8x256xf32>
    %638 = vector.extract_strided_slice %305 {offsets = [0, 143], sizes = [8, 256], strides = [1, 1]} : vector<8x512xf32> to vector<8x256xf32>
    %c1_i32_49 = arith.constant 1 : i32
    %639 = vector.broadcast %c1_i32_49 : i32 to vector<1x256xi32>
    %640 = arith.cmpi sge, %4, %639 : vector<1x256xi32>
    %c240_i32_50 = arith.constant 240 : i32
    %641 = vector.broadcast %c240_i32_50 : i32 to vector<1x256xi32>
    %642 = arith.cmpi slt, %2, %641 : vector<1x256xi32>
    %643 = arith.andi %640, %642 : vector<1x256xi1>
    %cst_51 = arith.constant 0.000000e+00 : f32
    %644 = vector.shape_cast %643 : vector<1x256xi1> to vector<1x256xi1>
    %645 = vector.broadcast %644 : vector<1x256xi1> to vector<8x256xi1>
    %646 = vector.broadcast %cst_51 : f32 to vector<8x256xf32>
    %647 = arith.select %645, %638, %646 : vector<8x256xi1>, vector<8x256xf32>
    %648 = vector.extract_strided_slice %6 {offsets = [0, 48], sizes = [8, 1], strides = [1, 1]} : vector<8x73xf32> to vector<8x1xf32>
    %649 = vector.extract_strided_slice %647 {offsets = [0, 0], sizes = [1, 256], strides = [1, 1]} : vector<8x256xf32> to vector<1x256xf32>
    %650 = vector.broadcast %648 : vector<8x1xf32> to vector<8x256xf32>
    %651 = vector.broadcast %649 : vector<1x256xf32> to vector<8x256xf32>
    %652 = arith.mulf %650, %651 : vector<8x256xf32>
    %653 = arith.addf %637, %652 : vector<8x256xf32>
    %654 = vector.extract_strided_slice %6 {offsets = [0, 49], sizes = [8, 1], strides = [1, 1]} : vector<8x73xf32> to vector<8x1xf32>
    %655 = vector.extract_strided_slice %647 {offsets = [1, 0], sizes = [1, 256], strides = [1, 1]} : vector<8x256xf32> to vector<1x256xf32>
    %656 = vector.broadcast %654 : vector<8x1xf32> to vector<8x256xf32>
    %657 = vector.broadcast %655 : vector<1x256xf32> to vector<8x256xf32>
    %658 = arith.mulf %656, %657 : vector<8x256xf32>
    %659 = arith.addf %653, %658 : vector<8x256xf32>
    %660 = vector.extract_strided_slice %6 {offsets = [0, 50], sizes = [8, 1], strides = [1, 1]} : vector<8x73xf32> to vector<8x1xf32>
    %661 = vector.extract_strided_slice %647 {offsets = [2, 0], sizes = [1, 256], strides = [1, 1]} : vector<8x256xf32> to vector<1x256xf32>
    %662 = vector.broadcast %660 : vector<8x1xf32> to vector<8x256xf32>
    %663 = vector.broadcast %661 : vector<1x256xf32> to vector<8x256xf32>
    %664 = arith.mulf %662, %663 : vector<8x256xf32>
    %665 = arith.addf %659, %664 : vector<8x256xf32>
    %666 = vector.extract_strided_slice %6 {offsets = [0, 51], sizes = [8, 1], strides = [1, 1]} : vector<8x73xf32> to vector<8x1xf32>
    %667 = vector.extract_strided_slice %647 {offsets = [3, 0], sizes = [1, 256], strides = [1, 1]} : vector<8x256xf32> to vector<1x256xf32>
    %668 = vector.broadcast %666 : vector<8x1xf32> to vector<8x256xf32>
    %669 = vector.broadcast %667 : vector<1x256xf32> to vector<8x256xf32>
    %670 = arith.mulf %668, %669 : vector<8x256xf32>
    %671 = arith.addf %665, %670 : vector<8x256xf32>
    %672 = vector.extract_strided_slice %6 {offsets = [0, 52], sizes = [8, 1], strides = [1, 1]} : vector<8x73xf32> to vector<8x1xf32>
    %673 = vector.extract_strided_slice %647 {offsets = [4, 0], sizes = [1, 256], strides = [1, 1]} : vector<8x256xf32> to vector<1x256xf32>
    %674 = vector.broadcast %672 : vector<8x1xf32> to vector<8x256xf32>
    %675 = vector.broadcast %673 : vector<1x256xf32> to vector<8x256xf32>
    %676 = arith.mulf %674, %675 : vector<8x256xf32>
    %677 = arith.addf %671, %676 : vector<8x256xf32>
    %678 = vector.extract_strided_slice %6 {offsets = [0, 53], sizes = [8, 1], strides = [1, 1]} : vector<8x73xf32> to vector<8x1xf32>
    %679 = vector.extract_strided_slice %647 {offsets = [5, 0], sizes = [1, 256], strides = [1, 1]} : vector<8x256xf32> to vector<1x256xf32>
    %680 = vector.broadcast %678 : vector<8x1xf32> to vector<8x256xf32>
    %681 = vector.broadcast %679 : vector<1x256xf32> to vector<8x256xf32>
    %682 = arith.mulf %680, %681 : vector<8x256xf32>
    %683 = arith.addf %677, %682 : vector<8x256xf32>
    %684 = vector.extract_strided_slice %6 {offsets = [0, 54], sizes = [8, 1], strides = [1, 1]} : vector<8x73xf32> to vector<8x1xf32>
    %685 = vector.extract_strided_slice %647 {offsets = [6, 0], sizes = [1, 256], strides = [1, 1]} : vector<8x256xf32> to vector<1x256xf32>
    %686 = vector.broadcast %684 : vector<8x1xf32> to vector<8x256xf32>
    %687 = vector.broadcast %685 : vector<1x256xf32> to vector<8x256xf32>
    %688 = arith.mulf %686, %687 : vector<8x256xf32>
    %689 = arith.addf %683, %688 : vector<8x256xf32>
    %690 = vector.extract_strided_slice %6 {offsets = [0, 55], sizes = [8, 1], strides = [1, 1]} : vector<8x73xf32> to vector<8x1xf32>
    %691 = vector.extract_strided_slice %647 {offsets = [7, 0], sizes = [1, 256], strides = [1, 1]} : vector<8x256xf32> to vector<1x256xf32>
    %692 = vector.broadcast %690 : vector<8x1xf32> to vector<8x256xf32>
    %693 = vector.broadcast %691 : vector<1x256xf32> to vector<8x256xf32>
    %694 = arith.mulf %692, %693 : vector<8x256xf32>
    %695 = arith.addf %689, %694 : vector<8x256xf32>
    %696 = vector.extract_strided_slice %305 {offsets = [0, 144], sizes = [8, 256], strides = [1, 1]} : vector<8x512xf32> to vector<8x256xf32>
    %c240_i32_52 = arith.constant 240 : i32
    %697 = vector.broadcast %c240_i32_52 : i32 to vector<1x256xi32>
    %698 = arith.cmpi slt, %2, %697 : vector<1x256xi32>
    %cst_53 = arith.constant 0.000000e+00 : f32
    %699 = vector.shape_cast %698 : vector<1x256xi1> to vector<1x256xi1>
    %700 = vector.broadcast %699 : vector<1x256xi1> to vector<8x256xi1>
    %701 = vector.broadcast %cst_53 : f32 to vector<8x256xf32>
    %702 = arith.select %700, %696, %701 : vector<8x256xi1>, vector<8x256xf32>
    %703 = vector.extract_strided_slice %6 {offsets = [0, 56], sizes = [8, 1], strides = [1, 1]} : vector<8x73xf32> to vector<8x1xf32>
    %704 = vector.extract_strided_slice %702 {offsets = [0, 0], sizes = [1, 256], strides = [1, 1]} : vector<8x256xf32> to vector<1x256xf32>
    %705 = vector.broadcast %703 : vector<8x1xf32> to vector<8x256xf32>
    %706 = vector.broadcast %704 : vector<1x256xf32> to vector<8x256xf32>
    %707 = arith.mulf %705, %706 : vector<8x256xf32>
    %708 = arith.addf %695, %707 : vector<8x256xf32>
    %709 = vector.extract_strided_slice %6 {offsets = [0, 57], sizes = [8, 1], strides = [1, 1]} : vector<8x73xf32> to vector<8x1xf32>
    %710 = vector.extract_strided_slice %702 {offsets = [1, 0], sizes = [1, 256], strides = [1, 1]} : vector<8x256xf32> to vector<1x256xf32>
    %711 = vector.broadcast %709 : vector<8x1xf32> to vector<8x256xf32>
    %712 = vector.broadcast %710 : vector<1x256xf32> to vector<8x256xf32>
    %713 = arith.mulf %711, %712 : vector<8x256xf32>
    %714 = arith.addf %708, %713 : vector<8x256xf32>
    %715 = vector.extract_strided_slice %6 {offsets = [0, 58], sizes = [8, 1], strides = [1, 1]} : vector<8x73xf32> to vector<8x1xf32>
    %716 = vector.extract_strided_slice %702 {offsets = [2, 0], sizes = [1, 256], strides = [1, 1]} : vector<8x256xf32> to vector<1x256xf32>
    %717 = vector.broadcast %715 : vector<8x1xf32> to vector<8x256xf32>
    %718 = vector.broadcast %716 : vector<1x256xf32> to vector<8x256xf32>
    %719 = arith.mulf %717, %718 : vector<8x256xf32>
    %720 = arith.addf %714, %719 : vector<8x256xf32>
    %721 = vector.extract_strided_slice %6 {offsets = [0, 59], sizes = [8, 1], strides = [1, 1]} : vector<8x73xf32> to vector<8x1xf32>
    %722 = vector.extract_strided_slice %702 {offsets = [3, 0], sizes = [1, 256], strides = [1, 1]} : vector<8x256xf32> to vector<1x256xf32>
    %723 = vector.broadcast %721 : vector<8x1xf32> to vector<8x256xf32>
    %724 = vector.broadcast %722 : vector<1x256xf32> to vector<8x256xf32>
    %725 = arith.mulf %723, %724 : vector<8x256xf32>
    %726 = arith.addf %720, %725 : vector<8x256xf32>
    %727 = vector.extract_strided_slice %6 {offsets = [0, 60], sizes = [8, 1], strides = [1, 1]} : vector<8x73xf32> to vector<8x1xf32>
    %728 = vector.extract_strided_slice %702 {offsets = [4, 0], sizes = [1, 256], strides = [1, 1]} : vector<8x256xf32> to vector<1x256xf32>
    %729 = vector.broadcast %727 : vector<8x1xf32> to vector<8x256xf32>
    %730 = vector.broadcast %728 : vector<1x256xf32> to vector<8x256xf32>
    %731 = arith.mulf %729, %730 : vector<8x256xf32>
    %732 = arith.addf %726, %731 : vector<8x256xf32>
    %733 = vector.extract_strided_slice %6 {offsets = [0, 61], sizes = [8, 1], strides = [1, 1]} : vector<8x73xf32> to vector<8x1xf32>
    %734 = vector.extract_strided_slice %702 {offsets = [5, 0], sizes = [1, 256], strides = [1, 1]} : vector<8x256xf32> to vector<1x256xf32>
    %735 = vector.broadcast %733 : vector<8x1xf32> to vector<8x256xf32>
    %736 = vector.broadcast %734 : vector<1x256xf32> to vector<8x256xf32>
    %737 = arith.mulf %735, %736 : vector<8x256xf32>
    %738 = arith.addf %732, %737 : vector<8x256xf32>
    %739 = vector.extract_strided_slice %6 {offsets = [0, 62], sizes = [8, 1], strides = [1, 1]} : vector<8x73xf32> to vector<8x1xf32>
    %740 = vector.extract_strided_slice %702 {offsets = [6, 0], sizes = [1, 256], strides = [1, 1]} : vector<8x256xf32> to vector<1x256xf32>
    %741 = vector.broadcast %739 : vector<8x1xf32> to vector<8x256xf32>
    %742 = vector.broadcast %740 : vector<1x256xf32> to vector<8x256xf32>
    %743 = arith.mulf %741, %742 : vector<8x256xf32>
    %744 = arith.addf %738, %743 : vector<8x256xf32>
    %745 = vector.extract_strided_slice %6 {offsets = [0, 63], sizes = [8, 1], strides = [1, 1]} : vector<8x73xf32> to vector<8x1xf32>
    %746 = vector.extract_strided_slice %702 {offsets = [7, 0], sizes = [1, 256], strides = [1, 1]} : vector<8x256xf32> to vector<1x256xf32>
    %747 = vector.broadcast %745 : vector<8x1xf32> to vector<8x256xf32>
    %748 = vector.broadcast %746 : vector<1x256xf32> to vector<8x256xf32>
    %749 = arith.mulf %747, %748 : vector<8x256xf32>
    %750 = arith.addf %744, %749 : vector<8x256xf32>
    %751 = vector.extract_strided_slice %305 {offsets = [0, 145], sizes = [8, 256], strides = [1, 1]} : vector<8x512xf32> to vector<8x256xf32>
    %c15_i32_54 = arith.constant 15 : i32
    %752 = vector.broadcast %c15_i32_54 : i32 to vector<1x256xi32>
    %753 = arith.cmpi slt, %4, %752 : vector<1x256xi32>
    %c240_i32_55 = arith.constant 240 : i32
    %754 = vector.broadcast %c240_i32_55 : i32 to vector<1x256xi32>
    %755 = arith.cmpi slt, %2, %754 : vector<1x256xi32>
    %756 = arith.andi %753, %755 : vector<1x256xi1>
    %cst_56 = arith.constant 0.000000e+00 : f32
    %757 = vector.shape_cast %756 : vector<1x256xi1> to vector<1x256xi1>
    %758 = vector.broadcast %757 : vector<1x256xi1> to vector<8x256xi1>
    %759 = vector.broadcast %cst_56 : f32 to vector<8x256xf32>
    %760 = arith.select %758, %751, %759 : vector<8x256xi1>, vector<8x256xf32>
    %761 = vector.extract_strided_slice %6 {offsets = [0, 64], sizes = [8, 1], strides = [1, 1]} : vector<8x73xf32> to vector<8x1xf32>
    %762 = vector.extract_strided_slice %760 {offsets = [0, 0], sizes = [1, 256], strides = [1, 1]} : vector<8x256xf32> to vector<1x256xf32>
    %763 = vector.broadcast %761 : vector<8x1xf32> to vector<8x256xf32>
    %764 = vector.broadcast %762 : vector<1x256xf32> to vector<8x256xf32>
    %765 = arith.mulf %763, %764 : vector<8x256xf32>
    %766 = arith.addf %750, %765 : vector<8x256xf32>
    %767 = vector.extract_strided_slice %6 {offsets = [0, 65], sizes = [8, 1], strides = [1, 1]} : vector<8x73xf32> to vector<8x1xf32>
    %768 = vector.extract_strided_slice %760 {offsets = [1, 0], sizes = [1, 256], strides = [1, 1]} : vector<8x256xf32> to vector<1x256xf32>
    %769 = vector.broadcast %767 : vector<8x1xf32> to vector<8x256xf32>
    %770 = vector.broadcast %768 : vector<1x256xf32> to vector<8x256xf32>
    %771 = arith.mulf %769, %770 : vector<8x256xf32>
    %772 = arith.addf %766, %771 : vector<8x256xf32>
    %773 = vector.extract_strided_slice %6 {offsets = [0, 66], sizes = [8, 1], strides = [1, 1]} : vector<8x73xf32> to vector<8x1xf32>
    %774 = vector.extract_strided_slice %760 {offsets = [2, 0], sizes = [1, 256], strides = [1, 1]} : vector<8x256xf32> to vector<1x256xf32>
    %775 = vector.broadcast %773 : vector<8x1xf32> to vector<8x256xf32>
    %776 = vector.broadcast %774 : vector<1x256xf32> to vector<8x256xf32>
    %777 = arith.mulf %775, %776 : vector<8x256xf32>
    %778 = arith.addf %772, %777 : vector<8x256xf32>
    %779 = vector.extract_strided_slice %6 {offsets = [0, 67], sizes = [8, 1], strides = [1, 1]} : vector<8x73xf32> to vector<8x1xf32>
    %780 = vector.extract_strided_slice %760 {offsets = [3, 0], sizes = [1, 256], strides = [1, 1]} : vector<8x256xf32> to vector<1x256xf32>
    %781 = vector.broadcast %779 : vector<8x1xf32> to vector<8x256xf32>
    %782 = vector.broadcast %780 : vector<1x256xf32> to vector<8x256xf32>
    %783 = arith.mulf %781, %782 : vector<8x256xf32>
    %784 = arith.addf %778, %783 : vector<8x256xf32>
    %785 = vector.extract_strided_slice %6 {offsets = [0, 68], sizes = [8, 1], strides = [1, 1]} : vector<8x73xf32> to vector<8x1xf32>
    %786 = vector.extract_strided_slice %760 {offsets = [4, 0], sizes = [1, 256], strides = [1, 1]} : vector<8x256xf32> to vector<1x256xf32>
    %787 = vector.broadcast %785 : vector<8x1xf32> to vector<8x256xf32>
    %788 = vector.broadcast %786 : vector<1x256xf32> to vector<8x256xf32>
    %789 = arith.mulf %787, %788 : vector<8x256xf32>
    %790 = arith.addf %784, %789 : vector<8x256xf32>
    %791 = vector.extract_strided_slice %6 {offsets = [0, 69], sizes = [8, 1], strides = [1, 1]} : vector<8x73xf32> to vector<8x1xf32>
    %792 = vector.extract_strided_slice %760 {offsets = [5, 0], sizes = [1, 256], strides = [1, 1]} : vector<8x256xf32> to vector<1x256xf32>
    %793 = vector.broadcast %791 : vector<8x1xf32> to vector<8x256xf32>
    %794 = vector.broadcast %792 : vector<1x256xf32> to vector<8x256xf32>
    %795 = arith.mulf %793, %794 : vector<8x256xf32>
    %796 = arith.addf %790, %795 : vector<8x256xf32>
    %797 = vector.extract_strided_slice %6 {offsets = [0, 70], sizes = [8, 1], strides = [1, 1]} : vector<8x73xf32> to vector<8x1xf32>
    %798 = vector.extract_strided_slice %760 {offsets = [6, 0], sizes = [1, 256], strides = [1, 1]} : vector<8x256xf32> to vector<1x256xf32>
    %799 = vector.broadcast %797 : vector<8x1xf32> to vector<8x256xf32>
    %800 = vector.broadcast %798 : vector<1x256xf32> to vector<8x256xf32>
    %801 = arith.mulf %799, %800 : vector<8x256xf32>
    %802 = arith.addf %796, %801 : vector<8x256xf32>
    %803 = vector.extract_strided_slice %6 {offsets = [0, 71], sizes = [8, 1], strides = [1, 1]} : vector<8x73xf32> to vector<8x1xf32>
    %804 = vector.extract_strided_slice %760 {offsets = [7, 0], sizes = [1, 256], strides = [1, 1]} : vector<8x256xf32> to vector<1x256xf32>
    %805 = vector.broadcast %803 : vector<8x1xf32> to vector<8x256xf32>
    %806 = vector.broadcast %804 : vector<1x256xf32> to vector<8x256xf32>
    %807 = arith.mulf %805, %806 : vector<8x256xf32>
    %808 = arith.addf %802, %807 : vector<8x256xf32>
    %cst_57 = arith.constant 0.000000e+00 : f32
    %809 = vector.broadcast %cst_57 : f32 to vector<8x256xf32>
    %810 = arith.maximumf %808, %809 : vector<8x256xf32>
    %811 = vector.extract_strided_slice %9 {offsets = [0, 8], sizes = [4, 1], strides = [1, 1]} : vector<4x9xf32> to vector<4x1xf32>
    %812 = vector.shape_cast %811 : vector<4x1xf32> to vector<4x1xf32>
    %813 = vector.broadcast %812 : vector<4x1xf32> to vector<4x256xf32>
    %814 = vector.extract_strided_slice %9 {offsets = [0, 0], sizes = [4, 1], strides = [1, 1]} : vector<4x9xf32> to vector<4x1xf32>
    %815 = vector.extract_strided_slice %810 {offsets = [0, 0], sizes = [1, 256], strides = [1, 1]} : vector<8x256xf32> to vector<1x256xf32>
    %816 = vector.broadcast %814 : vector<4x1xf32> to vector<4x256xf32>
    %817 = vector.broadcast %815 : vector<1x256xf32> to vector<4x256xf32>
    %818 = arith.mulf %816, %817 : vector<4x256xf32>
    %819 = arith.addf %813, %818 : vector<4x256xf32>
    %820 = vector.extract_strided_slice %9 {offsets = [0, 1], sizes = [4, 1], strides = [1, 1]} : vector<4x9xf32> to vector<4x1xf32>
    %821 = vector.extract_strided_slice %810 {offsets = [1, 0], sizes = [1, 256], strides = [1, 1]} : vector<8x256xf32> to vector<1x256xf32>
    %822 = vector.broadcast %820 : vector<4x1xf32> to vector<4x256xf32>
    %823 = vector.broadcast %821 : vector<1x256xf32> to vector<4x256xf32>
    %824 = arith.mulf %822, %823 : vector<4x256xf32>
    %825 = arith.addf %819, %824 : vector<4x256xf32>
    %826 = vector.extract_strided_slice %9 {offsets = [0, 2], sizes = [4, 1], strides = [1, 1]} : vector<4x9xf32> to vector<4x1xf32>
    %827 = vector.extract_strided_slice %810 {offsets = [2, 0], sizes = [1, 256], strides = [1, 1]} : vector<8x256xf32> to vector<1x256xf32>
    %828 = vector.broadcast %826 : vector<4x1xf32> to vector<4x256xf32>
    %829 = vector.broadcast %827 : vector<1x256xf32> to vector<4x256xf32>
    %830 = arith.mulf %828, %829 : vector<4x256xf32>
    %831 = arith.addf %825, %830 : vector<4x256xf32>
    %832 = vector.extract_strided_slice %9 {offsets = [0, 3], sizes = [4, 1], strides = [1, 1]} : vector<4x9xf32> to vector<4x1xf32>
    %833 = vector.extract_strided_slice %810 {offsets = [3, 0], sizes = [1, 256], strides = [1, 1]} : vector<8x256xf32> to vector<1x256xf32>
    %834 = vector.broadcast %832 : vector<4x1xf32> to vector<4x256xf32>
    %835 = vector.broadcast %833 : vector<1x256xf32> to vector<4x256xf32>
    %836 = arith.mulf %834, %835 : vector<4x256xf32>
    %837 = arith.addf %831, %836 : vector<4x256xf32>
    %838 = vector.extract_strided_slice %9 {offsets = [0, 4], sizes = [4, 1], strides = [1, 1]} : vector<4x9xf32> to vector<4x1xf32>
    %839 = vector.extract_strided_slice %810 {offsets = [4, 0], sizes = [1, 256], strides = [1, 1]} : vector<8x256xf32> to vector<1x256xf32>
    %840 = vector.broadcast %838 : vector<4x1xf32> to vector<4x256xf32>
    %841 = vector.broadcast %839 : vector<1x256xf32> to vector<4x256xf32>
    %842 = arith.mulf %840, %841 : vector<4x256xf32>
    %843 = arith.addf %837, %842 : vector<4x256xf32>
    %844 = vector.extract_strided_slice %9 {offsets = [0, 5], sizes = [4, 1], strides = [1, 1]} : vector<4x9xf32> to vector<4x1xf32>
    %845 = vector.extract_strided_slice %810 {offsets = [5, 0], sizes = [1, 256], strides = [1, 1]} : vector<8x256xf32> to vector<1x256xf32>
    %846 = vector.broadcast %844 : vector<4x1xf32> to vector<4x256xf32>
    %847 = vector.broadcast %845 : vector<1x256xf32> to vector<4x256xf32>
    %848 = arith.mulf %846, %847 : vector<4x256xf32>
    %849 = arith.addf %843, %848 : vector<4x256xf32>
    %850 = vector.extract_strided_slice %9 {offsets = [0, 6], sizes = [4, 1], strides = [1, 1]} : vector<4x9xf32> to vector<4x1xf32>
    %851 = vector.extract_strided_slice %810 {offsets = [6, 0], sizes = [1, 256], strides = [1, 1]} : vector<8x256xf32> to vector<1x256xf32>
    %852 = vector.broadcast %850 : vector<4x1xf32> to vector<4x256xf32>
    %853 = vector.broadcast %851 : vector<1x256xf32> to vector<4x256xf32>
    %854 = arith.mulf %852, %853 : vector<4x256xf32>
    %855 = arith.addf %849, %854 : vector<4x256xf32>
    %856 = vector.extract_strided_slice %9 {offsets = [0, 7], sizes = [4, 1], strides = [1, 1]} : vector<4x9xf32> to vector<4x1xf32>
    %857 = vector.extract_strided_slice %810 {offsets = [7, 0], sizes = [1, 256], strides = [1, 1]} : vector<8x256xf32> to vector<1x256xf32>
    %858 = vector.broadcast %856 : vector<4x1xf32> to vector<4x256xf32>
    %859 = vector.broadcast %857 : vector<1x256xf32> to vector<4x256xf32>
    %860 = arith.mulf %858, %859 : vector<4x256xf32>
    %861 = arith.addf %855, %860 : vector<4x256xf32>
    %862 = arith.addf %861, %1 : vector<4x256xf32>
    %cst_58 = arith.constant 0.000000e+00 : f32
    %863 = vector.broadcast %cst_58 : f32 to vector<4x256xf32>
    %864 = arith.maximumf %862, %863 : vector<4x256xf32>
    %cst_59 = arith.constant 0.000000e+00 : f32
    %865 = vector.broadcast %cst_59 : f32 to vector<4x128xf32>
    %866 = tpu.concatenate %865, %1, %865 in 1 : vector<4x128xf32>, vector<4x256xf32>, vector<4x128xf32> -> vector<4x512xf32>
    %867 = vector.extract_strided_slice %7 {offsets = [0, 100], sizes = [8, 1], strides = [1, 1]} : vector<8x101xf32> to vector<8x1xf32>
    %868 = vector.shape_cast %867 : vector<8x1xf32> to vector<8x1xf32>
    %869 = vector.broadcast %868 : vector<8x1xf32> to vector<8x256xf32>
    %870 = vector.extract_strided_slice %866 {offsets = [0, 94], sizes = [4, 256], strides = [1, 1]} : vector<4x512xf32> to vector<4x256xf32>
    %c2_i32 = arith.constant 2 : i32
    %871 = vector.broadcast %c2_i32 : i32 to vector<1x256xi32>
    %872 = arith.cmpi sge, %4, %871 : vector<1x256xi32>
    %c32_i32 = arith.constant 32 : i32
    %873 = vector.broadcast %c32_i32 : i32 to vector<1x256xi32>
    %874 = arith.cmpi sge, %2, %873 : vector<1x256xi32>
    %875 = arith.andi %872, %874 : vector<1x256xi1>
    %cst_60 = arith.constant 0.000000e+00 : f32
    %876 = vector.shape_cast %875 : vector<1x256xi1> to vector<1x256xi1>
    %877 = vector.broadcast %876 : vector<1x256xi1> to vector<4x256xi1>
    %878 = vector.broadcast %cst_60 : f32 to vector<4x256xf32>
    %879 = arith.select %877, %870, %878 : vector<4x256xi1>, vector<4x256xf32>
    %880 = vector.extract_strided_slice %7 {offsets = [0, 0], sizes = [8, 1], strides = [1, 1]} : vector<8x101xf32> to vector<8x1xf32>
    %881 = vector.extract_strided_slice %879 {offsets = [0, 0], sizes = [1, 256], strides = [1, 1]} : vector<4x256xf32> to vector<1x256xf32>
    %882 = vector.broadcast %880 : vector<8x1xf32> to vector<8x256xf32>
    %883 = vector.broadcast %881 : vector<1x256xf32> to vector<8x256xf32>
    %884 = arith.mulf %882, %883 : vector<8x256xf32>
    %885 = arith.addf %869, %884 : vector<8x256xf32>
    %886 = vector.extract_strided_slice %7 {offsets = [0, 1], sizes = [8, 1], strides = [1, 1]} : vector<8x101xf32> to vector<8x1xf32>
    %887 = vector.extract_strided_slice %879 {offsets = [1, 0], sizes = [1, 256], strides = [1, 1]} : vector<4x256xf32> to vector<1x256xf32>
    %888 = vector.broadcast %886 : vector<8x1xf32> to vector<8x256xf32>
    %889 = vector.broadcast %887 : vector<1x256xf32> to vector<8x256xf32>
    %890 = arith.mulf %888, %889 : vector<8x256xf32>
    %891 = arith.addf %885, %890 : vector<8x256xf32>
    %892 = vector.extract_strided_slice %7 {offsets = [0, 2], sizes = [8, 1], strides = [1, 1]} : vector<8x101xf32> to vector<8x1xf32>
    %893 = vector.extract_strided_slice %879 {offsets = [2, 0], sizes = [1, 256], strides = [1, 1]} : vector<4x256xf32> to vector<1x256xf32>
    %894 = vector.broadcast %892 : vector<8x1xf32> to vector<8x256xf32>
    %895 = vector.broadcast %893 : vector<1x256xf32> to vector<8x256xf32>
    %896 = arith.mulf %894, %895 : vector<8x256xf32>
    %897 = arith.addf %891, %896 : vector<8x256xf32>
    %898 = vector.extract_strided_slice %7 {offsets = [0, 3], sizes = [8, 1], strides = [1, 1]} : vector<8x101xf32> to vector<8x1xf32>
    %899 = vector.extract_strided_slice %879 {offsets = [3, 0], sizes = [1, 256], strides = [1, 1]} : vector<4x256xf32> to vector<1x256xf32>
    %900 = vector.broadcast %898 : vector<8x1xf32> to vector<8x256xf32>
    %901 = vector.broadcast %899 : vector<1x256xf32> to vector<8x256xf32>
    %902 = arith.mulf %900, %901 : vector<8x256xf32>
    %903 = arith.addf %897, %902 : vector<8x256xf32>
    %904 = vector.extract_strided_slice %866 {offsets = [0, 95], sizes = [4, 256], strides = [1, 1]} : vector<4x512xf32> to vector<4x256xf32>
    %c1_i32_61 = arith.constant 1 : i32
    %905 = vector.broadcast %c1_i32_61 : i32 to vector<1x256xi32>
    %906 = arith.cmpi sge, %4, %905 : vector<1x256xi32>
    %c32_i32_62 = arith.constant 32 : i32
    %907 = vector.broadcast %c32_i32_62 : i32 to vector<1x256xi32>
    %908 = arith.cmpi sge, %2, %907 : vector<1x256xi32>
    %909 = arith.andi %906, %908 : vector<1x256xi1>
    %cst_63 = arith.constant 0.000000e+00 : f32
    %910 = vector.shape_cast %909 : vector<1x256xi1> to vector<1x256xi1>
    %911 = vector.broadcast %910 : vector<1x256xi1> to vector<4x256xi1>
    %912 = vector.broadcast %cst_63 : f32 to vector<4x256xf32>
    %913 = arith.select %911, %904, %912 : vector<4x256xi1>, vector<4x256xf32>
    %914 = vector.extract_strided_slice %7 {offsets = [0, 4], sizes = [8, 1], strides = [1, 1]} : vector<8x101xf32> to vector<8x1xf32>
    %915 = vector.extract_strided_slice %913 {offsets = [0, 0], sizes = [1, 256], strides = [1, 1]} : vector<4x256xf32> to vector<1x256xf32>
    %916 = vector.broadcast %914 : vector<8x1xf32> to vector<8x256xf32>
    %917 = vector.broadcast %915 : vector<1x256xf32> to vector<8x256xf32>
    %918 = arith.mulf %916, %917 : vector<8x256xf32>
    %919 = arith.addf %903, %918 : vector<8x256xf32>
    %920 = vector.extract_strided_slice %7 {offsets = [0, 5], sizes = [8, 1], strides = [1, 1]} : vector<8x101xf32> to vector<8x1xf32>
    %921 = vector.extract_strided_slice %913 {offsets = [1, 0], sizes = [1, 256], strides = [1, 1]} : vector<4x256xf32> to vector<1x256xf32>
    %922 = vector.broadcast %920 : vector<8x1xf32> to vector<8x256xf32>
    %923 = vector.broadcast %921 : vector<1x256xf32> to vector<8x256xf32>
    %924 = arith.mulf %922, %923 : vector<8x256xf32>
    %925 = arith.addf %919, %924 : vector<8x256xf32>
    %926 = vector.extract_strided_slice %7 {offsets = [0, 6], sizes = [8, 1], strides = [1, 1]} : vector<8x101xf32> to vector<8x1xf32>
    %927 = vector.extract_strided_slice %913 {offsets = [2, 0], sizes = [1, 256], strides = [1, 1]} : vector<4x256xf32> to vector<1x256xf32>
    %928 = vector.broadcast %926 : vector<8x1xf32> to vector<8x256xf32>
    %929 = vector.broadcast %927 : vector<1x256xf32> to vector<8x256xf32>
    %930 = arith.mulf %928, %929 : vector<8x256xf32>
    %931 = arith.addf %925, %930 : vector<8x256xf32>
    %932 = vector.extract_strided_slice %7 {offsets = [0, 7], sizes = [8, 1], strides = [1, 1]} : vector<8x101xf32> to vector<8x1xf32>
    %933 = vector.extract_strided_slice %913 {offsets = [3, 0], sizes = [1, 256], strides = [1, 1]} : vector<4x256xf32> to vector<1x256xf32>
    %934 = vector.broadcast %932 : vector<8x1xf32> to vector<8x256xf32>
    %935 = vector.broadcast %933 : vector<1x256xf32> to vector<8x256xf32>
    %936 = arith.mulf %934, %935 : vector<8x256xf32>
    %937 = arith.addf %931, %936 : vector<8x256xf32>
    %938 = vector.extract_strided_slice %866 {offsets = [0, 96], sizes = [4, 256], strides = [1, 1]} : vector<4x512xf32> to vector<4x256xf32>
    %c32_i32_64 = arith.constant 32 : i32
    %939 = vector.broadcast %c32_i32_64 : i32 to vector<1x256xi32>
    %940 = arith.cmpi sge, %2, %939 : vector<1x256xi32>
    %cst_65 = arith.constant 0.000000e+00 : f32
    %941 = vector.shape_cast %940 : vector<1x256xi1> to vector<1x256xi1>
    %942 = vector.broadcast %941 : vector<1x256xi1> to vector<4x256xi1>
    %943 = vector.broadcast %cst_65 : f32 to vector<4x256xf32>
    %944 = arith.select %942, %938, %943 : vector<4x256xi1>, vector<4x256xf32>
    %945 = vector.extract_strided_slice %7 {offsets = [0, 8], sizes = [8, 1], strides = [1, 1]} : vector<8x101xf32> to vector<8x1xf32>
    %946 = vector.extract_strided_slice %944 {offsets = [0, 0], sizes = [1, 256], strides = [1, 1]} : vector<4x256xf32> to vector<1x256xf32>
    %947 = vector.broadcast %945 : vector<8x1xf32> to vector<8x256xf32>
    %948 = vector.broadcast %946 : vector<1x256xf32> to vector<8x256xf32>
    %949 = arith.mulf %947, %948 : vector<8x256xf32>
    %950 = arith.addf %937, %949 : vector<8x256xf32>
    %951 = vector.extract_strided_slice %7 {offsets = [0, 9], sizes = [8, 1], strides = [1, 1]} : vector<8x101xf32> to vector<8x1xf32>
    %952 = vector.extract_strided_slice %944 {offsets = [1, 0], sizes = [1, 256], strides = [1, 1]} : vector<4x256xf32> to vector<1x256xf32>
    %953 = vector.broadcast %951 : vector<8x1xf32> to vector<8x256xf32>
    %954 = vector.broadcast %952 : vector<1x256xf32> to vector<8x256xf32>
    %955 = arith.mulf %953, %954 : vector<8x256xf32>
    %956 = arith.addf %950, %955 : vector<8x256xf32>
    %957 = vector.extract_strided_slice %7 {offsets = [0, 10], sizes = [8, 1], strides = [1, 1]} : vector<8x101xf32> to vector<8x1xf32>
    %958 = vector.extract_strided_slice %944 {offsets = [2, 0], sizes = [1, 256], strides = [1, 1]} : vector<4x256xf32> to vector<1x256xf32>
    %959 = vector.broadcast %957 : vector<8x1xf32> to vector<8x256xf32>
    %960 = vector.broadcast %958 : vector<1x256xf32> to vector<8x256xf32>
    %961 = arith.mulf %959, %960 : vector<8x256xf32>
    %962 = arith.addf %956, %961 : vector<8x256xf32>
    %963 = vector.extract_strided_slice %7 {offsets = [0, 11], sizes = [8, 1], strides = [1, 1]} : vector<8x101xf32> to vector<8x1xf32>
    %964 = vector.extract_strided_slice %944 {offsets = [3, 0], sizes = [1, 256], strides = [1, 1]} : vector<4x256xf32> to vector<1x256xf32>
    %965 = vector.broadcast %963 : vector<8x1xf32> to vector<8x256xf32>
    %966 = vector.broadcast %964 : vector<1x256xf32> to vector<8x256xf32>
    %967 = arith.mulf %965, %966 : vector<8x256xf32>
    %968 = arith.addf %962, %967 : vector<8x256xf32>
    %969 = vector.extract_strided_slice %866 {offsets = [0, 97], sizes = [4, 256], strides = [1, 1]} : vector<4x512xf32> to vector<4x256xf32>
    %c15_i32_66 = arith.constant 15 : i32
    %970 = vector.broadcast %c15_i32_66 : i32 to vector<1x256xi32>
    %971 = arith.cmpi slt, %4, %970 : vector<1x256xi32>
    %c32_i32_67 = arith.constant 32 : i32
    %972 = vector.broadcast %c32_i32_67 : i32 to vector<1x256xi32>
    %973 = arith.cmpi sge, %2, %972 : vector<1x256xi32>
    %974 = arith.andi %971, %973 : vector<1x256xi1>
    %cst_68 = arith.constant 0.000000e+00 : f32
    %975 = vector.shape_cast %974 : vector<1x256xi1> to vector<1x256xi1>
    %976 = vector.broadcast %975 : vector<1x256xi1> to vector<4x256xi1>
    %977 = vector.broadcast %cst_68 : f32 to vector<4x256xf32>
    %978 = arith.select %976, %969, %977 : vector<4x256xi1>, vector<4x256xf32>
    %979 = vector.extract_strided_slice %7 {offsets = [0, 12], sizes = [8, 1], strides = [1, 1]} : vector<8x101xf32> to vector<8x1xf32>
    %980 = vector.extract_strided_slice %978 {offsets = [0, 0], sizes = [1, 256], strides = [1, 1]} : vector<4x256xf32> to vector<1x256xf32>
    %981 = vector.broadcast %979 : vector<8x1xf32> to vector<8x256xf32>
    %982 = vector.broadcast %980 : vector<1x256xf32> to vector<8x256xf32>
    %983 = arith.mulf %981, %982 : vector<8x256xf32>
    %984 = arith.addf %968, %983 : vector<8x256xf32>
    %985 = vector.extract_strided_slice %7 {offsets = [0, 13], sizes = [8, 1], strides = [1, 1]} : vector<8x101xf32> to vector<8x1xf32>
    %986 = vector.extract_strided_slice %978 {offsets = [1, 0], sizes = [1, 256], strides = [1, 1]} : vector<4x256xf32> to vector<1x256xf32>
    %987 = vector.broadcast %985 : vector<8x1xf32> to vector<8x256xf32>
    %988 = vector.broadcast %986 : vector<1x256xf32> to vector<8x256xf32>
    %989 = arith.mulf %987, %988 : vector<8x256xf32>
    %990 = arith.addf %984, %989 : vector<8x256xf32>
    %991 = vector.extract_strided_slice %7 {offsets = [0, 14], sizes = [8, 1], strides = [1, 1]} : vector<8x101xf32> to vector<8x1xf32>
    %992 = vector.extract_strided_slice %978 {offsets = [2, 0], sizes = [1, 256], strides = [1, 1]} : vector<4x256xf32> to vector<1x256xf32>
    %993 = vector.broadcast %991 : vector<8x1xf32> to vector<8x256xf32>
    %994 = vector.broadcast %992 : vector<1x256xf32> to vector<8x256xf32>
    %995 = arith.mulf %993, %994 : vector<8x256xf32>
    %996 = arith.addf %990, %995 : vector<8x256xf32>
    %997 = vector.extract_strided_slice %7 {offsets = [0, 15], sizes = [8, 1], strides = [1, 1]} : vector<8x101xf32> to vector<8x1xf32>
    %998 = vector.extract_strided_slice %978 {offsets = [3, 0], sizes = [1, 256], strides = [1, 1]} : vector<4x256xf32> to vector<1x256xf32>
    %999 = vector.broadcast %997 : vector<8x1xf32> to vector<8x256xf32>
    %1000 = vector.broadcast %998 : vector<1x256xf32> to vector<8x256xf32>
    %1001 = arith.mulf %999, %1000 : vector<8x256xf32>
    %1002 = arith.addf %996, %1001 : vector<8x256xf32>
    %1003 = vector.extract_strided_slice %866 {offsets = [0, 98], sizes = [4, 256], strides = [1, 1]} : vector<4x512xf32> to vector<4x256xf32>
    %c14_i32 = arith.constant 14 : i32
    %1004 = vector.broadcast %c14_i32 : i32 to vector<1x256xi32>
    %1005 = arith.cmpi slt, %4, %1004 : vector<1x256xi32>
    %c32_i32_69 = arith.constant 32 : i32
    %1006 = vector.broadcast %c32_i32_69 : i32 to vector<1x256xi32>
    %1007 = arith.cmpi sge, %2, %1006 : vector<1x256xi32>
    %1008 = arith.andi %1005, %1007 : vector<1x256xi1>
    %cst_70 = arith.constant 0.000000e+00 : f32
    %1009 = vector.shape_cast %1008 : vector<1x256xi1> to vector<1x256xi1>
    %1010 = vector.broadcast %1009 : vector<1x256xi1> to vector<4x256xi1>
    %1011 = vector.broadcast %cst_70 : f32 to vector<4x256xf32>
    %1012 = arith.select %1010, %1003, %1011 : vector<4x256xi1>, vector<4x256xf32>
    %1013 = vector.extract_strided_slice %7 {offsets = [0, 16], sizes = [8, 1], strides = [1, 1]} : vector<8x101xf32> to vector<8x1xf32>
    %1014 = vector.extract_strided_slice %1012 {offsets = [0, 0], sizes = [1, 256], strides = [1, 1]} : vector<4x256xf32> to vector<1x256xf32>
    %1015 = vector.broadcast %1013 : vector<8x1xf32> to vector<8x256xf32>
    %1016 = vector.broadcast %1014 : vector<1x256xf32> to vector<8x256xf32>
    %1017 = arith.mulf %1015, %1016 : vector<8x256xf32>
    %1018 = arith.addf %1002, %1017 : vector<8x256xf32>
    %1019 = vector.extract_strided_slice %7 {offsets = [0, 17], sizes = [8, 1], strides = [1, 1]} : vector<8x101xf32> to vector<8x1xf32>
    %1020 = vector.extract_strided_slice %1012 {offsets = [1, 0], sizes = [1, 256], strides = [1, 1]} : vector<4x256xf32> to vector<1x256xf32>
    %1021 = vector.broadcast %1019 : vector<8x1xf32> to vector<8x256xf32>
    %1022 = vector.broadcast %1020 : vector<1x256xf32> to vector<8x256xf32>
    %1023 = arith.mulf %1021, %1022 : vector<8x256xf32>
    %1024 = arith.addf %1018, %1023 : vector<8x256xf32>
    %1025 = vector.extract_strided_slice %7 {offsets = [0, 18], sizes = [8, 1], strides = [1, 1]} : vector<8x101xf32> to vector<8x1xf32>
    %1026 = vector.extract_strided_slice %1012 {offsets = [2, 0], sizes = [1, 256], strides = [1, 1]} : vector<4x256xf32> to vector<1x256xf32>
    %1027 = vector.broadcast %1025 : vector<8x1xf32> to vector<8x256xf32>
    %1028 = vector.broadcast %1026 : vector<1x256xf32> to vector<8x256xf32>
    %1029 = arith.mulf %1027, %1028 : vector<8x256xf32>
    %1030 = arith.addf %1024, %1029 : vector<8x256xf32>
    %1031 = vector.extract_strided_slice %7 {offsets = [0, 19], sizes = [8, 1], strides = [1, 1]} : vector<8x101xf32> to vector<8x1xf32>
    %1032 = vector.extract_strided_slice %1012 {offsets = [3, 0], sizes = [1, 256], strides = [1, 1]} : vector<4x256xf32> to vector<1x256xf32>
    %1033 = vector.broadcast %1031 : vector<8x1xf32> to vector<8x256xf32>
    %1034 = vector.broadcast %1032 : vector<1x256xf32> to vector<8x256xf32>
    %1035 = arith.mulf %1033, %1034 : vector<8x256xf32>
    %1036 = arith.addf %1030, %1035 : vector<8x256xf32>
    %1037 = vector.extract_strided_slice %866 {offsets = [0, 110], sizes = [4, 256], strides = [1, 1]} : vector<4x512xf32> to vector<4x256xf32>
    %c2_i32_71 = arith.constant 2 : i32
    %1038 = vector.broadcast %c2_i32_71 : i32 to vector<1x256xi32>
    %1039 = arith.cmpi sge, %4, %1038 : vector<1x256xi32>
    %c16_i32_72 = arith.constant 16 : i32
    %1040 = vector.broadcast %c16_i32_72 : i32 to vector<1x256xi32>
    %1041 = arith.cmpi sge, %2, %1040 : vector<1x256xi32>
    %1042 = arith.andi %1039, %1041 : vector<1x256xi1>
    %cst_73 = arith.constant 0.000000e+00 : f32
    %1043 = vector.shape_cast %1042 : vector<1x256xi1> to vector<1x256xi1>
    %1044 = vector.broadcast %1043 : vector<1x256xi1> to vector<4x256xi1>
    %1045 = vector.broadcast %cst_73 : f32 to vector<4x256xf32>
    %1046 = arith.select %1044, %1037, %1045 : vector<4x256xi1>, vector<4x256xf32>
    %1047 = vector.extract_strided_slice %7 {offsets = [0, 20], sizes = [8, 1], strides = [1, 1]} : vector<8x101xf32> to vector<8x1xf32>
    %1048 = vector.extract_strided_slice %1046 {offsets = [0, 0], sizes = [1, 256], strides = [1, 1]} : vector<4x256xf32> to vector<1x256xf32>
    %1049 = vector.broadcast %1047 : vector<8x1xf32> to vector<8x256xf32>
    %1050 = vector.broadcast %1048 : vector<1x256xf32> to vector<8x256xf32>
    %1051 = arith.mulf %1049, %1050 : vector<8x256xf32>
    %1052 = arith.addf %1036, %1051 : vector<8x256xf32>
    %1053 = vector.extract_strided_slice %7 {offsets = [0, 21], sizes = [8, 1], strides = [1, 1]} : vector<8x101xf32> to vector<8x1xf32>
    %1054 = vector.extract_strided_slice %1046 {offsets = [1, 0], sizes = [1, 256], strides = [1, 1]} : vector<4x256xf32> to vector<1x256xf32>
    %1055 = vector.broadcast %1053 : vector<8x1xf32> to vector<8x256xf32>
    %1056 = vector.broadcast %1054 : vector<1x256xf32> to vector<8x256xf32>
    %1057 = arith.mulf %1055, %1056 : vector<8x256xf32>
    %1058 = arith.addf %1052, %1057 : vector<8x256xf32>
    %1059 = vector.extract_strided_slice %7 {offsets = [0, 22], sizes = [8, 1], strides = [1, 1]} : vector<8x101xf32> to vector<8x1xf32>
    %1060 = vector.extract_strided_slice %1046 {offsets = [2, 0], sizes = [1, 256], strides = [1, 1]} : vector<4x256xf32> to vector<1x256xf32>
    %1061 = vector.broadcast %1059 : vector<8x1xf32> to vector<8x256xf32>
    %1062 = vector.broadcast %1060 : vector<1x256xf32> to vector<8x256xf32>
    %1063 = arith.mulf %1061, %1062 : vector<8x256xf32>
    %1064 = arith.addf %1058, %1063 : vector<8x256xf32>
    %1065 = vector.extract_strided_slice %7 {offsets = [0, 23], sizes = [8, 1], strides = [1, 1]} : vector<8x101xf32> to vector<8x1xf32>
    %1066 = vector.extract_strided_slice %1046 {offsets = [3, 0], sizes = [1, 256], strides = [1, 1]} : vector<4x256xf32> to vector<1x256xf32>
    %1067 = vector.broadcast %1065 : vector<8x1xf32> to vector<8x256xf32>
    %1068 = vector.broadcast %1066 : vector<1x256xf32> to vector<8x256xf32>
    %1069 = arith.mulf %1067, %1068 : vector<8x256xf32>
    %1070 = arith.addf %1064, %1069 : vector<8x256xf32>
    %1071 = vector.extract_strided_slice %866 {offsets = [0, 111], sizes = [4, 256], strides = [1, 1]} : vector<4x512xf32> to vector<4x256xf32>
    %c1_i32_74 = arith.constant 1 : i32
    %1072 = vector.broadcast %c1_i32_74 : i32 to vector<1x256xi32>
    %1073 = arith.cmpi sge, %4, %1072 : vector<1x256xi32>
    %c16_i32_75 = arith.constant 16 : i32
    %1074 = vector.broadcast %c16_i32_75 : i32 to vector<1x256xi32>
    %1075 = arith.cmpi sge, %2, %1074 : vector<1x256xi32>
    %1076 = arith.andi %1073, %1075 : vector<1x256xi1>
    %cst_76 = arith.constant 0.000000e+00 : f32
    %1077 = vector.shape_cast %1076 : vector<1x256xi1> to vector<1x256xi1>
    %1078 = vector.broadcast %1077 : vector<1x256xi1> to vector<4x256xi1>
    %1079 = vector.broadcast %cst_76 : f32 to vector<4x256xf32>
    %1080 = arith.select %1078, %1071, %1079 : vector<4x256xi1>, vector<4x256xf32>
    %1081 = vector.extract_strided_slice %7 {offsets = [0, 24], sizes = [8, 1], strides = [1, 1]} : vector<8x101xf32> to vector<8x1xf32>
    %1082 = vector.extract_strided_slice %1080 {offsets = [0, 0], sizes = [1, 256], strides = [1, 1]} : vector<4x256xf32> to vector<1x256xf32>
    %1083 = vector.broadcast %1081 : vector<8x1xf32> to vector<8x256xf32>
    %1084 = vector.broadcast %1082 : vector<1x256xf32> to vector<8x256xf32>
    %1085 = arith.mulf %1083, %1084 : vector<8x256xf32>
    %1086 = arith.addf %1070, %1085 : vector<8x256xf32>
    %1087 = vector.extract_strided_slice %7 {offsets = [0, 25], sizes = [8, 1], strides = [1, 1]} : vector<8x101xf32> to vector<8x1xf32>
    %1088 = vector.extract_strided_slice %1080 {offsets = [1, 0], sizes = [1, 256], strides = [1, 1]} : vector<4x256xf32> to vector<1x256xf32>
    %1089 = vector.broadcast %1087 : vector<8x1xf32> to vector<8x256xf32>
    %1090 = vector.broadcast %1088 : vector<1x256xf32> to vector<8x256xf32>
    %1091 = arith.mulf %1089, %1090 : vector<8x256xf32>
    %1092 = arith.addf %1086, %1091 : vector<8x256xf32>
    %1093 = vector.extract_strided_slice %7 {offsets = [0, 26], sizes = [8, 1], strides = [1, 1]} : vector<8x101xf32> to vector<8x1xf32>
    %1094 = vector.extract_strided_slice %1080 {offsets = [2, 0], sizes = [1, 256], strides = [1, 1]} : vector<4x256xf32> to vector<1x256xf32>
    %1095 = vector.broadcast %1093 : vector<8x1xf32> to vector<8x256xf32>
    %1096 = vector.broadcast %1094 : vector<1x256xf32> to vector<8x256xf32>
    %1097 = arith.mulf %1095, %1096 : vector<8x256xf32>
    %1098 = arith.addf %1092, %1097 : vector<8x256xf32>
    %1099 = vector.extract_strided_slice %7 {offsets = [0, 27], sizes = [8, 1], strides = [1, 1]} : vector<8x101xf32> to vector<8x1xf32>
    %1100 = vector.extract_strided_slice %1080 {offsets = [3, 0], sizes = [1, 256], strides = [1, 1]} : vector<4x256xf32> to vector<1x256xf32>
    %1101 = vector.broadcast %1099 : vector<8x1xf32> to vector<8x256xf32>
    %1102 = vector.broadcast %1100 : vector<1x256xf32> to vector<8x256xf32>
    %1103 = arith.mulf %1101, %1102 : vector<8x256xf32>
    %1104 = arith.addf %1098, %1103 : vector<8x256xf32>
    %1105 = vector.extract_strided_slice %866 {offsets = [0, 112], sizes = [4, 256], strides = [1, 1]} : vector<4x512xf32> to vector<4x256xf32>
    %c16_i32_77 = arith.constant 16 : i32
    %1106 = vector.broadcast %c16_i32_77 : i32 to vector<1x256xi32>
    %1107 = arith.cmpi sge, %2, %1106 : vector<1x256xi32>
    %cst_78 = arith.constant 0.000000e+00 : f32
    %1108 = vector.shape_cast %1107 : vector<1x256xi1> to vector<1x256xi1>
    %1109 = vector.broadcast %1108 : vector<1x256xi1> to vector<4x256xi1>
    %1110 = vector.broadcast %cst_78 : f32 to vector<4x256xf32>
    %1111 = arith.select %1109, %1105, %1110 : vector<4x256xi1>, vector<4x256xf32>
    %1112 = vector.extract_strided_slice %7 {offsets = [0, 28], sizes = [8, 1], strides = [1, 1]} : vector<8x101xf32> to vector<8x1xf32>
    %1113 = vector.extract_strided_slice %1111 {offsets = [0, 0], sizes = [1, 256], strides = [1, 1]} : vector<4x256xf32> to vector<1x256xf32>
    %1114 = vector.broadcast %1112 : vector<8x1xf32> to vector<8x256xf32>
    %1115 = vector.broadcast %1113 : vector<1x256xf32> to vector<8x256xf32>
    %1116 = arith.mulf %1114, %1115 : vector<8x256xf32>
    %1117 = arith.addf %1104, %1116 : vector<8x256xf32>
    %1118 = vector.extract_strided_slice %7 {offsets = [0, 29], sizes = [8, 1], strides = [1, 1]} : vector<8x101xf32> to vector<8x1xf32>
    %1119 = vector.extract_strided_slice %1111 {offsets = [1, 0], sizes = [1, 256], strides = [1, 1]} : vector<4x256xf32> to vector<1x256xf32>
    %1120 = vector.broadcast %1118 : vector<8x1xf32> to vector<8x256xf32>
    %1121 = vector.broadcast %1119 : vector<1x256xf32> to vector<8x256xf32>
    %1122 = arith.mulf %1120, %1121 : vector<8x256xf32>
    %1123 = arith.addf %1117, %1122 : vector<8x256xf32>
    %1124 = vector.extract_strided_slice %7 {offsets = [0, 30], sizes = [8, 1], strides = [1, 1]} : vector<8x101xf32> to vector<8x1xf32>
    %1125 = vector.extract_strided_slice %1111 {offsets = [2, 0], sizes = [1, 256], strides = [1, 1]} : vector<4x256xf32> to vector<1x256xf32>
    %1126 = vector.broadcast %1124 : vector<8x1xf32> to vector<8x256xf32>
    %1127 = vector.broadcast %1125 : vector<1x256xf32> to vector<8x256xf32>
    %1128 = arith.mulf %1126, %1127 : vector<8x256xf32>
    %1129 = arith.addf %1123, %1128 : vector<8x256xf32>
    %1130 = vector.extract_strided_slice %7 {offsets = [0, 31], sizes = [8, 1], strides = [1, 1]} : vector<8x101xf32> to vector<8x1xf32>
    %1131 = vector.extract_strided_slice %1111 {offsets = [3, 0], sizes = [1, 256], strides = [1, 1]} : vector<4x256xf32> to vector<1x256xf32>
    %1132 = vector.broadcast %1130 : vector<8x1xf32> to vector<8x256xf32>
    %1133 = vector.broadcast %1131 : vector<1x256xf32> to vector<8x256xf32>
    %1134 = arith.mulf %1132, %1133 : vector<8x256xf32>
    %1135 = arith.addf %1129, %1134 : vector<8x256xf32>
    %1136 = vector.extract_strided_slice %866 {offsets = [0, 113], sizes = [4, 256], strides = [1, 1]} : vector<4x512xf32> to vector<4x256xf32>
    %c15_i32_79 = arith.constant 15 : i32
    %1137 = vector.broadcast %c15_i32_79 : i32 to vector<1x256xi32>
    %1138 = arith.cmpi slt, %4, %1137 : vector<1x256xi32>
    %c16_i32_80 = arith.constant 16 : i32
    %1139 = vector.broadcast %c16_i32_80 : i32 to vector<1x256xi32>
    %1140 = arith.cmpi sge, %2, %1139 : vector<1x256xi32>
    %1141 = arith.andi %1138, %1140 : vector<1x256xi1>
    %cst_81 = arith.constant 0.000000e+00 : f32
    %1142 = vector.shape_cast %1141 : vector<1x256xi1> to vector<1x256xi1>
    %1143 = vector.broadcast %1142 : vector<1x256xi1> to vector<4x256xi1>
    %1144 = vector.broadcast %cst_81 : f32 to vector<4x256xf32>
    %1145 = arith.select %1143, %1136, %1144 : vector<4x256xi1>, vector<4x256xf32>
    %1146 = vector.extract_strided_slice %7 {offsets = [0, 32], sizes = [8, 1], strides = [1, 1]} : vector<8x101xf32> to vector<8x1xf32>
    %1147 = vector.extract_strided_slice %1145 {offsets = [0, 0], sizes = [1, 256], strides = [1, 1]} : vector<4x256xf32> to vector<1x256xf32>
    %1148 = vector.broadcast %1146 : vector<8x1xf32> to vector<8x256xf32>
    %1149 = vector.broadcast %1147 : vector<1x256xf32> to vector<8x256xf32>
    %1150 = arith.mulf %1148, %1149 : vector<8x256xf32>
    %1151 = arith.addf %1135, %1150 : vector<8x256xf32>
    %1152 = vector.extract_strided_slice %7 {offsets = [0, 33], sizes = [8, 1], strides = [1, 1]} : vector<8x101xf32> to vector<8x1xf32>
    %1153 = vector.extract_strided_slice %1145 {offsets = [1, 0], sizes = [1, 256], strides = [1, 1]} : vector<4x256xf32> to vector<1x256xf32>
    %1154 = vector.broadcast %1152 : vector<8x1xf32> to vector<8x256xf32>
    %1155 = vector.broadcast %1153 : vector<1x256xf32> to vector<8x256xf32>
    %1156 = arith.mulf %1154, %1155 : vector<8x256xf32>
    %1157 = arith.addf %1151, %1156 : vector<8x256xf32>
    %1158 = vector.extract_strided_slice %7 {offsets = [0, 34], sizes = [8, 1], strides = [1, 1]} : vector<8x101xf32> to vector<8x1xf32>
    %1159 = vector.extract_strided_slice %1145 {offsets = [2, 0], sizes = [1, 256], strides = [1, 1]} : vector<4x256xf32> to vector<1x256xf32>
    %1160 = vector.broadcast %1158 : vector<8x1xf32> to vector<8x256xf32>
    %1161 = vector.broadcast %1159 : vector<1x256xf32> to vector<8x256xf32>
    %1162 = arith.mulf %1160, %1161 : vector<8x256xf32>
    %1163 = arith.addf %1157, %1162 : vector<8x256xf32>
    %1164 = vector.extract_strided_slice %7 {offsets = [0, 35], sizes = [8, 1], strides = [1, 1]} : vector<8x101xf32> to vector<8x1xf32>
    %1165 = vector.extract_strided_slice %1145 {offsets = [3, 0], sizes = [1, 256], strides = [1, 1]} : vector<4x256xf32> to vector<1x256xf32>
    %1166 = vector.broadcast %1164 : vector<8x1xf32> to vector<8x256xf32>
    %1167 = vector.broadcast %1165 : vector<1x256xf32> to vector<8x256xf32>
    %1168 = arith.mulf %1166, %1167 : vector<8x256xf32>
    %1169 = arith.addf %1163, %1168 : vector<8x256xf32>
    %1170 = vector.extract_strided_slice %866 {offsets = [0, 114], sizes = [4, 256], strides = [1, 1]} : vector<4x512xf32> to vector<4x256xf32>
    %c14_i32_82 = arith.constant 14 : i32
    %1171 = vector.broadcast %c14_i32_82 : i32 to vector<1x256xi32>
    %1172 = arith.cmpi slt, %4, %1171 : vector<1x256xi32>
    %c16_i32_83 = arith.constant 16 : i32
    %1173 = vector.broadcast %c16_i32_83 : i32 to vector<1x256xi32>
    %1174 = arith.cmpi sge, %2, %1173 : vector<1x256xi32>
    %1175 = arith.andi %1172, %1174 : vector<1x256xi1>
    %cst_84 = arith.constant 0.000000e+00 : f32
    %1176 = vector.shape_cast %1175 : vector<1x256xi1> to vector<1x256xi1>
    %1177 = vector.broadcast %1176 : vector<1x256xi1> to vector<4x256xi1>
    %1178 = vector.broadcast %cst_84 : f32 to vector<4x256xf32>
    %1179 = arith.select %1177, %1170, %1178 : vector<4x256xi1>, vector<4x256xf32>
    %1180 = vector.extract_strided_slice %7 {offsets = [0, 36], sizes = [8, 1], strides = [1, 1]} : vector<8x101xf32> to vector<8x1xf32>
    %1181 = vector.extract_strided_slice %1179 {offsets = [0, 0], sizes = [1, 256], strides = [1, 1]} : vector<4x256xf32> to vector<1x256xf32>
    %1182 = vector.broadcast %1180 : vector<8x1xf32> to vector<8x256xf32>
    %1183 = vector.broadcast %1181 : vector<1x256xf32> to vector<8x256xf32>
    %1184 = arith.mulf %1182, %1183 : vector<8x256xf32>
    %1185 = arith.addf %1169, %1184 : vector<8x256xf32>
    %1186 = vector.extract_strided_slice %7 {offsets = [0, 37], sizes = [8, 1], strides = [1, 1]} : vector<8x101xf32> to vector<8x1xf32>
    %1187 = vector.extract_strided_slice %1179 {offsets = [1, 0], sizes = [1, 256], strides = [1, 1]} : vector<4x256xf32> to vector<1x256xf32>
    %1188 = vector.broadcast %1186 : vector<8x1xf32> to vector<8x256xf32>
    %1189 = vector.broadcast %1187 : vector<1x256xf32> to vector<8x256xf32>
    %1190 = arith.mulf %1188, %1189 : vector<8x256xf32>
    %1191 = arith.addf %1185, %1190 : vector<8x256xf32>
    %1192 = vector.extract_strided_slice %7 {offsets = [0, 38], sizes = [8, 1], strides = [1, 1]} : vector<8x101xf32> to vector<8x1xf32>
    %1193 = vector.extract_strided_slice %1179 {offsets = [2, 0], sizes = [1, 256], strides = [1, 1]} : vector<4x256xf32> to vector<1x256xf32>
    %1194 = vector.broadcast %1192 : vector<8x1xf32> to vector<8x256xf32>
    %1195 = vector.broadcast %1193 : vector<1x256xf32> to vector<8x256xf32>
    %1196 = arith.mulf %1194, %1195 : vector<8x256xf32>
    %1197 = arith.addf %1191, %1196 : vector<8x256xf32>
    %1198 = vector.extract_strided_slice %7 {offsets = [0, 39], sizes = [8, 1], strides = [1, 1]} : vector<8x101xf32> to vector<8x1xf32>
    %1199 = vector.extract_strided_slice %1179 {offsets = [3, 0], sizes = [1, 256], strides = [1, 1]} : vector<4x256xf32> to vector<1x256xf32>
    %1200 = vector.broadcast %1198 : vector<8x1xf32> to vector<8x256xf32>
    %1201 = vector.broadcast %1199 : vector<1x256xf32> to vector<8x256xf32>
    %1202 = arith.mulf %1200, %1201 : vector<8x256xf32>
    %1203 = arith.addf %1197, %1202 : vector<8x256xf32>
    %1204 = vector.extract_strided_slice %866 {offsets = [0, 126], sizes = [4, 256], strides = [1, 1]} : vector<4x512xf32> to vector<4x256xf32>
    %c2_i32_85 = arith.constant 2 : i32
    %1205 = vector.broadcast %c2_i32_85 : i32 to vector<1x256xi32>
    %1206 = arith.cmpi sge, %4, %1205 : vector<1x256xi32>
    %cst_86 = arith.constant 0.000000e+00 : f32
    %1207 = vector.shape_cast %1206 : vector<1x256xi1> to vector<1x256xi1>
    %1208 = vector.broadcast %1207 : vector<1x256xi1> to vector<4x256xi1>
    %1209 = vector.broadcast %cst_86 : f32 to vector<4x256xf32>
    %1210 = arith.select %1208, %1204, %1209 : vector<4x256xi1>, vector<4x256xf32>
    %1211 = vector.extract_strided_slice %7 {offsets = [0, 40], sizes = [8, 1], strides = [1, 1]} : vector<8x101xf32> to vector<8x1xf32>
    %1212 = vector.extract_strided_slice %1210 {offsets = [0, 0], sizes = [1, 256], strides = [1, 1]} : vector<4x256xf32> to vector<1x256xf32>
    %1213 = vector.broadcast %1211 : vector<8x1xf32> to vector<8x256xf32>
    %1214 = vector.broadcast %1212 : vector<1x256xf32> to vector<8x256xf32>
    %1215 = arith.mulf %1213, %1214 : vector<8x256xf32>
    %1216 = arith.addf %1203, %1215 : vector<8x256xf32>
    %1217 = vector.extract_strided_slice %7 {offsets = [0, 41], sizes = [8, 1], strides = [1, 1]} : vector<8x101xf32> to vector<8x1xf32>
    %1218 = vector.extract_strided_slice %1210 {offsets = [1, 0], sizes = [1, 256], strides = [1, 1]} : vector<4x256xf32> to vector<1x256xf32>
    %1219 = vector.broadcast %1217 : vector<8x1xf32> to vector<8x256xf32>
    %1220 = vector.broadcast %1218 : vector<1x256xf32> to vector<8x256xf32>
    %1221 = arith.mulf %1219, %1220 : vector<8x256xf32>
    %1222 = arith.addf %1216, %1221 : vector<8x256xf32>
    %1223 = vector.extract_strided_slice %7 {offsets = [0, 42], sizes = [8, 1], strides = [1, 1]} : vector<8x101xf32> to vector<8x1xf32>
    %1224 = vector.extract_strided_slice %1210 {offsets = [2, 0], sizes = [1, 256], strides = [1, 1]} : vector<4x256xf32> to vector<1x256xf32>
    %1225 = vector.broadcast %1223 : vector<8x1xf32> to vector<8x256xf32>
    %1226 = vector.broadcast %1224 : vector<1x256xf32> to vector<8x256xf32>
    %1227 = arith.mulf %1225, %1226 : vector<8x256xf32>
    %1228 = arith.addf %1222, %1227 : vector<8x256xf32>
    %1229 = vector.extract_strided_slice %7 {offsets = [0, 43], sizes = [8, 1], strides = [1, 1]} : vector<8x101xf32> to vector<8x1xf32>
    %1230 = vector.extract_strided_slice %1210 {offsets = [3, 0], sizes = [1, 256], strides = [1, 1]} : vector<4x256xf32> to vector<1x256xf32>
    %1231 = vector.broadcast %1229 : vector<8x1xf32> to vector<8x256xf32>
    %1232 = vector.broadcast %1230 : vector<1x256xf32> to vector<8x256xf32>
    %1233 = arith.mulf %1231, %1232 : vector<8x256xf32>
    %1234 = arith.addf %1228, %1233 : vector<8x256xf32>
    %1235 = vector.extract_strided_slice %866 {offsets = [0, 127], sizes = [4, 256], strides = [1, 1]} : vector<4x512xf32> to vector<4x256xf32>
    %c1_i32_87 = arith.constant 1 : i32
    %1236 = vector.broadcast %c1_i32_87 : i32 to vector<1x256xi32>
    %1237 = arith.cmpi sge, %4, %1236 : vector<1x256xi32>
    %cst_88 = arith.constant 0.000000e+00 : f32
    %1238 = vector.shape_cast %1237 : vector<1x256xi1> to vector<1x256xi1>
    %1239 = vector.broadcast %1238 : vector<1x256xi1> to vector<4x256xi1>
    %1240 = vector.broadcast %cst_88 : f32 to vector<4x256xf32>
    %1241 = arith.select %1239, %1235, %1240 : vector<4x256xi1>, vector<4x256xf32>
    %1242 = vector.extract_strided_slice %7 {offsets = [0, 44], sizes = [8, 1], strides = [1, 1]} : vector<8x101xf32> to vector<8x1xf32>
    %1243 = vector.extract_strided_slice %1241 {offsets = [0, 0], sizes = [1, 256], strides = [1, 1]} : vector<4x256xf32> to vector<1x256xf32>
    %1244 = vector.broadcast %1242 : vector<8x1xf32> to vector<8x256xf32>
    %1245 = vector.broadcast %1243 : vector<1x256xf32> to vector<8x256xf32>
    %1246 = arith.mulf %1244, %1245 : vector<8x256xf32>
    %1247 = arith.addf %1234, %1246 : vector<8x256xf32>
    %1248 = vector.extract_strided_slice %7 {offsets = [0, 45], sizes = [8, 1], strides = [1, 1]} : vector<8x101xf32> to vector<8x1xf32>
    %1249 = vector.extract_strided_slice %1241 {offsets = [1, 0], sizes = [1, 256], strides = [1, 1]} : vector<4x256xf32> to vector<1x256xf32>
    %1250 = vector.broadcast %1248 : vector<8x1xf32> to vector<8x256xf32>
    %1251 = vector.broadcast %1249 : vector<1x256xf32> to vector<8x256xf32>
    %1252 = arith.mulf %1250, %1251 : vector<8x256xf32>
    %1253 = arith.addf %1247, %1252 : vector<8x256xf32>
    %1254 = vector.extract_strided_slice %7 {offsets = [0, 46], sizes = [8, 1], strides = [1, 1]} : vector<8x101xf32> to vector<8x1xf32>
    %1255 = vector.extract_strided_slice %1241 {offsets = [2, 0], sizes = [1, 256], strides = [1, 1]} : vector<4x256xf32> to vector<1x256xf32>
    %1256 = vector.broadcast %1254 : vector<8x1xf32> to vector<8x256xf32>
    %1257 = vector.broadcast %1255 : vector<1x256xf32> to vector<8x256xf32>
    %1258 = arith.mulf %1256, %1257 : vector<8x256xf32>
    %1259 = arith.addf %1253, %1258 : vector<8x256xf32>
    %1260 = vector.extract_strided_slice %7 {offsets = [0, 47], sizes = [8, 1], strides = [1, 1]} : vector<8x101xf32> to vector<8x1xf32>
    %1261 = vector.extract_strided_slice %1241 {offsets = [3, 0], sizes = [1, 256], strides = [1, 1]} : vector<4x256xf32> to vector<1x256xf32>
    %1262 = vector.broadcast %1260 : vector<8x1xf32> to vector<8x256xf32>
    %1263 = vector.broadcast %1261 : vector<1x256xf32> to vector<8x256xf32>
    %1264 = arith.mulf %1262, %1263 : vector<8x256xf32>
    %1265 = arith.addf %1259, %1264 : vector<8x256xf32>
    %1266 = vector.extract_strided_slice %7 {offsets = [0, 48], sizes = [8, 1], strides = [1, 1]} : vector<8x101xf32> to vector<8x1xf32>
    %1267 = vector.extract_strided_slice %1 {offsets = [0, 0], sizes = [1, 256], strides = [1, 1]} : vector<4x256xf32> to vector<1x256xf32>
    %1268 = vector.broadcast %1266 : vector<8x1xf32> to vector<8x256xf32>
    %1269 = vector.broadcast %1267 : vector<1x256xf32> to vector<8x256xf32>
    %1270 = arith.mulf %1268, %1269 : vector<8x256xf32>
    %1271 = arith.addf %1265, %1270 : vector<8x256xf32>
    %1272 = vector.extract_strided_slice %7 {offsets = [0, 49], sizes = [8, 1], strides = [1, 1]} : vector<8x101xf32> to vector<8x1xf32>
    %1273 = vector.extract_strided_slice %1 {offsets = [1, 0], sizes = [1, 256], strides = [1, 1]} : vector<4x256xf32> to vector<1x256xf32>
    %1274 = vector.broadcast %1272 : vector<8x1xf32> to vector<8x256xf32>
    %1275 = vector.broadcast %1273 : vector<1x256xf32> to vector<8x256xf32>
    %1276 = arith.mulf %1274, %1275 : vector<8x256xf32>
    %1277 = arith.addf %1271, %1276 : vector<8x256xf32>
    %1278 = vector.extract_strided_slice %7 {offsets = [0, 50], sizes = [8, 1], strides = [1, 1]} : vector<8x101xf32> to vector<8x1xf32>
    %1279 = vector.extract_strided_slice %1 {offsets = [2, 0], sizes = [1, 256], strides = [1, 1]} : vector<4x256xf32> to vector<1x256xf32>
    %1280 = vector.broadcast %1278 : vector<8x1xf32> to vector<8x256xf32>
    %1281 = vector.broadcast %1279 : vector<1x256xf32> to vector<8x256xf32>
    %1282 = arith.mulf %1280, %1281 : vector<8x256xf32>
    %1283 = arith.addf %1277, %1282 : vector<8x256xf32>
    %1284 = vector.extract_strided_slice %7 {offsets = [0, 51], sizes = [8, 1], strides = [1, 1]} : vector<8x101xf32> to vector<8x1xf32>
    %1285 = vector.extract_strided_slice %1 {offsets = [3, 0], sizes = [1, 256], strides = [1, 1]} : vector<4x256xf32> to vector<1x256xf32>
    %1286 = vector.broadcast %1284 : vector<8x1xf32> to vector<8x256xf32>
    %1287 = vector.broadcast %1285 : vector<1x256xf32> to vector<8x256xf32>
    %1288 = arith.mulf %1286, %1287 : vector<8x256xf32>
    %1289 = arith.addf %1283, %1288 : vector<8x256xf32>
    %1290 = vector.extract_strided_slice %866 {offsets = [0, 129], sizes = [4, 256], strides = [1, 1]} : vector<4x512xf32> to vector<4x256xf32>
    %c15_i32_89 = arith.constant 15 : i32
    %1291 = vector.broadcast %c15_i32_89 : i32 to vector<1x256xi32>
    %1292 = arith.cmpi slt, %4, %1291 : vector<1x256xi32>
    %cst_90 = arith.constant 0.000000e+00 : f32
    %1293 = vector.shape_cast %1292 : vector<1x256xi1> to vector<1x256xi1>
    %1294 = vector.broadcast %1293 : vector<1x256xi1> to vector<4x256xi1>
    %1295 = vector.broadcast %cst_90 : f32 to vector<4x256xf32>
    %1296 = arith.select %1294, %1290, %1295 : vector<4x256xi1>, vector<4x256xf32>
    %1297 = vector.extract_strided_slice %7 {offsets = [0, 52], sizes = [8, 1], strides = [1, 1]} : vector<8x101xf32> to vector<8x1xf32>
    %1298 = vector.extract_strided_slice %1296 {offsets = [0, 0], sizes = [1, 256], strides = [1, 1]} : vector<4x256xf32> to vector<1x256xf32>
    %1299 = vector.broadcast %1297 : vector<8x1xf32> to vector<8x256xf32>
    %1300 = vector.broadcast %1298 : vector<1x256xf32> to vector<8x256xf32>
    %1301 = arith.mulf %1299, %1300 : vector<8x256xf32>
    %1302 = arith.addf %1289, %1301 : vector<8x256xf32>
    %1303 = vector.extract_strided_slice %7 {offsets = [0, 53], sizes = [8, 1], strides = [1, 1]} : vector<8x101xf32> to vector<8x1xf32>
    %1304 = vector.extract_strided_slice %1296 {offsets = [1, 0], sizes = [1, 256], strides = [1, 1]} : vector<4x256xf32> to vector<1x256xf32>
    %1305 = vector.broadcast %1303 : vector<8x1xf32> to vector<8x256xf32>
    %1306 = vector.broadcast %1304 : vector<1x256xf32> to vector<8x256xf32>
    %1307 = arith.mulf %1305, %1306 : vector<8x256xf32>
    %1308 = arith.addf %1302, %1307 : vector<8x256xf32>
    %1309 = vector.extract_strided_slice %7 {offsets = [0, 54], sizes = [8, 1], strides = [1, 1]} : vector<8x101xf32> to vector<8x1xf32>
    %1310 = vector.extract_strided_slice %1296 {offsets = [2, 0], sizes = [1, 256], strides = [1, 1]} : vector<4x256xf32> to vector<1x256xf32>
    %1311 = vector.broadcast %1309 : vector<8x1xf32> to vector<8x256xf32>
    %1312 = vector.broadcast %1310 : vector<1x256xf32> to vector<8x256xf32>
    %1313 = arith.mulf %1311, %1312 : vector<8x256xf32>
    %1314 = arith.addf %1308, %1313 : vector<8x256xf32>
    %1315 = vector.extract_strided_slice %7 {offsets = [0, 55], sizes = [8, 1], strides = [1, 1]} : vector<8x101xf32> to vector<8x1xf32>
    %1316 = vector.extract_strided_slice %1296 {offsets = [3, 0], sizes = [1, 256], strides = [1, 1]} : vector<4x256xf32> to vector<1x256xf32>
    %1317 = vector.broadcast %1315 : vector<8x1xf32> to vector<8x256xf32>
    %1318 = vector.broadcast %1316 : vector<1x256xf32> to vector<8x256xf32>
    %1319 = arith.mulf %1317, %1318 : vector<8x256xf32>
    %1320 = arith.addf %1314, %1319 : vector<8x256xf32>
    %1321 = vector.extract_strided_slice %866 {offsets = [0, 130], sizes = [4, 256], strides = [1, 1]} : vector<4x512xf32> to vector<4x256xf32>
    %c14_i32_91 = arith.constant 14 : i32
    %1322 = vector.broadcast %c14_i32_91 : i32 to vector<1x256xi32>
    %1323 = arith.cmpi slt, %4, %1322 : vector<1x256xi32>
    %cst_92 = arith.constant 0.000000e+00 : f32
    %1324 = vector.shape_cast %1323 : vector<1x256xi1> to vector<1x256xi1>
    %1325 = vector.broadcast %1324 : vector<1x256xi1> to vector<4x256xi1>
    %1326 = vector.broadcast %cst_92 : f32 to vector<4x256xf32>
    %1327 = arith.select %1325, %1321, %1326 : vector<4x256xi1>, vector<4x256xf32>
    %1328 = vector.extract_strided_slice %7 {offsets = [0, 56], sizes = [8, 1], strides = [1, 1]} : vector<8x101xf32> to vector<8x1xf32>
    %1329 = vector.extract_strided_slice %1327 {offsets = [0, 0], sizes = [1, 256], strides = [1, 1]} : vector<4x256xf32> to vector<1x256xf32>
    %1330 = vector.broadcast %1328 : vector<8x1xf32> to vector<8x256xf32>
    %1331 = vector.broadcast %1329 : vector<1x256xf32> to vector<8x256xf32>
    %1332 = arith.mulf %1330, %1331 : vector<8x256xf32>
    %1333 = arith.addf %1320, %1332 : vector<8x256xf32>
    %1334 = vector.extract_strided_slice %7 {offsets = [0, 57], sizes = [8, 1], strides = [1, 1]} : vector<8x101xf32> to vector<8x1xf32>
    %1335 = vector.extract_strided_slice %1327 {offsets = [1, 0], sizes = [1, 256], strides = [1, 1]} : vector<4x256xf32> to vector<1x256xf32>
    %1336 = vector.broadcast %1334 : vector<8x1xf32> to vector<8x256xf32>
    %1337 = vector.broadcast %1335 : vector<1x256xf32> to vector<8x256xf32>
    %1338 = arith.mulf %1336, %1337 : vector<8x256xf32>
    %1339 = arith.addf %1333, %1338 : vector<8x256xf32>
    %1340 = vector.extract_strided_slice %7 {offsets = [0, 58], sizes = [8, 1], strides = [1, 1]} : vector<8x101xf32> to vector<8x1xf32>
    %1341 = vector.extract_strided_slice %1327 {offsets = [2, 0], sizes = [1, 256], strides = [1, 1]} : vector<4x256xf32> to vector<1x256xf32>
    %1342 = vector.broadcast %1340 : vector<8x1xf32> to vector<8x256xf32>
    %1343 = vector.broadcast %1341 : vector<1x256xf32> to vector<8x256xf32>
    %1344 = arith.mulf %1342, %1343 : vector<8x256xf32>
    %1345 = arith.addf %1339, %1344 : vector<8x256xf32>
    %1346 = vector.extract_strided_slice %7 {offsets = [0, 59], sizes = [8, 1], strides = [1, 1]} : vector<8x101xf32> to vector<8x1xf32>
    %1347 = vector.extract_strided_slice %1327 {offsets = [3, 0], sizes = [1, 256], strides = [1, 1]} : vector<4x256xf32> to vector<1x256xf32>
    %1348 = vector.broadcast %1346 : vector<8x1xf32> to vector<8x256xf32>
    %1349 = vector.broadcast %1347 : vector<1x256xf32> to vector<8x256xf32>
    %1350 = arith.mulf %1348, %1349 : vector<8x256xf32>
    %1351 = arith.addf %1345, %1350 : vector<8x256xf32>
    %1352 = vector.extract_strided_slice %866 {offsets = [0, 142], sizes = [4, 256], strides = [1, 1]} : vector<4x512xf32> to vector<4x256xf32>
    %c2_i32_93 = arith.constant 2 : i32
    %1353 = vector.broadcast %c2_i32_93 : i32 to vector<1x256xi32>
    %1354 = arith.cmpi sge, %4, %1353 : vector<1x256xi32>
    %c240_i32_94 = arith.constant 240 : i32
    %1355 = vector.broadcast %c240_i32_94 : i32 to vector<1x256xi32>
    %1356 = arith.cmpi slt, %2, %1355 : vector<1x256xi32>
    %1357 = arith.andi %1354, %1356 : vector<1x256xi1>
    %cst_95 = arith.constant 0.000000e+00 : f32
    %1358 = vector.shape_cast %1357 : vector<1x256xi1> to vector<1x256xi1>
    %1359 = vector.broadcast %1358 : vector<1x256xi1> to vector<4x256xi1>
    %1360 = vector.broadcast %cst_95 : f32 to vector<4x256xf32>
    %1361 = arith.select %1359, %1352, %1360 : vector<4x256xi1>, vector<4x256xf32>
    %1362 = vector.extract_strided_slice %7 {offsets = [0, 60], sizes = [8, 1], strides = [1, 1]} : vector<8x101xf32> to vector<8x1xf32>
    %1363 = vector.extract_strided_slice %1361 {offsets = [0, 0], sizes = [1, 256], strides = [1, 1]} : vector<4x256xf32> to vector<1x256xf32>
    %1364 = vector.broadcast %1362 : vector<8x1xf32> to vector<8x256xf32>
    %1365 = vector.broadcast %1363 : vector<1x256xf32> to vector<8x256xf32>
    %1366 = arith.mulf %1364, %1365 : vector<8x256xf32>
    %1367 = arith.addf %1351, %1366 : vector<8x256xf32>
    %1368 = vector.extract_strided_slice %7 {offsets = [0, 61], sizes = [8, 1], strides = [1, 1]} : vector<8x101xf32> to vector<8x1xf32>
    %1369 = vector.extract_strided_slice %1361 {offsets = [1, 0], sizes = [1, 256], strides = [1, 1]} : vector<4x256xf32> to vector<1x256xf32>
    %1370 = vector.broadcast %1368 : vector<8x1xf32> to vector<8x256xf32>
    %1371 = vector.broadcast %1369 : vector<1x256xf32> to vector<8x256xf32>
    %1372 = arith.mulf %1370, %1371 : vector<8x256xf32>
    %1373 = arith.addf %1367, %1372 : vector<8x256xf32>
    %1374 = vector.extract_strided_slice %7 {offsets = [0, 62], sizes = [8, 1], strides = [1, 1]} : vector<8x101xf32> to vector<8x1xf32>
    %1375 = vector.extract_strided_slice %1361 {offsets = [2, 0], sizes = [1, 256], strides = [1, 1]} : vector<4x256xf32> to vector<1x256xf32>
    %1376 = vector.broadcast %1374 : vector<8x1xf32> to vector<8x256xf32>
    %1377 = vector.broadcast %1375 : vector<1x256xf32> to vector<8x256xf32>
    %1378 = arith.mulf %1376, %1377 : vector<8x256xf32>
    %1379 = arith.addf %1373, %1378 : vector<8x256xf32>
    %1380 = vector.extract_strided_slice %7 {offsets = [0, 63], sizes = [8, 1], strides = [1, 1]} : vector<8x101xf32> to vector<8x1xf32>
    %1381 = vector.extract_strided_slice %1361 {offsets = [3, 0], sizes = [1, 256], strides = [1, 1]} : vector<4x256xf32> to vector<1x256xf32>
    %1382 = vector.broadcast %1380 : vector<8x1xf32> to vector<8x256xf32>
    %1383 = vector.broadcast %1381 : vector<1x256xf32> to vector<8x256xf32>
    %1384 = arith.mulf %1382, %1383 : vector<8x256xf32>
    %1385 = arith.addf %1379, %1384 : vector<8x256xf32>
    %1386 = vector.extract_strided_slice %866 {offsets = [0, 143], sizes = [4, 256], strides = [1, 1]} : vector<4x512xf32> to vector<4x256xf32>
    %c1_i32_96 = arith.constant 1 : i32
    %1387 = vector.broadcast %c1_i32_96 : i32 to vector<1x256xi32>
    %1388 = arith.cmpi sge, %4, %1387 : vector<1x256xi32>
    %c240_i32_97 = arith.constant 240 : i32
    %1389 = vector.broadcast %c240_i32_97 : i32 to vector<1x256xi32>
    %1390 = arith.cmpi slt, %2, %1389 : vector<1x256xi32>
    %1391 = arith.andi %1388, %1390 : vector<1x256xi1>
    %cst_98 = arith.constant 0.000000e+00 : f32
    %1392 = vector.shape_cast %1391 : vector<1x256xi1> to vector<1x256xi1>
    %1393 = vector.broadcast %1392 : vector<1x256xi1> to vector<4x256xi1>
    %1394 = vector.broadcast %cst_98 : f32 to vector<4x256xf32>
    %1395 = arith.select %1393, %1386, %1394 : vector<4x256xi1>, vector<4x256xf32>
    %1396 = vector.extract_strided_slice %7 {offsets = [0, 64], sizes = [8, 1], strides = [1, 1]} : vector<8x101xf32> to vector<8x1xf32>
    %1397 = vector.extract_strided_slice %1395 {offsets = [0, 0], sizes = [1, 256], strides = [1, 1]} : vector<4x256xf32> to vector<1x256xf32>
    %1398 = vector.broadcast %1396 : vector<8x1xf32> to vector<8x256xf32>
    %1399 = vector.broadcast %1397 : vector<1x256xf32> to vector<8x256xf32>
    %1400 = arith.mulf %1398, %1399 : vector<8x256xf32>
    %1401 = arith.addf %1385, %1400 : vector<8x256xf32>
    %1402 = vector.extract_strided_slice %7 {offsets = [0, 65], sizes = [8, 1], strides = [1, 1]} : vector<8x101xf32> to vector<8x1xf32>
    %1403 = vector.extract_strided_slice %1395 {offsets = [1, 0], sizes = [1, 256], strides = [1, 1]} : vector<4x256xf32> to vector<1x256xf32>
    %1404 = vector.broadcast %1402 : vector<8x1xf32> to vector<8x256xf32>
    %1405 = vector.broadcast %1403 : vector<1x256xf32> to vector<8x256xf32>
    %1406 = arith.mulf %1404, %1405 : vector<8x256xf32>
    %1407 = arith.addf %1401, %1406 : vector<8x256xf32>
    %1408 = vector.extract_strided_slice %7 {offsets = [0, 66], sizes = [8, 1], strides = [1, 1]} : vector<8x101xf32> to vector<8x1xf32>
    %1409 = vector.extract_strided_slice %1395 {offsets = [2, 0], sizes = [1, 256], strides = [1, 1]} : vector<4x256xf32> to vector<1x256xf32>
    %1410 = vector.broadcast %1408 : vector<8x1xf32> to vector<8x256xf32>
    %1411 = vector.broadcast %1409 : vector<1x256xf32> to vector<8x256xf32>
    %1412 = arith.mulf %1410, %1411 : vector<8x256xf32>
    %1413 = arith.addf %1407, %1412 : vector<8x256xf32>
    %1414 = vector.extract_strided_slice %7 {offsets = [0, 67], sizes = [8, 1], strides = [1, 1]} : vector<8x101xf32> to vector<8x1xf32>
    %1415 = vector.extract_strided_slice %1395 {offsets = [3, 0], sizes = [1, 256], strides = [1, 1]} : vector<4x256xf32> to vector<1x256xf32>
    %1416 = vector.broadcast %1414 : vector<8x1xf32> to vector<8x256xf32>
    %1417 = vector.broadcast %1415 : vector<1x256xf32> to vector<8x256xf32>
    %1418 = arith.mulf %1416, %1417 : vector<8x256xf32>
    %1419 = arith.addf %1413, %1418 : vector<8x256xf32>
    %1420 = vector.extract_strided_slice %866 {offsets = [0, 144], sizes = [4, 256], strides = [1, 1]} : vector<4x512xf32> to vector<4x256xf32>
    %c240_i32_99 = arith.constant 240 : i32
    %1421 = vector.broadcast %c240_i32_99 : i32 to vector<1x256xi32>
    %1422 = arith.cmpi slt, %2, %1421 : vector<1x256xi32>
    %cst_100 = arith.constant 0.000000e+00 : f32
    %1423 = vector.shape_cast %1422 : vector<1x256xi1> to vector<1x256xi1>
    %1424 = vector.broadcast %1423 : vector<1x256xi1> to vector<4x256xi1>
    %1425 = vector.broadcast %cst_100 : f32 to vector<4x256xf32>
    %1426 = arith.select %1424, %1420, %1425 : vector<4x256xi1>, vector<4x256xf32>
    %1427 = vector.extract_strided_slice %7 {offsets = [0, 68], sizes = [8, 1], strides = [1, 1]} : vector<8x101xf32> to vector<8x1xf32>
    %1428 = vector.extract_strided_slice %1426 {offsets = [0, 0], sizes = [1, 256], strides = [1, 1]} : vector<4x256xf32> to vector<1x256xf32>
    %1429 = vector.broadcast %1427 : vector<8x1xf32> to vector<8x256xf32>
    %1430 = vector.broadcast %1428 : vector<1x256xf32> to vector<8x256xf32>
    %1431 = arith.mulf %1429, %1430 : vector<8x256xf32>
    %1432 = arith.addf %1419, %1431 : vector<8x256xf32>
    %1433 = vector.extract_strided_slice %7 {offsets = [0, 69], sizes = [8, 1], strides = [1, 1]} : vector<8x101xf32> to vector<8x1xf32>
    %1434 = vector.extract_strided_slice %1426 {offsets = [1, 0], sizes = [1, 256], strides = [1, 1]} : vector<4x256xf32> to vector<1x256xf32>
    %1435 = vector.broadcast %1433 : vector<8x1xf32> to vector<8x256xf32>
    %1436 = vector.broadcast %1434 : vector<1x256xf32> to vector<8x256xf32>
    %1437 = arith.mulf %1435, %1436 : vector<8x256xf32>
    %1438 = arith.addf %1432, %1437 : vector<8x256xf32>
    %1439 = vector.extract_strided_slice %7 {offsets = [0, 70], sizes = [8, 1], strides = [1, 1]} : vector<8x101xf32> to vector<8x1xf32>
    %1440 = vector.extract_strided_slice %1426 {offsets = [2, 0], sizes = [1, 256], strides = [1, 1]} : vector<4x256xf32> to vector<1x256xf32>
    %1441 = vector.broadcast %1439 : vector<8x1xf32> to vector<8x256xf32>
    %1442 = vector.broadcast %1440 : vector<1x256xf32> to vector<8x256xf32>
    %1443 = arith.mulf %1441, %1442 : vector<8x256xf32>
    %1444 = arith.addf %1438, %1443 : vector<8x256xf32>
    %1445 = vector.extract_strided_slice %7 {offsets = [0, 71], sizes = [8, 1], strides = [1, 1]} : vector<8x101xf32> to vector<8x1xf32>
    %1446 = vector.extract_strided_slice %1426 {offsets = [3, 0], sizes = [1, 256], strides = [1, 1]} : vector<4x256xf32> to vector<1x256xf32>
    %1447 = vector.broadcast %1445 : vector<8x1xf32> to vector<8x256xf32>
    %1448 = vector.broadcast %1446 : vector<1x256xf32> to vector<8x256xf32>
    %1449 = arith.mulf %1447, %1448 : vector<8x256xf32>
    %1450 = arith.addf %1444, %1449 : vector<8x256xf32>
    %1451 = vector.extract_strided_slice %866 {offsets = [0, 145], sizes = [4, 256], strides = [1, 1]} : vector<4x512xf32> to vector<4x256xf32>
    %c15_i32_101 = arith.constant 15 : i32
    %1452 = vector.broadcast %c15_i32_101 : i32 to vector<1x256xi32>
    %1453 = arith.cmpi slt, %4, %1452 : vector<1x256xi32>
    %c240_i32_102 = arith.constant 240 : i32
    %1454 = vector.broadcast %c240_i32_102 : i32 to vector<1x256xi32>
    %1455 = arith.cmpi slt, %2, %1454 : vector<1x256xi32>
    %1456 = arith.andi %1453, %1455 : vector<1x256xi1>
    %cst_103 = arith.constant 0.000000e+00 : f32
    %1457 = vector.shape_cast %1456 : vector<1x256xi1> to vector<1x256xi1>
    %1458 = vector.broadcast %1457 : vector<1x256xi1> to vector<4x256xi1>
    %1459 = vector.broadcast %cst_103 : f32 to vector<4x256xf32>
    %1460 = arith.select %1458, %1451, %1459 : vector<4x256xi1>, vector<4x256xf32>
    %1461 = vector.extract_strided_slice %7 {offsets = [0, 72], sizes = [8, 1], strides = [1, 1]} : vector<8x101xf32> to vector<8x1xf32>
    %1462 = vector.extract_strided_slice %1460 {offsets = [0, 0], sizes = [1, 256], strides = [1, 1]} : vector<4x256xf32> to vector<1x256xf32>
    %1463 = vector.broadcast %1461 : vector<8x1xf32> to vector<8x256xf32>
    %1464 = vector.broadcast %1462 : vector<1x256xf32> to vector<8x256xf32>
    %1465 = arith.mulf %1463, %1464 : vector<8x256xf32>
    %1466 = arith.addf %1450, %1465 : vector<8x256xf32>
    %1467 = vector.extract_strided_slice %7 {offsets = [0, 73], sizes = [8, 1], strides = [1, 1]} : vector<8x101xf32> to vector<8x1xf32>
    %1468 = vector.extract_strided_slice %1460 {offsets = [1, 0], sizes = [1, 256], strides = [1, 1]} : vector<4x256xf32> to vector<1x256xf32>
    %1469 = vector.broadcast %1467 : vector<8x1xf32> to vector<8x256xf32>
    %1470 = vector.broadcast %1468 : vector<1x256xf32> to vector<8x256xf32>
    %1471 = arith.mulf %1469, %1470 : vector<8x256xf32>
    %1472 = arith.addf %1466, %1471 : vector<8x256xf32>
    %1473 = vector.extract_strided_slice %7 {offsets = [0, 74], sizes = [8, 1], strides = [1, 1]} : vector<8x101xf32> to vector<8x1xf32>
    %1474 = vector.extract_strided_slice %1460 {offsets = [2, 0], sizes = [1, 256], strides = [1, 1]} : vector<4x256xf32> to vector<1x256xf32>
    %1475 = vector.broadcast %1473 : vector<8x1xf32> to vector<8x256xf32>
    %1476 = vector.broadcast %1474 : vector<1x256xf32> to vector<8x256xf32>
    %1477 = arith.mulf %1475, %1476 : vector<8x256xf32>
    %1478 = arith.addf %1472, %1477 : vector<8x256xf32>
    %1479 = vector.extract_strided_slice %7 {offsets = [0, 75], sizes = [8, 1], strides = [1, 1]} : vector<8x101xf32> to vector<8x1xf32>
    %1480 = vector.extract_strided_slice %1460 {offsets = [3, 0], sizes = [1, 256], strides = [1, 1]} : vector<4x256xf32> to vector<1x256xf32>
    %1481 = vector.broadcast %1479 : vector<8x1xf32> to vector<8x256xf32>
    %1482 = vector.broadcast %1480 : vector<1x256xf32> to vector<8x256xf32>
    %1483 = arith.mulf %1481, %1482 : vector<8x256xf32>
    %1484 = arith.addf %1478, %1483 : vector<8x256xf32>
    %1485 = vector.extract_strided_slice %866 {offsets = [0, 146], sizes = [4, 256], strides = [1, 1]} : vector<4x512xf32> to vector<4x256xf32>
    %c14_i32_104 = arith.constant 14 : i32
    %1486 = vector.broadcast %c14_i32_104 : i32 to vector<1x256xi32>
    %1487 = arith.cmpi slt, %4, %1486 : vector<1x256xi32>
    %c240_i32_105 = arith.constant 240 : i32
    %1488 = vector.broadcast %c240_i32_105 : i32 to vector<1x256xi32>
    %1489 = arith.cmpi slt, %2, %1488 : vector<1x256xi32>
    %1490 = arith.andi %1487, %1489 : vector<1x256xi1>
    %cst_106 = arith.constant 0.000000e+00 : f32
    %1491 = vector.shape_cast %1490 : vector<1x256xi1> to vector<1x256xi1>
    %1492 = vector.broadcast %1491 : vector<1x256xi1> to vector<4x256xi1>
    %1493 = vector.broadcast %cst_106 : f32 to vector<4x256xf32>
    %1494 = arith.select %1492, %1485, %1493 : vector<4x256xi1>, vector<4x256xf32>
    %1495 = vector.extract_strided_slice %7 {offsets = [0, 76], sizes = [8, 1], strides = [1, 1]} : vector<8x101xf32> to vector<8x1xf32>
    %1496 = vector.extract_strided_slice %1494 {offsets = [0, 0], sizes = [1, 256], strides = [1, 1]} : vector<4x256xf32> to vector<1x256xf32>
    %1497 = vector.broadcast %1495 : vector<8x1xf32> to vector<8x256xf32>
    %1498 = vector.broadcast %1496 : vector<1x256xf32> to vector<8x256xf32>
    %1499 = arith.mulf %1497, %1498 : vector<8x256xf32>
    %1500 = arith.addf %1484, %1499 : vector<8x256xf32>
    %1501 = vector.extract_strided_slice %7 {offsets = [0, 77], sizes = [8, 1], strides = [1, 1]} : vector<8x101xf32> to vector<8x1xf32>
    %1502 = vector.extract_strided_slice %1494 {offsets = [1, 0], sizes = [1, 256], strides = [1, 1]} : vector<4x256xf32> to vector<1x256xf32>
    %1503 = vector.broadcast %1501 : vector<8x1xf32> to vector<8x256xf32>
    %1504 = vector.broadcast %1502 : vector<1x256xf32> to vector<8x256xf32>
    %1505 = arith.mulf %1503, %1504 : vector<8x256xf32>
    %1506 = arith.addf %1500, %1505 : vector<8x256xf32>
    %1507 = vector.extract_strided_slice %7 {offsets = [0, 78], sizes = [8, 1], strides = [1, 1]} : vector<8x101xf32> to vector<8x1xf32>
    %1508 = vector.extract_strided_slice %1494 {offsets = [2, 0], sizes = [1, 256], strides = [1, 1]} : vector<4x256xf32> to vector<1x256xf32>
    %1509 = vector.broadcast %1507 : vector<8x1xf32> to vector<8x256xf32>
    %1510 = vector.broadcast %1508 : vector<1x256xf32> to vector<8x256xf32>
    %1511 = arith.mulf %1509, %1510 : vector<8x256xf32>
    %1512 = arith.addf %1506, %1511 : vector<8x256xf32>
    %1513 = vector.extract_strided_slice %7 {offsets = [0, 79], sizes = [8, 1], strides = [1, 1]} : vector<8x101xf32> to vector<8x1xf32>
    %1514 = vector.extract_strided_slice %1494 {offsets = [3, 0], sizes = [1, 256], strides = [1, 1]} : vector<4x256xf32> to vector<1x256xf32>
    %1515 = vector.broadcast %1513 : vector<8x1xf32> to vector<8x256xf32>
    %1516 = vector.broadcast %1514 : vector<1x256xf32> to vector<8x256xf32>
    %1517 = arith.mulf %1515, %1516 : vector<8x256xf32>
    %1518 = arith.addf %1512, %1517 : vector<8x256xf32>
    %1519 = vector.extract_strided_slice %866 {offsets = [0, 158], sizes = [4, 256], strides = [1, 1]} : vector<4x512xf32> to vector<4x256xf32>
    %c2_i32_107 = arith.constant 2 : i32
    %1520 = vector.broadcast %c2_i32_107 : i32 to vector<1x256xi32>
    %1521 = arith.cmpi sge, %4, %1520 : vector<1x256xi32>
    %c224_i32 = arith.constant 224 : i32
    %1522 = vector.broadcast %c224_i32 : i32 to vector<1x256xi32>
    %1523 = arith.cmpi slt, %2, %1522 : vector<1x256xi32>
    %1524 = arith.andi %1521, %1523 : vector<1x256xi1>
    %cst_108 = arith.constant 0.000000e+00 : f32
    %1525 = vector.shape_cast %1524 : vector<1x256xi1> to vector<1x256xi1>
    %1526 = vector.broadcast %1525 : vector<1x256xi1> to vector<4x256xi1>
    %1527 = vector.broadcast %cst_108 : f32 to vector<4x256xf32>
    %1528 = arith.select %1526, %1519, %1527 : vector<4x256xi1>, vector<4x256xf32>
    %1529 = vector.extract_strided_slice %7 {offsets = [0, 80], sizes = [8, 1], strides = [1, 1]} : vector<8x101xf32> to vector<8x1xf32>
    %1530 = vector.extract_strided_slice %1528 {offsets = [0, 0], sizes = [1, 256], strides = [1, 1]} : vector<4x256xf32> to vector<1x256xf32>
    %1531 = vector.broadcast %1529 : vector<8x1xf32> to vector<8x256xf32>
    %1532 = vector.broadcast %1530 : vector<1x256xf32> to vector<8x256xf32>
    %1533 = arith.mulf %1531, %1532 : vector<8x256xf32>
    %1534 = arith.addf %1518, %1533 : vector<8x256xf32>
    %1535 = vector.extract_strided_slice %7 {offsets = [0, 81], sizes = [8, 1], strides = [1, 1]} : vector<8x101xf32> to vector<8x1xf32>
    %1536 = vector.extract_strided_slice %1528 {offsets = [1, 0], sizes = [1, 256], strides = [1, 1]} : vector<4x256xf32> to vector<1x256xf32>
    %1537 = vector.broadcast %1535 : vector<8x1xf32> to vector<8x256xf32>
    %1538 = vector.broadcast %1536 : vector<1x256xf32> to vector<8x256xf32>
    %1539 = arith.mulf %1537, %1538 : vector<8x256xf32>
    %1540 = arith.addf %1534, %1539 : vector<8x256xf32>
    %1541 = vector.extract_strided_slice %7 {offsets = [0, 82], sizes = [8, 1], strides = [1, 1]} : vector<8x101xf32> to vector<8x1xf32>
    %1542 = vector.extract_strided_slice %1528 {offsets = [2, 0], sizes = [1, 256], strides = [1, 1]} : vector<4x256xf32> to vector<1x256xf32>
    %1543 = vector.broadcast %1541 : vector<8x1xf32> to vector<8x256xf32>
    %1544 = vector.broadcast %1542 : vector<1x256xf32> to vector<8x256xf32>
    %1545 = arith.mulf %1543, %1544 : vector<8x256xf32>
    %1546 = arith.addf %1540, %1545 : vector<8x256xf32>
    %1547 = vector.extract_strided_slice %7 {offsets = [0, 83], sizes = [8, 1], strides = [1, 1]} : vector<8x101xf32> to vector<8x1xf32>
    %1548 = vector.extract_strided_slice %1528 {offsets = [3, 0], sizes = [1, 256], strides = [1, 1]} : vector<4x256xf32> to vector<1x256xf32>
    %1549 = vector.broadcast %1547 : vector<8x1xf32> to vector<8x256xf32>
    %1550 = vector.broadcast %1548 : vector<1x256xf32> to vector<8x256xf32>
    %1551 = arith.mulf %1549, %1550 : vector<8x256xf32>
    %1552 = arith.addf %1546, %1551 : vector<8x256xf32>
    %1553 = vector.extract_strided_slice %866 {offsets = [0, 159], sizes = [4, 256], strides = [1, 1]} : vector<4x512xf32> to vector<4x256xf32>
    %c1_i32_109 = arith.constant 1 : i32
    %1554 = vector.broadcast %c1_i32_109 : i32 to vector<1x256xi32>
    %1555 = arith.cmpi sge, %4, %1554 : vector<1x256xi32>
    %c224_i32_110 = arith.constant 224 : i32
    %1556 = vector.broadcast %c224_i32_110 : i32 to vector<1x256xi32>
    %1557 = arith.cmpi slt, %2, %1556 : vector<1x256xi32>
    %1558 = arith.andi %1555, %1557 : vector<1x256xi1>
    %cst_111 = arith.constant 0.000000e+00 : f32
    %1559 = vector.shape_cast %1558 : vector<1x256xi1> to vector<1x256xi1>
    %1560 = vector.broadcast %1559 : vector<1x256xi1> to vector<4x256xi1>
    %1561 = vector.broadcast %cst_111 : f32 to vector<4x256xf32>
    %1562 = arith.select %1560, %1553, %1561 : vector<4x256xi1>, vector<4x256xf32>
    %1563 = vector.extract_strided_slice %7 {offsets = [0, 84], sizes = [8, 1], strides = [1, 1]} : vector<8x101xf32> to vector<8x1xf32>
    %1564 = vector.extract_strided_slice %1562 {offsets = [0, 0], sizes = [1, 256], strides = [1, 1]} : vector<4x256xf32> to vector<1x256xf32>
    %1565 = vector.broadcast %1563 : vector<8x1xf32> to vector<8x256xf32>
    %1566 = vector.broadcast %1564 : vector<1x256xf32> to vector<8x256xf32>
    %1567 = arith.mulf %1565, %1566 : vector<8x256xf32>
    %1568 = arith.addf %1552, %1567 : vector<8x256xf32>
    %1569 = vector.extract_strided_slice %7 {offsets = [0, 85], sizes = [8, 1], strides = [1, 1]} : vector<8x101xf32> to vector<8x1xf32>
    %1570 = vector.extract_strided_slice %1562 {offsets = [1, 0], sizes = [1, 256], strides = [1, 1]} : vector<4x256xf32> to vector<1x256xf32>
    %1571 = vector.broadcast %1569 : vector<8x1xf32> to vector<8x256xf32>
    %1572 = vector.broadcast %1570 : vector<1x256xf32> to vector<8x256xf32>
    %1573 = arith.mulf %1571, %1572 : vector<8x256xf32>
    %1574 = arith.addf %1568, %1573 : vector<8x256xf32>
    %1575 = vector.extract_strided_slice %7 {offsets = [0, 86], sizes = [8, 1], strides = [1, 1]} : vector<8x101xf32> to vector<8x1xf32>
    %1576 = vector.extract_strided_slice %1562 {offsets = [2, 0], sizes = [1, 256], strides = [1, 1]} : vector<4x256xf32> to vector<1x256xf32>
    %1577 = vector.broadcast %1575 : vector<8x1xf32> to vector<8x256xf32>
    %1578 = vector.broadcast %1576 : vector<1x256xf32> to vector<8x256xf32>
    %1579 = arith.mulf %1577, %1578 : vector<8x256xf32>
    %1580 = arith.addf %1574, %1579 : vector<8x256xf32>
    %1581 = vector.extract_strided_slice %7 {offsets = [0, 87], sizes = [8, 1], strides = [1, 1]} : vector<8x101xf32> to vector<8x1xf32>
    %1582 = vector.extract_strided_slice %1562 {offsets = [3, 0], sizes = [1, 256], strides = [1, 1]} : vector<4x256xf32> to vector<1x256xf32>
    %1583 = vector.broadcast %1581 : vector<8x1xf32> to vector<8x256xf32>
    %1584 = vector.broadcast %1582 : vector<1x256xf32> to vector<8x256xf32>
    %1585 = arith.mulf %1583, %1584 : vector<8x256xf32>
    %1586 = arith.addf %1580, %1585 : vector<8x256xf32>
    %1587 = vector.extract_strided_slice %866 {offsets = [0, 160], sizes = [4, 256], strides = [1, 1]} : vector<4x512xf32> to vector<4x256xf32>
    %c224_i32_112 = arith.constant 224 : i32
    %1588 = vector.broadcast %c224_i32_112 : i32 to vector<1x256xi32>
    %1589 = arith.cmpi slt, %2, %1588 : vector<1x256xi32>
    %cst_113 = arith.constant 0.000000e+00 : f32
    %1590 = vector.shape_cast %1589 : vector<1x256xi1> to vector<1x256xi1>
    %1591 = vector.broadcast %1590 : vector<1x256xi1> to vector<4x256xi1>
    %1592 = vector.broadcast %cst_113 : f32 to vector<4x256xf32>
    %1593 = arith.select %1591, %1587, %1592 : vector<4x256xi1>, vector<4x256xf32>
    %1594 = vector.extract_strided_slice %7 {offsets = [0, 88], sizes = [8, 1], strides = [1, 1]} : vector<8x101xf32> to vector<8x1xf32>
    %1595 = vector.extract_strided_slice %1593 {offsets = [0, 0], sizes = [1, 256], strides = [1, 1]} : vector<4x256xf32> to vector<1x256xf32>
    %1596 = vector.broadcast %1594 : vector<8x1xf32> to vector<8x256xf32>
    %1597 = vector.broadcast %1595 : vector<1x256xf32> to vector<8x256xf32>
    %1598 = arith.mulf %1596, %1597 : vector<8x256xf32>
    %1599 = arith.addf %1586, %1598 : vector<8x256xf32>
    %1600 = vector.extract_strided_slice %7 {offsets = [0, 89], sizes = [8, 1], strides = [1, 1]} : vector<8x101xf32> to vector<8x1xf32>
    %1601 = vector.extract_strided_slice %1593 {offsets = [1, 0], sizes = [1, 256], strides = [1, 1]} : vector<4x256xf32> to vector<1x256xf32>
    %1602 = vector.broadcast %1600 : vector<8x1xf32> to vector<8x256xf32>
    %1603 = vector.broadcast %1601 : vector<1x256xf32> to vector<8x256xf32>
    %1604 = arith.mulf %1602, %1603 : vector<8x256xf32>
    %1605 = arith.addf %1599, %1604 : vector<8x256xf32>
    %1606 = vector.extract_strided_slice %7 {offsets = [0, 90], sizes = [8, 1], strides = [1, 1]} : vector<8x101xf32> to vector<8x1xf32>
    %1607 = vector.extract_strided_slice %1593 {offsets = [2, 0], sizes = [1, 256], strides = [1, 1]} : vector<4x256xf32> to vector<1x256xf32>
    %1608 = vector.broadcast %1606 : vector<8x1xf32> to vector<8x256xf32>
    %1609 = vector.broadcast %1607 : vector<1x256xf32> to vector<8x256xf32>
    %1610 = arith.mulf %1608, %1609 : vector<8x256xf32>
    %1611 = arith.addf %1605, %1610 : vector<8x256xf32>
    %1612 = vector.extract_strided_slice %7 {offsets = [0, 91], sizes = [8, 1], strides = [1, 1]} : vector<8x101xf32> to vector<8x1xf32>
    %1613 = vector.extract_strided_slice %1593 {offsets = [3, 0], sizes = [1, 256], strides = [1, 1]} : vector<4x256xf32> to vector<1x256xf32>
    %1614 = vector.broadcast %1612 : vector<8x1xf32> to vector<8x256xf32>
    %1615 = vector.broadcast %1613 : vector<1x256xf32> to vector<8x256xf32>
    %1616 = arith.mulf %1614, %1615 : vector<8x256xf32>
    %1617 = arith.addf %1611, %1616 : vector<8x256xf32>
    %1618 = vector.extract_strided_slice %866 {offsets = [0, 161], sizes = [4, 256], strides = [1, 1]} : vector<4x512xf32> to vector<4x256xf32>
    %c15_i32_114 = arith.constant 15 : i32
    %1619 = vector.broadcast %c15_i32_114 : i32 to vector<1x256xi32>
    %1620 = arith.cmpi slt, %4, %1619 : vector<1x256xi32>
    %c224_i32_115 = arith.constant 224 : i32
    %1621 = vector.broadcast %c224_i32_115 : i32 to vector<1x256xi32>
    %1622 = arith.cmpi slt, %2, %1621 : vector<1x256xi32>
    %1623 = arith.andi %1620, %1622 : vector<1x256xi1>
    %cst_116 = arith.constant 0.000000e+00 : f32
    %1624 = vector.shape_cast %1623 : vector<1x256xi1> to vector<1x256xi1>
    %1625 = vector.broadcast %1624 : vector<1x256xi1> to vector<4x256xi1>
    %1626 = vector.broadcast %cst_116 : f32 to vector<4x256xf32>
    %1627 = arith.select %1625, %1618, %1626 : vector<4x256xi1>, vector<4x256xf32>
    %1628 = vector.extract_strided_slice %7 {offsets = [0, 92], sizes = [8, 1], strides = [1, 1]} : vector<8x101xf32> to vector<8x1xf32>
    %1629 = vector.extract_strided_slice %1627 {offsets = [0, 0], sizes = [1, 256], strides = [1, 1]} : vector<4x256xf32> to vector<1x256xf32>
    %1630 = vector.broadcast %1628 : vector<8x1xf32> to vector<8x256xf32>
    %1631 = vector.broadcast %1629 : vector<1x256xf32> to vector<8x256xf32>
    %1632 = arith.mulf %1630, %1631 : vector<8x256xf32>
    %1633 = arith.addf %1617, %1632 : vector<8x256xf32>
    %1634 = vector.extract_strided_slice %7 {offsets = [0, 93], sizes = [8, 1], strides = [1, 1]} : vector<8x101xf32> to vector<8x1xf32>
    %1635 = vector.extract_strided_slice %1627 {offsets = [1, 0], sizes = [1, 256], strides = [1, 1]} : vector<4x256xf32> to vector<1x256xf32>
    %1636 = vector.broadcast %1634 : vector<8x1xf32> to vector<8x256xf32>
    %1637 = vector.broadcast %1635 : vector<1x256xf32> to vector<8x256xf32>
    %1638 = arith.mulf %1636, %1637 : vector<8x256xf32>
    %1639 = arith.addf %1633, %1638 : vector<8x256xf32>
    %1640 = vector.extract_strided_slice %7 {offsets = [0, 94], sizes = [8, 1], strides = [1, 1]} : vector<8x101xf32> to vector<8x1xf32>
    %1641 = vector.extract_strided_slice %1627 {offsets = [2, 0], sizes = [1, 256], strides = [1, 1]} : vector<4x256xf32> to vector<1x256xf32>
    %1642 = vector.broadcast %1640 : vector<8x1xf32> to vector<8x256xf32>
    %1643 = vector.broadcast %1641 : vector<1x256xf32> to vector<8x256xf32>
    %1644 = arith.mulf %1642, %1643 : vector<8x256xf32>
    %1645 = arith.addf %1639, %1644 : vector<8x256xf32>
    %1646 = vector.extract_strided_slice %7 {offsets = [0, 95], sizes = [8, 1], strides = [1, 1]} : vector<8x101xf32> to vector<8x1xf32>
    %1647 = vector.extract_strided_slice %1627 {offsets = [3, 0], sizes = [1, 256], strides = [1, 1]} : vector<4x256xf32> to vector<1x256xf32>
    %1648 = vector.broadcast %1646 : vector<8x1xf32> to vector<8x256xf32>
    %1649 = vector.broadcast %1647 : vector<1x256xf32> to vector<8x256xf32>
    %1650 = arith.mulf %1648, %1649 : vector<8x256xf32>
    %1651 = arith.addf %1645, %1650 : vector<8x256xf32>
    %1652 = vector.extract_strided_slice %866 {offsets = [0, 162], sizes = [4, 256], strides = [1, 1]} : vector<4x512xf32> to vector<4x256xf32>
    %c14_i32_117 = arith.constant 14 : i32
    %1653 = vector.broadcast %c14_i32_117 : i32 to vector<1x256xi32>
    %1654 = arith.cmpi slt, %4, %1653 : vector<1x256xi32>
    %c224_i32_118 = arith.constant 224 : i32
    %1655 = vector.broadcast %c224_i32_118 : i32 to vector<1x256xi32>
    %1656 = arith.cmpi slt, %2, %1655 : vector<1x256xi32>
    %1657 = arith.andi %1654, %1656 : vector<1x256xi1>
    %cst_119 = arith.constant 0.000000e+00 : f32
    %1658 = vector.shape_cast %1657 : vector<1x256xi1> to vector<1x256xi1>
    %1659 = vector.broadcast %1658 : vector<1x256xi1> to vector<4x256xi1>
    %1660 = vector.broadcast %cst_119 : f32 to vector<4x256xf32>
    %1661 = arith.select %1659, %1652, %1660 : vector<4x256xi1>, vector<4x256xf32>
    %1662 = vector.extract_strided_slice %7 {offsets = [0, 96], sizes = [8, 1], strides = [1, 1]} : vector<8x101xf32> to vector<8x1xf32>
    %1663 = vector.extract_strided_slice %1661 {offsets = [0, 0], sizes = [1, 256], strides = [1, 1]} : vector<4x256xf32> to vector<1x256xf32>
    %1664 = vector.broadcast %1662 : vector<8x1xf32> to vector<8x256xf32>
    %1665 = vector.broadcast %1663 : vector<1x256xf32> to vector<8x256xf32>
    %1666 = arith.mulf %1664, %1665 : vector<8x256xf32>
    %1667 = arith.addf %1651, %1666 : vector<8x256xf32>
    %1668 = vector.extract_strided_slice %7 {offsets = [0, 97], sizes = [8, 1], strides = [1, 1]} : vector<8x101xf32> to vector<8x1xf32>
    %1669 = vector.extract_strided_slice %1661 {offsets = [1, 0], sizes = [1, 256], strides = [1, 1]} : vector<4x256xf32> to vector<1x256xf32>
    %1670 = vector.broadcast %1668 : vector<8x1xf32> to vector<8x256xf32>
    %1671 = vector.broadcast %1669 : vector<1x256xf32> to vector<8x256xf32>
    %1672 = arith.mulf %1670, %1671 : vector<8x256xf32>
    %1673 = arith.addf %1667, %1672 : vector<8x256xf32>
    %1674 = vector.extract_strided_slice %7 {offsets = [0, 98], sizes = [8, 1], strides = [1, 1]} : vector<8x101xf32> to vector<8x1xf32>
    %1675 = vector.extract_strided_slice %1661 {offsets = [2, 0], sizes = [1, 256], strides = [1, 1]} : vector<4x256xf32> to vector<1x256xf32>
    %1676 = vector.broadcast %1674 : vector<8x1xf32> to vector<8x256xf32>
    %1677 = vector.broadcast %1675 : vector<1x256xf32> to vector<8x256xf32>
    %1678 = arith.mulf %1676, %1677 : vector<8x256xf32>
    %1679 = arith.addf %1673, %1678 : vector<8x256xf32>
    %1680 = vector.extract_strided_slice %7 {offsets = [0, 99], sizes = [8, 1], strides = [1, 1]} : vector<8x101xf32> to vector<8x1xf32>
    %1681 = vector.extract_strided_slice %1661 {offsets = [3, 0], sizes = [1, 256], strides = [1, 1]} : vector<4x256xf32> to vector<1x256xf32>
    %1682 = vector.broadcast %1680 : vector<8x1xf32> to vector<8x256xf32>
    %1683 = vector.broadcast %1681 : vector<1x256xf32> to vector<8x256xf32>
    %1684 = arith.mulf %1682, %1683 : vector<8x256xf32>
    %1685 = arith.addf %1679, %1684 : vector<8x256xf32>
    %cst_120 = arith.constant 0.000000e+00 : f32
    %1686 = vector.broadcast %cst_120 : f32 to vector<8x256xf32>
    %1687 = arith.maximumf %1685, %1686 : vector<8x256xf32>
    %1688 = vector.extract_strided_slice %10 {offsets = [0, 8], sizes = [4, 1], strides = [1, 1]} : vector<4x9xf32> to vector<4x1xf32>
    %1689 = vector.shape_cast %1688 : vector<4x1xf32> to vector<4x1xf32>
    %1690 = vector.broadcast %1689 : vector<4x1xf32> to vector<4x256xf32>
    %1691 = vector.extract_strided_slice %10 {offsets = [0, 0], sizes = [4, 1], strides = [1, 1]} : vector<4x9xf32> to vector<4x1xf32>
    %1692 = vector.extract_strided_slice %1687 {offsets = [0, 0], sizes = [1, 256], strides = [1, 1]} : vector<8x256xf32> to vector<1x256xf32>
    %1693 = vector.broadcast %1691 : vector<4x1xf32> to vector<4x256xf32>
    %1694 = vector.broadcast %1692 : vector<1x256xf32> to vector<4x256xf32>
    %1695 = arith.mulf %1693, %1694 : vector<4x256xf32>
    %1696 = arith.addf %1690, %1695 : vector<4x256xf32>
    %1697 = vector.extract_strided_slice %10 {offsets = [0, 1], sizes = [4, 1], strides = [1, 1]} : vector<4x9xf32> to vector<4x1xf32>
    %1698 = vector.extract_strided_slice %1687 {offsets = [1, 0], sizes = [1, 256], strides = [1, 1]} : vector<8x256xf32> to vector<1x256xf32>
    %1699 = vector.broadcast %1697 : vector<4x1xf32> to vector<4x256xf32>
    %1700 = vector.broadcast %1698 : vector<1x256xf32> to vector<4x256xf32>
    %1701 = arith.mulf %1699, %1700 : vector<4x256xf32>
    %1702 = arith.addf %1696, %1701 : vector<4x256xf32>
    %1703 = vector.extract_strided_slice %10 {offsets = [0, 2], sizes = [4, 1], strides = [1, 1]} : vector<4x9xf32> to vector<4x1xf32>
    %1704 = vector.extract_strided_slice %1687 {offsets = [2, 0], sizes = [1, 256], strides = [1, 1]} : vector<8x256xf32> to vector<1x256xf32>
    %1705 = vector.broadcast %1703 : vector<4x1xf32> to vector<4x256xf32>
    %1706 = vector.broadcast %1704 : vector<1x256xf32> to vector<4x256xf32>
    %1707 = arith.mulf %1705, %1706 : vector<4x256xf32>
    %1708 = arith.addf %1702, %1707 : vector<4x256xf32>
    %1709 = vector.extract_strided_slice %10 {offsets = [0, 3], sizes = [4, 1], strides = [1, 1]} : vector<4x9xf32> to vector<4x1xf32>
    %1710 = vector.extract_strided_slice %1687 {offsets = [3, 0], sizes = [1, 256], strides = [1, 1]} : vector<8x256xf32> to vector<1x256xf32>
    %1711 = vector.broadcast %1709 : vector<4x1xf32> to vector<4x256xf32>
    %1712 = vector.broadcast %1710 : vector<1x256xf32> to vector<4x256xf32>
    %1713 = arith.mulf %1711, %1712 : vector<4x256xf32>
    %1714 = arith.addf %1708, %1713 : vector<4x256xf32>
    %1715 = vector.extract_strided_slice %10 {offsets = [0, 4], sizes = [4, 1], strides = [1, 1]} : vector<4x9xf32> to vector<4x1xf32>
    %1716 = vector.extract_strided_slice %1687 {offsets = [4, 0], sizes = [1, 256], strides = [1, 1]} : vector<8x256xf32> to vector<1x256xf32>
    %1717 = vector.broadcast %1715 : vector<4x1xf32> to vector<4x256xf32>
    %1718 = vector.broadcast %1716 : vector<1x256xf32> to vector<4x256xf32>
    %1719 = arith.mulf %1717, %1718 : vector<4x256xf32>
    %1720 = arith.addf %1714, %1719 : vector<4x256xf32>
    %1721 = vector.extract_strided_slice %10 {offsets = [0, 5], sizes = [4, 1], strides = [1, 1]} : vector<4x9xf32> to vector<4x1xf32>
    %1722 = vector.extract_strided_slice %1687 {offsets = [5, 0], sizes = [1, 256], strides = [1, 1]} : vector<8x256xf32> to vector<1x256xf32>
    %1723 = vector.broadcast %1721 : vector<4x1xf32> to vector<4x256xf32>
    %1724 = vector.broadcast %1722 : vector<1x256xf32> to vector<4x256xf32>
    %1725 = arith.mulf %1723, %1724 : vector<4x256xf32>
    %1726 = arith.addf %1720, %1725 : vector<4x256xf32>
    %1727 = vector.extract_strided_slice %10 {offsets = [0, 6], sizes = [4, 1], strides = [1, 1]} : vector<4x9xf32> to vector<4x1xf32>
    %1728 = vector.extract_strided_slice %1687 {offsets = [6, 0], sizes = [1, 256], strides = [1, 1]} : vector<8x256xf32> to vector<1x256xf32>
    %1729 = vector.broadcast %1727 : vector<4x1xf32> to vector<4x256xf32>
    %1730 = vector.broadcast %1728 : vector<1x256xf32> to vector<4x256xf32>
    %1731 = arith.mulf %1729, %1730 : vector<4x256xf32>
    %1732 = arith.addf %1726, %1731 : vector<4x256xf32>
    %1733 = vector.extract_strided_slice %10 {offsets = [0, 7], sizes = [4, 1], strides = [1, 1]} : vector<4x9xf32> to vector<4x1xf32>
    %1734 = vector.extract_strided_slice %1687 {offsets = [7, 0], sizes = [1, 256], strides = [1, 1]} : vector<8x256xf32> to vector<1x256xf32>
    %1735 = vector.broadcast %1733 : vector<4x1xf32> to vector<4x256xf32>
    %1736 = vector.broadcast %1734 : vector<1x256xf32> to vector<4x256xf32>
    %1737 = arith.mulf %1735, %1736 : vector<4x256xf32>
    %1738 = arith.addf %1732, %1737 : vector<4x256xf32>
    %1739 = arith.addf %1738, %1 : vector<4x256xf32>
    %cst_121 = arith.constant 0.000000e+00 : f32
    %1740 = vector.broadcast %cst_121 : f32 to vector<4x256xf32>
    %1741 = arith.maximumf %1739, %1740 : vector<4x256xf32>
    %1742 = vector.extract_strided_slice %8 {offsets = [0, 4], sizes = [4, 1], strides = [1, 1]} : vector<4x5xf32> to vector<4x1xf32>
    %1743 = vector.shape_cast %1742 : vector<4x1xf32> to vector<4x1xf32>
    %1744 = vector.broadcast %1743 : vector<4x1xf32> to vector<4x256xf32>
    %1745 = vector.extract_strided_slice %8 {offsets = [0, 0], sizes = [4, 1], strides = [1, 1]} : vector<4x5xf32> to vector<4x1xf32>
    %1746 = vector.extract_strided_slice %1 {offsets = [0, 0], sizes = [1, 256], strides = [1, 1]} : vector<4x256xf32> to vector<1x256xf32>
    %1747 = vector.broadcast %1745 : vector<4x1xf32> to vector<4x256xf32>
    %1748 = vector.broadcast %1746 : vector<1x256xf32> to vector<4x256xf32>
    %1749 = arith.mulf %1747, %1748 : vector<4x256xf32>
    %1750 = arith.addf %1744, %1749 : vector<4x256xf32>
    %1751 = vector.extract_strided_slice %8 {offsets = [0, 1], sizes = [4, 1], strides = [1, 1]} : vector<4x5xf32> to vector<4x1xf32>
    %1752 = vector.extract_strided_slice %1 {offsets = [1, 0], sizes = [1, 256], strides = [1, 1]} : vector<4x256xf32> to vector<1x256xf32>
    %1753 = vector.broadcast %1751 : vector<4x1xf32> to vector<4x256xf32>
    %1754 = vector.broadcast %1752 : vector<1x256xf32> to vector<4x256xf32>
    %1755 = arith.mulf %1753, %1754 : vector<4x256xf32>
    %1756 = arith.addf %1750, %1755 : vector<4x256xf32>
    %1757 = vector.extract_strided_slice %8 {offsets = [0, 2], sizes = [4, 1], strides = [1, 1]} : vector<4x5xf32> to vector<4x1xf32>
    %1758 = vector.extract_strided_slice %1 {offsets = [2, 0], sizes = [1, 256], strides = [1, 1]} : vector<4x256xf32> to vector<1x256xf32>
    %1759 = vector.broadcast %1757 : vector<4x1xf32> to vector<4x256xf32>
    %1760 = vector.broadcast %1758 : vector<1x256xf32> to vector<4x256xf32>
    %1761 = arith.mulf %1759, %1760 : vector<4x256xf32>
    %1762 = arith.addf %1756, %1761 : vector<4x256xf32>
    %1763 = vector.extract_strided_slice %8 {offsets = [0, 3], sizes = [4, 1], strides = [1, 1]} : vector<4x5xf32> to vector<4x1xf32>
    %1764 = vector.extract_strided_slice %1 {offsets = [3, 0], sizes = [1, 256], strides = [1, 1]} : vector<4x256xf32> to vector<1x256xf32>
    %1765 = vector.broadcast %1763 : vector<4x1xf32> to vector<4x256xf32>
    %1766 = vector.broadcast %1764 : vector<1x256xf32> to vector<4x256xf32>
    %1767 = arith.mulf %1765, %1766 : vector<4x256xf32>
    %1768 = arith.addf %1762, %1767 : vector<4x256xf32>
    %1769 = vector.extract_strided_slice %11 {offsets = [0, 12], sizes = [4, 1], strides = [1, 1]} : vector<4x13xf32> to vector<4x1xf32>
    %1770 = vector.shape_cast %1769 : vector<4x1xf32> to vector<4x1xf32>
    %1771 = vector.broadcast %1770 : vector<4x1xf32> to vector<4x256xf32>
    %1772 = vector.extract_strided_slice %11 {offsets = [0, 0], sizes = [4, 1], strides = [1, 1]} : vector<4x13xf32> to vector<4x1xf32>
    %1773 = vector.extract_strided_slice %864 {offsets = [0, 0], sizes = [1, 256], strides = [1, 1]} : vector<4x256xf32> to vector<1x256xf32>
    %1774 = vector.broadcast %1772 : vector<4x1xf32> to vector<4x256xf32>
    %1775 = vector.broadcast %1773 : vector<1x256xf32> to vector<4x256xf32>
    %1776 = arith.mulf %1774, %1775 : vector<4x256xf32>
    %1777 = arith.addf %1771, %1776 : vector<4x256xf32>
    %1778 = vector.extract_strided_slice %11 {offsets = [0, 1], sizes = [4, 1], strides = [1, 1]} : vector<4x13xf32> to vector<4x1xf32>
    %1779 = vector.extract_strided_slice %864 {offsets = [1, 0], sizes = [1, 256], strides = [1, 1]} : vector<4x256xf32> to vector<1x256xf32>
    %1780 = vector.broadcast %1778 : vector<4x1xf32> to vector<4x256xf32>
    %1781 = vector.broadcast %1779 : vector<1x256xf32> to vector<4x256xf32>
    %1782 = arith.mulf %1780, %1781 : vector<4x256xf32>
    %1783 = arith.addf %1777, %1782 : vector<4x256xf32>
    %1784 = vector.extract_strided_slice %11 {offsets = [0, 2], sizes = [4, 1], strides = [1, 1]} : vector<4x13xf32> to vector<4x1xf32>
    %1785 = vector.extract_strided_slice %864 {offsets = [2, 0], sizes = [1, 256], strides = [1, 1]} : vector<4x256xf32> to vector<1x256xf32>
    %1786 = vector.broadcast %1784 : vector<4x1xf32> to vector<4x256xf32>
    %1787 = vector.broadcast %1785 : vector<1x256xf32> to vector<4x256xf32>
    %1788 = arith.mulf %1786, %1787 : vector<4x256xf32>
    %1789 = arith.addf %1783, %1788 : vector<4x256xf32>
    %1790 = vector.extract_strided_slice %11 {offsets = [0, 3], sizes = [4, 1], strides = [1, 1]} : vector<4x13xf32> to vector<4x1xf32>
    %1791 = vector.extract_strided_slice %864 {offsets = [3, 0], sizes = [1, 256], strides = [1, 1]} : vector<4x256xf32> to vector<1x256xf32>
    %1792 = vector.broadcast %1790 : vector<4x1xf32> to vector<4x256xf32>
    %1793 = vector.broadcast %1791 : vector<1x256xf32> to vector<4x256xf32>
    %1794 = arith.mulf %1792, %1793 : vector<4x256xf32>
    %1795 = arith.addf %1789, %1794 : vector<4x256xf32>
    %1796 = vector.extract_strided_slice %11 {offsets = [0, 4], sizes = [4, 1], strides = [1, 1]} : vector<4x13xf32> to vector<4x1xf32>
    %1797 = vector.extract_strided_slice %1741 {offsets = [0, 0], sizes = [1, 256], strides = [1, 1]} : vector<4x256xf32> to vector<1x256xf32>
    %1798 = vector.broadcast %1796 : vector<4x1xf32> to vector<4x256xf32>
    %1799 = vector.broadcast %1797 : vector<1x256xf32> to vector<4x256xf32>
    %1800 = arith.mulf %1798, %1799 : vector<4x256xf32>
    %1801 = arith.addf %1795, %1800 : vector<4x256xf32>
    %1802 = vector.extract_strided_slice %11 {offsets = [0, 5], sizes = [4, 1], strides = [1, 1]} : vector<4x13xf32> to vector<4x1xf32>
    %1803 = vector.extract_strided_slice %1741 {offsets = [1, 0], sizes = [1, 256], strides = [1, 1]} : vector<4x256xf32> to vector<1x256xf32>
    %1804 = vector.broadcast %1802 : vector<4x1xf32> to vector<4x256xf32>
    %1805 = vector.broadcast %1803 : vector<1x256xf32> to vector<4x256xf32>
    %1806 = arith.mulf %1804, %1805 : vector<4x256xf32>
    %1807 = arith.addf %1801, %1806 : vector<4x256xf32>
    %1808 = vector.extract_strided_slice %11 {offsets = [0, 6], sizes = [4, 1], strides = [1, 1]} : vector<4x13xf32> to vector<4x1xf32>
    %1809 = vector.extract_strided_slice %1741 {offsets = [2, 0], sizes = [1, 256], strides = [1, 1]} : vector<4x256xf32> to vector<1x256xf32>
    %1810 = vector.broadcast %1808 : vector<4x1xf32> to vector<4x256xf32>
    %1811 = vector.broadcast %1809 : vector<1x256xf32> to vector<4x256xf32>
    %1812 = arith.mulf %1810, %1811 : vector<4x256xf32>
    %1813 = arith.addf %1807, %1812 : vector<4x256xf32>
    %1814 = vector.extract_strided_slice %11 {offsets = [0, 7], sizes = [4, 1], strides = [1, 1]} : vector<4x13xf32> to vector<4x1xf32>
    %1815 = vector.extract_strided_slice %1741 {offsets = [3, 0], sizes = [1, 256], strides = [1, 1]} : vector<4x256xf32> to vector<1x256xf32>
    %1816 = vector.broadcast %1814 : vector<4x1xf32> to vector<4x256xf32>
    %1817 = vector.broadcast %1815 : vector<1x256xf32> to vector<4x256xf32>
    %1818 = arith.mulf %1816, %1817 : vector<4x256xf32>
    %1819 = arith.addf %1813, %1818 : vector<4x256xf32>
    %1820 = vector.extract_strided_slice %11 {offsets = [0, 8], sizes = [4, 1], strides = [1, 1]} : vector<4x13xf32> to vector<4x1xf32>
    %1821 = vector.extract_strided_slice %1768 {offsets = [0, 0], sizes = [1, 256], strides = [1, 1]} : vector<4x256xf32> to vector<1x256xf32>
    %1822 = vector.broadcast %1820 : vector<4x1xf32> to vector<4x256xf32>
    %1823 = vector.broadcast %1821 : vector<1x256xf32> to vector<4x256xf32>
    %1824 = arith.mulf %1822, %1823 : vector<4x256xf32>
    %1825 = arith.addf %1819, %1824 : vector<4x256xf32>
    %1826 = vector.extract_strided_slice %11 {offsets = [0, 9], sizes = [4, 1], strides = [1, 1]} : vector<4x13xf32> to vector<4x1xf32>
    %1827 = vector.extract_strided_slice %1768 {offsets = [1, 0], sizes = [1, 256], strides = [1, 1]} : vector<4x256xf32> to vector<1x256xf32>
    %1828 = vector.broadcast %1826 : vector<4x1xf32> to vector<4x256xf32>
    %1829 = vector.broadcast %1827 : vector<1x256xf32> to vector<4x256xf32>
    %1830 = arith.mulf %1828, %1829 : vector<4x256xf32>
    %1831 = arith.addf %1825, %1830 : vector<4x256xf32>
    %1832 = vector.extract_strided_slice %11 {offsets = [0, 10], sizes = [4, 1], strides = [1, 1]} : vector<4x13xf32> to vector<4x1xf32>
    %1833 = vector.extract_strided_slice %1768 {offsets = [2, 0], sizes = [1, 256], strides = [1, 1]} : vector<4x256xf32> to vector<1x256xf32>
    %1834 = vector.broadcast %1832 : vector<4x1xf32> to vector<4x256xf32>
    %1835 = vector.broadcast %1833 : vector<1x256xf32> to vector<4x256xf32>
    %1836 = arith.mulf %1834, %1835 : vector<4x256xf32>
    %1837 = arith.addf %1831, %1836 : vector<4x256xf32>
    %1838 = vector.extract_strided_slice %11 {offsets = [0, 11], sizes = [4, 1], strides = [1, 1]} : vector<4x13xf32> to vector<4x1xf32>
    %1839 = vector.extract_strided_slice %1768 {offsets = [3, 0], sizes = [1, 256], strides = [1, 1]} : vector<4x256xf32> to vector<1x256xf32>
    %1840 = vector.broadcast %1838 : vector<4x1xf32> to vector<4x256xf32>
    %1841 = vector.broadcast %1839 : vector<1x256xf32> to vector<4x256xf32>
    %1842 = arith.mulf %1840, %1841 : vector<4x256xf32>
    %1843 = arith.addf %1837, %1842 : vector<4x256xf32>
    %1844 = arith.addf %1843, %1 : vector<4x256xf32>
    %cst_122 = arith.constant 0.000000e+00 : f32
    %1845 = vector.broadcast %cst_122 : f32 to vector<4x256xf32>
    %1846 = arith.maximumf %1844, %1845 : vector<4x256xf32>
    %1847 = vector.extract_strided_slice %12 {offsets = [0, 4], sizes = [8, 1], strides = [1, 1]} : vector<8x5xf32> to vector<8x1xf32>
    %1848 = vector.shape_cast %1847 : vector<8x1xf32> to vector<8x1xf32>
    %1849 = vector.broadcast %1848 : vector<8x1xf32> to vector<8x256xf32>
    %1850 = vector.extract_strided_slice %12 {offsets = [0, 0], sizes = [8, 1], strides = [1, 1]} : vector<8x5xf32> to vector<8x1xf32>
    %1851 = vector.extract_strided_slice %1846 {offsets = [0, 0], sizes = [1, 256], strides = [1, 1]} : vector<4x256xf32> to vector<1x256xf32>
    %1852 = vector.broadcast %1850 : vector<8x1xf32> to vector<8x256xf32>
    %1853 = vector.broadcast %1851 : vector<1x256xf32> to vector<8x256xf32>
    %1854 = arith.mulf %1852, %1853 : vector<8x256xf32>
    %1855 = arith.addf %1849, %1854 : vector<8x256xf32>
    %1856 = vector.extract_strided_slice %12 {offsets = [0, 1], sizes = [8, 1], strides = [1, 1]} : vector<8x5xf32> to vector<8x1xf32>
    %1857 = vector.extract_strided_slice %1846 {offsets = [1, 0], sizes = [1, 256], strides = [1, 1]} : vector<4x256xf32> to vector<1x256xf32>
    %1858 = vector.broadcast %1856 : vector<8x1xf32> to vector<8x256xf32>
    %1859 = vector.broadcast %1857 : vector<1x256xf32> to vector<8x256xf32>
    %1860 = arith.mulf %1858, %1859 : vector<8x256xf32>
    %1861 = arith.addf %1855, %1860 : vector<8x256xf32>
    %1862 = vector.extract_strided_slice %12 {offsets = [0, 2], sizes = [8, 1], strides = [1, 1]} : vector<8x5xf32> to vector<8x1xf32>
    %1863 = vector.extract_strided_slice %1846 {offsets = [2, 0], sizes = [1, 256], strides = [1, 1]} : vector<4x256xf32> to vector<1x256xf32>
    %1864 = vector.broadcast %1862 : vector<8x1xf32> to vector<8x256xf32>
    %1865 = vector.broadcast %1863 : vector<1x256xf32> to vector<8x256xf32>
    %1866 = arith.mulf %1864, %1865 : vector<8x256xf32>
    %1867 = arith.addf %1861, %1866 : vector<8x256xf32>
    %1868 = vector.extract_strided_slice %12 {offsets = [0, 3], sizes = [8, 1], strides = [1, 1]} : vector<8x5xf32> to vector<8x1xf32>
    %1869 = vector.extract_strided_slice %1846 {offsets = [3, 0], sizes = [1, 256], strides = [1, 1]} : vector<4x256xf32> to vector<1x256xf32>
    %1870 = vector.broadcast %1868 : vector<8x1xf32> to vector<8x256xf32>
    %1871 = vector.broadcast %1869 : vector<1x256xf32> to vector<8x256xf32>
    %1872 = arith.mulf %1870, %1871 : vector<8x256xf32>
    %1873 = arith.addf %1867, %1872 : vector<8x256xf32>
    %c0_123 = arith.constant 0 : index
    %c0_124 = arith.constant 0 : index
    %c0_125 = arith.constant 0 : index
    %1874 = vector.load %arg10[%c0_123, %c0_124, %c0_125] : memref<1x8x256xf32, #tpu.memory_space<vmem>>, vector<1x8x256xf32>
    %1875 = vector.shape_cast %1874 : vector<1x8x256xf32> to vector<8x256xf32>
    %1876 = vector.shape_cast %1873 : vector<8x256xf32> to vector<1x8x256xf32>
    tpu.vector_store %arg10[%c0_123, %c0_124, %c0_125], %1876 {strides = array<i32>} : memref<1x8x256xf32, #tpu.memory_space<vmem>>, vector<1x8x256xf32>,
    return
  }
  func.func @transform_0(%arg0: i32) -> (i32, i32, i32) {
    %c0_i32 = arith.constant 0 : i32
    %c0_i32_0 = arith.constant 0 : i32
    %c0_i32_1 = arith.constant 0 : i32
    return %arg0, %c0_i32, %c0_i32_0 : i32, i32, i32
  }
  func.func @transform_1(%arg0: i32) -> (i32, i32) {
    %c0_i32 = arith.constant 0 : i32
    %c0_i32_0 = arith.constant 0 : i32
    %c0_i32_1 = arith.constant 0 : i32
    return %c0_i32, %c0_i32_0 : i32, i32
  }
  func.func @transform_2(%arg0: i32) -> (i32, i32) {
    %c0_i32 = arith.constant 0 : i32
    %c0_i32_0 = arith.constant 0 : i32
    %c0_i32_1 = arith.constant 0 : i32
    return %c0_i32, %c0_i32_0 : i32, i32
  }
  func.func @transform_3(%arg0: i32) -> (i32, i32) {
    %c0_i32 = arith.constant 0 : i32
    %c0_i32_0 = arith.constant 0 : i32
    %c0_i32_1 = arith.constant 0 : i32
    return %c0_i32, %c0_i32_0 : i32, i32
  }
  func.func @transform_4(%arg0: i32) -> (i32, i32) {
    %c0_i32 = arith.constant 0 : i32
    %c0_i32_0 = arith.constant 0 : i32
    %c0_i32_1 = arith.constant 0 : i32
    return %c0_i32, %c0_i32_0 : i32, i32
  }
  func.func @transform_5(%arg0: i32) -> (i32, i32) {
    %c0_i32 = arith.constant 0 : i32
    %c0_i32_0 = arith.constant 0 : i32
    %c0_i32_1 = arith.constant 0 : i32
    return %c0_i32, %c0_i32_0 : i32, i32
  }
  func.func @transform_6(%arg0: i32) -> (i32, i32) {
    %c0_i32 = arith.constant 0 : i32
    %c0_i32_0 = arith.constant 0 : i32
    %c0_i32_1 = arith.constant 0 : i32
    return %c0_i32, %c0_i32_0 : i32, i32
  }
  func.func @transform_7(%arg0: i32) -> (i32, i32) {
    %c0_i32 = arith.constant 0 : i32
    %c0_i32_0 = arith.constant 0 : i32
    %c0_i32_1 = arith.constant 0 : i32
    return %c0_i32, %c0_i32_0 : i32, i32
  }
  func.func @transform_8(%arg0: i32) -> (i32, i32) {
    %c0_i32 = arith.constant 0 : i32
    %c0_i32_0 = arith.constant 0 : i32
    %c0_i32_1 = arith.constant 0 : i32
    return %c0_i32, %c0_i32_0 : i32, i32
  }
  func.func @transform_9(%arg0: i32) -> (i32, i32, i32) {
    %c0_i32 = arith.constant 0 : i32
    %c0_i32_0 = arith.constant 0 : i32
    %c0_i32_1 = arith.constant 0 : i32
    return %arg0, %c0_i32, %c0_i32_0 : i32, i32, i32
  }
}

</mosaic_0001>

<llo_original>
// kernel: twobranches_conv.1
$region0: #{twobranches_conv.1}
  #allocation0 [shape = 'u32[]', space=smem, size = 0x4, offset = 0x4, fixed_abs, tag = 'smem constant byte address 0x4 - core index']
  #allocation1 [shape = 'u32[72,128]{1,0:T(1,128)}', space=vmem, size = 0x9000, scoped, tag = 'internal scratch']
  %s0 = inlined_call_operand.vmem [shape: f32[2,4,256], index: 0, kind: input, shape index: {}]
  %s1 = inlined_call_operand.vmem [shape: f32[8,37], index: 1, kind: input, shape index: {}]
  %s2 = inlined_call_operand.vmem [shape: f32[8,73], index: 2, kind: input, shape index: {}]
  %s3 = inlined_call_operand.vmem [shape: f32[8,101], index: 3, kind: input, shape index: {}]
  %s4 = inlined_call_operand.vmem [shape: f32[4,5], index: 4, kind: input, shape index: {}]
  %s5 = inlined_call_operand.vmem [shape: f32[4,9], index: 5, kind: input, shape index: {}]
  %s6 = inlined_call_operand.vmem [shape: f32[4,9], index: 6, kind: input, shape index: {}]
  %s7 = inlined_call_operand.vmem [shape: f32[4,13], index: 7, kind: input, shape index: {}]
  %s8 = inlined_call_operand.vmem [shape: f32[8,5], index: 8, kind: input, shape index: {}]
  %s9 = inlined_call_operand.vmem [shape: f32[2,8,256], index: 9, kind: output, shape index: {}]
  %s10 = sld [smem:[#allocation0]]
  $region69: #{twobranches_conv.1} parent=0
    _
  %s12 = ssub.s32 1, %s10
  %s13 = scalar_select 0, %s12, %s10
  loop: start=0, step=1, limit=4
  $region2: #{twobranches_conv.1} parent=0 // loop_pre_header
    _
  $region3: #{twobranches_conv.1} parent=0 // loop_header
    %s15 = sphi 0, %s19
    %p16 = scmp.ge.s32.totalorder %s15, 4
    %s25 = sphi 0, %s27
    %s28 = sphi 0, %s25
    %s29 = sphi 0, %s28
    %s45 = sphi 0, %s29
    %s49 = sphi 0, %s49
    %s51 = sphi 0, %s49
    %s52 = sphi 0, %s51
    %s66 = sphi 0, %s52
    %s70 = sphi 0, %s70
    %s72 = sphi 0, %s70
    %s73 = sphi 0, %s72
    %s87 = sphi 0, %s73
    %s91 = sphi 0, %s91
    %s93 = sphi 0, %s91
    %s94 = sphi 0, %s93
    %s108 = sphi 0, %s94
    %s112 = sphi 0, %s112
    %s114 = sphi 0, %s112
    %s115 = sphi 0, %s114
    %s129 = sphi 0, %s115
    %s133 = sphi 0, %s133
    %s135 = sphi 0, %s133
    %s136 = sphi 0, %s135
    %s150 = sphi 0, %s136
    %s154 = sphi 0, %s154
    %s156 = sphi 0, %s154
    %s157 = sphi 0, %s156
    %s171 = sphi 0, %s157
    %s175 = sphi 0, %s175
    %s177 = sphi 0, %s175
    %s178 = sphi 0, %s177
    %s192 = sphi 0, %s178
    %s196 = sphi 0, %s196
    %s198 = sphi 0, %s196
    %s199 = sphi 0, %s198
    %s213 = sphi 0, %s199
    %s219 = sphi 0, %s221
    %s222 = sphi 0, %s219
    %s223 = sphi 0, %s222
    %s239 = sphi 0, %s223
  $region4: #{twobranches_conv.1} parent=0 // loop_header_branch
    %18 = sbr.rel (%p16) target = $region8
  $region5: #{twobranches_conv.1} parent=0 // loop_body
    %s20 = ssub.s32 %s15, 1
    %s21 = ssub.s32 %s15, 2
    %s22 = sadd.s32 %s15, 1
    %s23 = ssub.s32 %s15, %s22
    %p24 = scmp.eq.s32.totalorder %s23, 0
    %s26 = sadd.s32 %s25, 1
    %s27 = scalar_select %p24, %s25, %s26
    %p30 = pneg %p24
    %p31 = scmp.eq.s32.totalorder %s15, 1
    %p32 = por %p30, %p31
    %p33 = scmp.ne.s32.totalorder %s25, %s28
    %p34 = scmp.eq.s32.totalorder %s15, 0
    %p35 = por %p33, %p34
    %p36 = scmp.ne.s32.totalorder %s25, %s28
    %p37 = scmp.eq.s32.totalorder %s20, 1
    %p38 = por %p36, %p37
    %p39 = scmp.ne.s32.totalorder %s28, %s29
    %p40 = scmp.eq.s32.totalorder %s20, 0
    %p41 = por %p39, %p40
    %p42 = scmp.ne.s32.totalorder %s28, %s29
    %p43 = scmp.eq.s32.totalorder %s21, 1
    %p44 = por %p42, %p43
    %p46 = scmp.ne.s32.totalorder %s29, %s45
    %p47 = scmp.eq.s32.totalorder %s21, 0
    %p48 = por %p46, %p47
    %s50 = sadd.s32 %s49, 1
    %p53 = scmp.eq.s32.totalorder %s15, 1
    %p54 = scmp.ne.s32.totalorder %s49, %s51
    %p55 = scmp.eq.s32.totalorder %s15, 0
    %p56 = por %p54, %p55
    %p57 = scmp.ne.s32.totalorder %s49, %s51
    %p58 = scmp.eq.s32.totalorder %s20, 1
    %p59 = por %p57, %p58
    %p60 = scmp.ne.s32.totalorder %s51, %s52
    %p61 = scmp.eq.s32.totalorder %s20, 0
    %p62 = por %p60, %p61
    %p63 = scmp.ne.s32.totalorder %s51, %s52
    %p64 = scmp.eq.s32.totalorder %s21, 1
    %p65 = por %p63, %p64
    %p67 = scmp.ne.s32.totalorder %s52, %s66
    %p68 = scmp.eq.s32.totalorder %s21, 0
    %p69 = por %p67, %p68
    %s71 = sadd.s32 %s70, 1
    %p74 = scmp.eq.s32.totalorder %s15, 1
    %p75 = scmp.ne.s32.totalorder %s70, %s72
    %p76 = scmp.eq.s32.totalorder %s15, 0
    %p77 = por %p75, %p76
    %p78 = scmp.ne.s32.totalorder %s70, %s72
    %p79 = scmp.eq.s32.totalorder %s20, 1
    %p80 = por %p78, %p79
    %p81 = scmp.ne.s32.totalorder %s72, %s73
    %p82 = scmp.eq.s32.totalorder %s20, 0
    %p83 = por %p81, %p82
    %p84 = scmp.ne.s32.totalorder %s72, %s73
    %p85 = scmp.eq.s32.totalorder %s21, 1
    %p86 = por %p84, %p85
    %p88 = scmp.ne.s32.totalorder %s73, %s87
    %p89 = scmp.eq.s32.totalorder %s21, 0
    %p90 = por %p88, %p89
    %s92 = sadd.s32 %s91, 1
    %p95 = scmp.eq.s32.totalorder %s15, 1
    %p96 = scmp.ne.s32.totalorder %s91, %s93
    %p97 = scmp.eq.s32.totalorder %s15, 0
    %p98 = por %p96, %p97
    %p99 = scmp.ne.s32.totalorder %s91, %s93
    %p100 = scmp.eq.s32.totalorder %s20, 1
    %p101 = por %p99, %p100
    %p102 = scmp.ne.s32.totalorder %s93, %s94
    %p103 = scmp.eq.s32.totalorder %s20, 0
    %p104 = por %p102, %p103
    %p105 = scmp.ne.s32.totalorder %s93, %s94
    %p106 = scmp.eq.s32.totalorder %s21, 1
    %p107 = por %p105, %p106
    %p109 = scmp.ne.s32.totalorder %s94, %s108
    %p110 = scmp.eq.s32.totalorder %s21, 0
    %p111 = por %p109, %p110
    %s113 = sadd.s32 %s112, 1
    %p116 = scmp.eq.s32.totalorder %s15, 1
    %p117 = scmp.ne.s32.totalorder %s112, %s114
    %p118 = scmp.eq.s32.totalorder %s15, 0
    %p119 = por %p117, %p118
    %p120 = scmp.ne.s32.totalorder %s112, %s114
    %p121 = scmp.eq.s32.totalorder %s20, 1
    %p122 = por %p120, %p121
    %p123 = scmp.ne.s32.totalorder %s114, %s115
    %p124 = scmp.eq.s32.totalorder %s20, 0
    %p125 = por %p123, %p124
    %p126 = scmp.ne.s32.totalorder %s114, %s115
    %p127 = scmp.eq.s32.totalorder %s21, 1
    %p128 = por %p126, %p127
    %p130 = scmp.ne.s32.totalorder %s115, %s129
    %p131 = scmp.eq.s32.totalorder %s21, 0
    %p132 = por %p130, %p131
    %s134 = sadd.s32 %s133, 1
    %p137 = scmp.eq.s32.totalorder %s15, 1
    %p138 = scmp.ne.s32.totalorder %s133, %s135
    %p139 = scmp.eq.s32.totalorder %s15, 0
    %p140 = por %p138, %p139
    %p141 = scmp.ne.s32.totalorder %s133, %s135
    %p142 = scmp.eq.s32.totalorder %s20, 1
    %p143 = por %p141, %p142
    %p144 = scmp.ne.s32.totalorder %s135, %s136
    %p145 = scmp.eq.s32.totalorder %s20, 0
    %p146 = por %p144, %p145
    %p147 = scmp.ne.s32.totalorder %s135, %s136
    %p148 = scmp.eq.s32.totalorder %s21, 1
    %p149 = por %p147, %p148
    %p151 = scmp.ne.s32.totalorder %s136, %s150
    %p152 = scmp.eq.s32.totalorder %s21, 0
    %p153 = por %p151, %p152
    %s155 = sadd.s32 %s154, 1
    %p158 = scmp.eq.s32.totalorder %s15, 1
    %p159 = scmp.ne.s32.totalorder %s154, %s156
    %p160 = scmp.eq.s32.totalorder %s15, 0
    %p161 = por %p159, %p160
    %p162 = scmp.ne.s32.totalorder %s154, %s156
    %p163 = scmp.eq.s32.totalorder %s20, 1
    %p164 = por %p162, %p163
    %p165 = scmp.ne.s32.totalorder %s156, %s157
    %p166 = scmp.eq.s32.totalorder %s20, 0
    %p167 = por %p165, %p166
    %p168 = scmp.ne.s32.totalorder %s156, %s157
    %p169 = scmp.eq.s32.totalorder %s21, 1
    %p170 = por %p168, %p169
    %p172 = scmp.ne.s32.totalorder %s157, %s171
    %p173 = scmp.eq.s32.totalorder %s21, 0
    %p174 = por %p172, %p173
    %s176 = sadd.s32 %s175, 1
    %p179 = scmp.eq.s32.totalorder %s15, 1
    %p180 = scmp.ne.s32.totalorder %s175, %s177
    %p181 = scmp.eq.s32.totalorder %s15, 0
    %p182 = por %p180, %p181
    %p183 = scmp.ne.s32.totalorder %s175, %s177
    %p184 = scmp.eq.s32.totalorder %s20, 1
    %p185 = por %p183, %p184
    %p186 = scmp.ne.s32.totalorder %s177, %s178
    %p187 = scmp.eq.s32.totalorder %s20, 0
    %p188 = por %p186, %p187
    %p189 = scmp.ne.s32.totalorder %s177, %s178
    %p190 = scmp.eq.s32.totalorder %s21, 1
    %p191 = por %p189, %p190
    %p193 = scmp.ne.s32.totalorder %s178, %s192
    %p194 = scmp.eq.s32.totalorder %s21, 0
    %p195 = por %p193, %p194
    %s197 = sadd.s32 %s196, 1
    %p200 = scmp.eq.s32.totalorder %s15, 1
    %p201 = scmp.ne.s32.totalorder %s196, %s198
    %p202 = scmp.eq.s32.totalorder %s15, 0
    %p203 = por %p201, %p202
    %p204 = scmp.ne.s32.totalorder %s196, %s198
    %p205 = scmp.eq.s32.totalorder %s20, 1
    %p206 = por %p204, %p205
    %p207 = scmp.ne.s32.totalorder %s198, %s199
    %p208 = scmp.eq.s32.totalorder %s20, 0
    %p209 = por %p207, %p208
    %p210 = scmp.ne.s32.totalorder %s198, %s199
    %p211 = scmp.eq.s32.totalorder %s21, 1
    %p212 = por %p210, %p211
    %p214 = scmp.ne.s32.totalorder %s199, %s213
    %p215 = scmp.eq.s32.totalorder %s21, 0
    %p216 = por %p214, %p215
    %s217 = ssub.s32 %s15, %s22
    %p218 = scmp.eq.s32.totalorder %s217, 0
    %s220 = sadd.s32 %s219, 1
    %s221 = scalar_select %p218, %s219, %s220
    %p224 = pneg %p218
    %p225 = scmp.eq.s32.totalorder %s15, 1
    %p226 = por %p224, %p225
    %p227 = scmp.ne.s32.totalorder %s219, %s222
    %p228 = scmp.eq.s32.totalorder %s15, 0
    %p229 = por %p227, %p228
    %p230 = scmp.ne.s32.totalorder %s219, %s222
    %p231 = scmp.eq.s32.totalorder %s20, 1
    %p232 = por %p230, %p231
    %p233 = scmp.ne.s32.totalorder %s222, %s223
    %p234 = scmp.eq.s32.totalorder %s20, 0
    %p235 = por %p233, %p234
    %p236 = scmp.ne.s32.totalorder %s222, %s223
    %p237 = scmp.eq.s32.totalorder %s21, 1
    %p238 = por %p236, %p237
    %p240 = scmp.ne.s32.totalorder %s223, %s239
    %p241 = scmp.eq.s32.totalorder %s21, 0
    %p242 = por %p240, %p241
    %p243 = scmp.le.s32.totalorder 1, %s15
    %p244 = scmp.lt.s32.totalorder %s15, 3
    %p245 = pnand %p243, %p244
    %p246 = pneg %p245
    // Predicated region
    $region9: #{twobranches_conv.1} parent=5 // pred_check
      _
    $region10: #{twobranches_conv.1} parent=5 // pred_check_branch
      %248 = sbr.rel (%p245) target = $region12
    $region11: #{twobranches_conv.1} parent=5 // pred_region
      %s249 = ssub.s32 %s15, 1
      // Predicated region
      $region13: #{twobranches_conv.1} parent=11 // pred_check
        %p250 = pneg %p62
      $region14: #{twobranches_conv.1} parent=11 // pred_check_branch
        %252 = sbr.rel (%p250) target = $region16
      $region15: #{twobranches_conv.1} parent=11 // pred_region
        _
      $region16: #{twobranches_conv.1} parent=11 // pred_fallthru
        _
      // Predicated region
      $region17: #{twobranches_conv.1} parent=11 // pred_check
        %p253 = pneg %p83
      $region18: #{twobranches_conv.1} parent=11 // pred_check_branch
        %255 = sbr.rel (%p253) target = $region20
      $region19: #{twobranches_conv.1} parent=11 // pred_region
        _
      $region20: #{twobranches_conv.1} parent=11 // pred_fallthru
        _
      // Predicated region
      $region21: #{twobranches_conv.1} parent=11 // pred_check
        %p256 = pneg %p104
      $region22: #{twobranches_conv.1} parent=11 // pred_check_branch
        %258 = sbr.rel (%p256) target = $region24
      $region23: #{twobranches_conv.1} parent=11 // pred_region
        _
      $region24: #{twobranches_conv.1} parent=11 // pred_fallthru
        _
      // Predicated region
      $region25: #{twobranches_conv.1} parent=11 // pred_check
        %p259 = pneg %p125
      $region26: #{twobranches_conv.1} parent=11 // pred_check_branch
        %261 = sbr.rel (%p259) target = $region28
      $region27: #{twobranches_conv.1} parent=11 // pred_region
        _
      $region28: #{twobranches_conv.1} parent=11 // pred_fallthru
        _
      // Predicated region
      $region29: #{twobranches_conv.1} parent=11 // pred_check
        %p262 = pneg %p146
      $region30: #{twobranches_conv.1} parent=11 // pred_check_branch
        %264 = sbr.rel (%p262) target = $region32
      $region31: #{twobranches_conv.1} parent=11 // pred_region
        _
      $region32: #{twobranches_conv.1} parent=11 // pred_fallthru
        _
      // Predicated region
      $region33: #{twobranches_conv.1} parent=11 // pred_check
        %p265 = pneg %p167
      $region34: #{twobranches_conv.1} parent=11 // pred_check_branch
        %267 = sbr.rel (%p265) target = $region36
      $region35: #{twobranches_conv.1} parent=11 // pred_region
        _
      $region36: #{twobranches_conv.1} parent=11 // pred_fallthru
        _
      // Predicated region
      $region37: #{twobranches_conv.1} parent=11 // pred_check
        %p268 = pneg %p188
      $region38: #{twobranches_conv.1} parent=11 // pred_check_branch
        %270 = sbr.rel (%p268) target = $region40
      $region39: #{twobranches_conv.1} parent=11 // pred_region
        _
      $region40: #{twobranches_conv.1} parent=11 // pred_fallthru
        _
      // Predicated region
      $region41: #{twobranches_conv.1} parent=11 // pred_check
        %p271 = pneg %p209
      $region42: #{twobranches_conv.1} parent=11 // pred_check_branch
        %273 = sbr.rel (%p271) target = $region44
      $region43: #{twobranches_conv.1} parent=11 // pred_region
        _
      $region44: #{twobranches_conv.1} parent=11 // pred_fallthru
        _
    $region12: #{twobranches_conv.1} parent=5 // pred_fallthru
      _
    %p274 = scmp.lt.s32.totalorder %s15, 2
    // Predicated region
    $region45: #{twobranches_conv.1} parent=5 // pred_check
      %p275 = pneg %p274
    $region46: #{twobranches_conv.1} parent=5 // pred_check_branch
      %277 = sbr.rel (%p275) target = $region48
    $region47: #{twobranches_conv.1} parent=5 // pred_region
      // Predicated region
      $region49: #{twobranches_conv.1} parent=47 // pred_check
        %p278 = pneg %p35
      $region50: #{twobranches_conv.1} parent=47 // pred_check_branch
        %280 = sbr.rel (%p278) target = $region52
      $region51: #{twobranches_conv.1} parent=47 // pred_region
        %p281 = scmp.lt.s32.totalorder %s15, 1
        %s282 = scalar_select %p281, %s15, 1
        %s283 = smul.addr %s282, 2
        %s284 = smul.addr %s283, 4
        %s285 = scalar_lea.vmem %s0, %s284
      $region52: #{twobranches_conv.1} parent=47 // pred_fallthru
        _
    $region48: #{twobranches_conv.1} parent=5 // pred_fallthru
      _
    %p286 = scmp.le.s32.totalorder 1, %s15
    %p287 = scmp.lt.s32.totalorder %s15, 3
    %p288 = pnand %p286, %p287
    %p289 = pneg %p288
    // Predicated region
    $region53: #{twobranches_conv.1} parent=5 // pred_check
      _
    $region54: #{twobranches_conv.1} parent=5 // pred_check_branch
      %291 = sbr.rel (%p288) target = $region56
    $region55: #{twobranches_conv.1} parent=5 // pred_region
      %s292 = ssub.s32 %s15, 1
      %p293 = scmp.lt.s32.totalorder %s20, 1
      %s294 = scalar_select %p293, %s20, 1
      %s295 = smul.addr %s294, 2
      %s296 = smul.addr %s295, 4
      %s297 = scalar_lea.vmem %s0, %s296
      %p298 = pneg %p41
      %p299 = pneg %p38
      %p300 = pneg %p62
      %p301 = pneg %p59
      %p302 = pneg %p83
      %p303 = pneg %p80
      %p304 = pneg %p104
      %p305 = pneg %p101
      %p306 = pneg %p125
      %p307 = pneg %p122
      %p308 = pneg %p146
      %p309 = pneg %p143
      %p310 = pneg %p167
      %p311 = pneg %p164
      %p312 = pneg %p188
      %p313 = pneg %p185
      %p314 = pneg %p209
      %p315 = pneg %p206
      %p316 = pneg %p235
      %p317 = pneg %p232
      %p318 = scmp.lt.s32.totalorder %s20, 1
      %s319 = scalar_select %p318, %s20, 1
      %s320 = smul.addr %s319, 2
      %s321 = smul.addr %s320, 8
      %s322 = scalar_lea.vmem %s9, %s321
      %p323 = scmp.lt.s32.totalorder %s20, 1
      %s324 = scalar_select %p323, %s20, 1
      %s325 = smul.addr %s324, 2
      %s326 = smul.addr %s325, 4
      %s327 = scalar_lea.vmem %s0, %s326
      %p328 = scmp.lt.s32.totalorder %s20, 1
      %s329 = scalar_select %p328, %s20, 1
      %s330 = smul.addr %s329, 2
      %s331 = smul.addr %s330, 8
      %s332 = scalar_lea.vmem %s9, %s331
      %v333 = vld [vmem:[%s327] sm:$0xff]
      %v334 = vlaneseq
      %v335 = vand.u32 %v334, 127
      %v336 = vadd.s32 %v335, 128
      %v337 = vand.u32 %v335, 15
      %v338 = vand.u32 %v336, 15
      %v339 = vld [vmem:[%s1] sm:$0xff]
      %v340 = vld [vmem:[%s2] sm:$0xff]
      %v341 = vld [vmem:[%s3] sm:$0xff]
      %v342 = vld [vmem:[%s4] sm:$0xf]
      %v343 = vld [vmem:[%s5] sm:$0xf]
      %v344 = vld [vmem:[%s6] sm:$0xf]
      %v345 = vld [vmem:[%s7] sm:$0xf]
      %v346 = vld [vmem:[%s8] sm:$0xff]
      %348 = vst [vmem:[#allocation1] ss:$2 sm:$0xff] %v333
      %v349 = vld.sshfl [vmem:[#allocation1] sm:$0xff pattern:$0x75316420]
      %v350 = vld.sshfl [vmem:[#allocation1 + $0x8] sm:$0xff pattern:$0x75316420]
      %352 = vset.pattern.permute.xlu0 36
      %353 = vperm.xlu0 %352, %v339
      %v354 = vpop.permute.xlu0 %353
      %vm356 = vcmp.ge.s32.totalorder %v337, 1
      %vm357 = vcmp.ge.s32.totalorder %v338, 1
      %vm358 = vcmp.ge.s32.totalorder %v335, 16
      %vm359 = vcmp.ge.s32.totalorder %v336, 16
      %vm360 = vmand %vm356, %vm358
      %vm361 = vmand %vm357, %vm359
      %v362 = vsel %vm360, 1, 0
      %v363 = vsel %vm361, 1, 0
      %vm364 = vcmp.eq.s32.totalorder %v362, 1
      %vm365 = vcmp.eq.s32.totalorder %v363, 1
      %367 = vrot.lane.b32.xlu0 0.0, 17
      %v368 = vpop.permute.xlu0 %367
      %369 = vrot.lane.b32.xlu0 %v349, 17
      %v370 = vpop.permute.xlu0 %369
      %371 = vrot.lane.b32.xlu0 %v350, 17
      %v372 = vpop.permute.xlu0 %371
      %vm373 = vcmask 138240
      %v374 = vsel %vm373, %v368, %v370
      %v375 = vsel %vm373, %v370, %v372
      %v378 = vsel %vm364, %v374, 0.0
      %v379 = vsel %vm365, %v375, 0.0
      %380 = vset.pattern.permute.xlu0 0
      %381 = vperm.xlu0 %380, %v339
      %v382 = vpop.permute.xlu0 %381
      %v384 = vperm.slane %v378, 0
      %v385 = vperm.slane %v379, 0
      %v386 = vmul.f32 %v382, %v384
      %v387 = vmul.f32 %v382, %v385
      %v388 = vadd.f32 %v354, %v386
      %v389 = vadd.f32 %v354, %v387
      %390 = vset.pattern.permute.xlu0 1
      %391 = vperm.xlu0 %390, %v339
      %v392 = vpop.permute.xlu0 %391
      %v394 = vperm.slane %v378, 1
      %v395 = vperm.slane %v379, 1
      %v396 = vmul.f32 %v392, %v394
      %v397 = vmul.f32 %v392, %v395
      %v398 = vadd.f32 %v388, %v396
      %v399 = vadd.f32 %v389, %v397
      %400 = vset.pattern.permute.xlu0 2
      %401 = vperm.xlu0 %400, %v339
      %v402 = vpop.permute.xlu0 %401
      %v404 = vperm.slane %v378, 2
      %v405 = vperm.slane %v379, 2
      %v406 = vmul.f32 %v402, %v404
      %v407 = vmul.f32 %v402, %v405
      %v408 = vadd.f32 %v398, %v406
      %v409 = vadd.f32 %v399, %v407
      %410 = vset.pattern.permute.xlu0 3
      %411 = vperm.xlu0 %410, %v339
      %v412 = vpop.permute.xlu0 %411
      %v414 = vperm.slane %v378, 3
      %v415 = vperm.slane %v379, 3
      %v416 = vmul.f32 %v412, %v414
      %v417 = vmul.f32 %v412, %v415
      %v418 = vadd.f32 %v408, %v416
      %v419 = vadd.f32 %v409, %v417
      %v420 = vsel %vm358, 1, 0
      %v421 = vsel %vm359, 1, 0
      %vm422 = vcmp.eq.s32.totalorder %v420, 1
      %vm423 = vcmp.eq.s32.totalorder %v421, 1
      %424 = vrot.lane.b32.xlu0 0.0, 16
      %v425 = vpop.permute.xlu0 %424
      %426 = vrot.lane.b32.xlu0 %v349, 16
      %v427 = vpop.permute.xlu0 %426
      %428 = vrot.lane.b32.xlu0 %v350, 16
      %v429 = vpop.permute.xlu0 %428
      %vm430 = vcmask 130048
      %v431 = vsel %vm430, %v425, %v427
      %v432 = vsel %vm430, %v427, %v429
      %v435 = vsel %vm422, %v431, 0.0
      %v436 = vsel %vm423, %v432, 0.0
      %437 = vset.pattern.permute.xlu0 4
      %438 = vperm.xlu0 %437, %v339
      %v439 = vpop.permute.xlu0 %438
      %v441 = vperm.slane %v435, 0
      %v442 = vperm.slane %v436, 0
      %v443 = vmul.f32 %v439, %v441
      %v444 = vmul.f32 %v439, %v442
      %v445 = vadd.f32 %v418, %v443
      %v446 = vadd.f32 %v419, %v444
      %447 = vset.pattern.permute.xlu0 5
      %448 = vperm.xlu0 %447, %v339
      %v449 = vpop.permute.xlu0 %448
      %v451 = vperm.slane %v435, 1
      %v452 = vperm.slane %v436, 1
      %v453 = vmul.f32 %v449, %v451
      %v454 = vmul.f32 %v449, %v452
      %v455 = vadd.f32 %v445, %v453
      %v456 = vadd.f32 %v446, %v454
      %457 = vset.pattern.permute.xlu0 6
      %458 = vperm.xlu0 %457, %v339
      %v459 = vpop.permute.xlu0 %458
      %v461 = vperm.slane %v435, 2
      %v462 = vperm.slane %v436, 2
      %v463 = vmul.f32 %v459, %v461
      %v464 = vmul.f32 %v459, %v462
      %v465 = vadd.f32 %v455, %v463
      %v466 = vadd.f32 %v456, %v464
      %467 = vset.pattern.permute.xlu0 7
      %468 = vperm.xlu0 %467, %v339
      %v469 = vpop.permute.xlu0 %468
      %v471 = vperm.slane %v435, 3
      %v472 = vperm.slane %v436, 3
      %v473 = vmul.f32 %v469, %v471
      %v474 = vmul.f32 %v469, %v472
      %v475 = vadd.f32 %v465, %v473
      %v476 = vadd.f32 %v466, %v474
      %vm477 = vcmp.lt.s32.totalorder %v337, 15
      %vm478 = vcmp.lt.s32.totalorder %v338, 15
      %vm479 = vmand %vm477, %vm358
      %vm480 = vmand %vm478, %vm359
      %v481 = vsel %vm479, 1, 0
      %v482 = vsel %vm480, 1, 0
      %vm483 = vcmp.eq.s32.totalorder %v481, 1
      %vm484 = vcmp.eq.s32.totalorder %v482, 1
      %485 = vrot.lane.b32.xlu0 0.0, 15
      %v486 = vpop.permute.xlu0 %485
      %487 = vrot.lane.b32.xlu0 %v349, 15
      %v488 = vpop.permute.xlu0 %487
      %489 = vrot.lane.b32.xlu0 %v350, 15
      %v490 = vpop.permute.xlu0 %489
      %vm491 = vcmask 121856
      %v492 = vsel %vm491, %v486, %v488
      %v493 = vsel %vm491, %v488, %v490
      %v496 = vsel %vm483, %v492, 0.0
      %v497 = vsel %vm484, %v493, 0.0
      %498 = vset.pattern.permute.xlu0 8
      %499 = vperm.xlu0 %498, %v339
      %v500 = vpop.permute.xlu0 %499
      %v502 = vperm.slane %v496, 0
      %v503 = vperm.slane %v497, 0
      %v504 = vmul.f32 %v500, %v502
      %v505 = vmul.f32 %v500, %v503
      %v506 = vadd.f32 %v475, %v504
      %v507 = vadd.f32 %v476, %v505
      %508 = vset.pattern.permute.xlu0 9
      %509 = vperm.xlu0 %508, %v339
      %v510 = vpop.permute.xlu0 %509
      %v512 = vperm.slane %v496, 1
      %v513 = vperm.slane %v497, 1
      %v514 = vmul.f32 %v510, %v512
      %v515 = vmul.f32 %v510, %v513
      %v516 = vadd.f32 %v506, %v514
      %v517 = vadd.f32 %v507, %v515
      %518 = vset.pattern.permute.xlu0 10
      %519 = vperm.xlu0 %518, %v339
      %v520 = vpop.permute.xlu0 %519
      %v522 = vperm.slane %v496, 2
      %v523 = vperm.slane %v497, 2
      %v524 = vmul.f32 %v520, %v522
      %v525 = vmul.f32 %v520, %v523
      %v526 = vadd.f32 %v516, %v524
      %v527 = vadd.f32 %v517, %v525
      %528 = vset.pattern.permute.xlu0 11
      %529 = vperm.xlu0 %528, %v339
      %v530 = vpop.permute.xlu0 %529
      %v532 = vperm.slane %v496, 3
      %v533 = vperm.slane %v497, 3
      %v534 = vmul.f32 %v530, %v532
      %v535 = vmul.f32 %v530, %v533
      %v536 = vadd.f32 %v526, %v534
      %v537 = vadd.f32 %v527, %v535
      %v538 = vsel %vm356, 1, 0
      %v539 = vsel %vm357, 1, 0
      %vm540 = vcmp.eq.s32.totalorder %v538, 1
      %vm541 = vcmp.eq.s32.totalorder %v539, 1
      %542 = vrot.lane.b32.xlu0 0.0, 1
      %v543 = vpop.permute.xlu0 %542
      %544 = vrot.lane.b32.xlu0 %v349, 1
      %v545 = vpop.permute.xlu0 %544
      %546 = vrot.lane.b32.xlu0 %v350, 1
      %v547 = vpop.permute.xlu0 %546
      %vm548 = vcmask 7168
      %v549 = vsel %vm548, %v543, %v545
      %v550 = vsel %vm548, %v545, %v547
      %v553 = vsel %vm540, %v549, 0.0
      %v554 = vsel %vm541, %v550, 0.0
      %555 = vset.pattern.permute.xlu0 12
      %556 = vperm.xlu0 %555, %v339
      %v557 = vpop.permute.xlu0 %556
      %v559 = vperm.slane %v553, 0
      %v560 = vperm.slane %v554, 0
      %v561 = vmul.f32 %v557, %v559
      %v562 = vmul.f32 %v557, %v560
      %v563 = vadd.f32 %v536, %v561
      %v564 = vadd.f32 %v537, %v562
      %565 = vset.pattern.permute.xlu0 13
      %566 = vperm.xlu0 %565, %v339
      %v567 = vpop.permute.xlu0 %566
      %v569 = vperm.slane %v553, 1
      %v570 = vperm.slane %v554, 1
      %v571 = vmul.f32 %v567, %v569
      %v572 = vmul.f32 %v567, %v570
      %v573 = vadd.f32 %v563, %v571
      %v574 = vadd.f32 %v564, %v572
      %575 = vset.pattern.permute.xlu0 14
      %576 = vperm.xlu0 %575, %v339
      %v577 = vpop.permute.xlu0 %576
      %v579 = vperm.slane %v553, 2
      %v580 = vperm.slane %v554, 2
      %v581 = vmul.f32 %v577, %v579
      %v582 = vmul.f32 %v577, %v580
      %v583 = vadd.f32 %v573, %v581
      %v584 = vadd.f32 %v574, %v582
      %585 = vset.pattern.permute.xlu0 15
      %586 = vperm.xlu0 %585, %v339
      %v587 = vpop.permute.xlu0 %586
      %v589 = vperm.slane %v553, 3
      %v590 = vperm.slane %v554, 3
      %v591 = vmul.f32 %v587, %v589
      %v592 = vmul.f32 %v587, %v590
      %v593 = vadd.f32 %v583, %v591
      %v594 = vadd.f32 %v584, %v592
      %595 = vset.pattern.permute.xlu0 16
      %596 = vperm.xlu0 %595, %v339
      %v597 = vpop.permute.xlu0 %596
      %v599 = vperm.slane %v333, 0
      %v600 = vperm.slane %v333, 4
      %v603 = vperm.slane %v599, 0
      %v604 = vperm.slane %v600, 0
      %v605 = vmul.f32 %v597, %v603
      %v606 = vmul.f32 %v597, %v604
      %v607 = vadd.f32 %v593, %v605
      %v608 = vadd.f32 %v594, %v606
      %609 = vset.pattern.permute.xlu0 17
      %610 = vperm.xlu0 %609, %v339
      %v611 = vpop.permute.xlu0 %610
      %v613 = vperm.slane %v333, 1
      %v614 = vperm.slane %v333, 5
      %v617 = vperm.slane %v613, 1
      %v618 = vperm.slane %v614, 1
      %v619 = vmul.f32 %v611, %v617
      %v620 = vmul.f32 %v611, %v618
      %v621 = vadd.f32 %v607, %v619
      %v622 = vadd.f32 %v608, %v620
      %623 = vset.pattern.permute.xlu0 18
      %624 = vperm.xlu0 %623, %v339
      %v625 = vpop.permute.xlu0 %624
      %v627 = vperm.slane %v333, 2
      %v628 = vperm.slane %v333, 6
      %v631 = vperm.slane %v627, 2
      %v632 = vperm.slane %v628, 2
      %v633 = vmul.f32 %v625, %v631
      %v634 = vmul.f32 %v625, %v632
      %v635 = vadd.f32 %v621, %v633
      %v636 = vadd.f32 %v622, %v634
      %637 = vset.pattern.permute.xlu0 19
      %638 = vperm.xlu0 %637, %v339
      %v639 = vpop.permute.xlu0 %638
      %v641 = vperm.slane %v333, 3
      %v642 = vperm.slane %v333, 7
      %v645 = vperm.slane %v641, 3
      %v646 = vperm.slane %v642, 3
      %v647 = vmul.f32 %v639, %v645
      %v648 = vmul.f32 %v639, %v646
      %v649 = vadd.f32 %v635, %v647
      %v650 = vadd.f32 %v636, %v648
      %v651 = vsel %vm477, 1, 0
      %v652 = vsel %vm478, 1, 0
      %vm653 = vcmp.eq.s32.totalorder %v651, 1
      %vm654 = vcmp.eq.s32.totalorder %v652, 1
      %655 = vrot.lane.b32.xlu0 %v349, 127
      %v656 = vpop.permute.xlu0 %655
      %657 = vrot.lane.b32.xlu0 %v350, 127
      %v658 = vpop.permute.xlu0 %657
      %659 = vrot.lane.b32.xlu0 0.0, 127
      %v660 = vpop.permute.xlu0 %659
      %vm661 = vcmask 1039360
      %v662 = vsel %vm661, %v656, %v658
      %v663 = vsel %vm661, %v658, %v660
      %v666 = vsel %vm653, %v662, 0.0
      %v667 = vsel %vm654, %v663, 0.0
      %668 = vset.pattern.permute.xlu0 20
      %669 = vperm.xlu0 %668, %v339
      %v670 = vpop.permute.xlu0 %669
      %v672 = vperm.slane %v666, 0
      %v673 = vperm.slane %v667, 0
      %v674 = vmul.f32 %v670, %v672
      %v675 = vmul.f32 %v670, %v673
      %v676 = vadd.f32 %v649, %v674
      %v677 = vadd.f32 %v650, %v675
      %678 = vset.pattern.permute.xlu0 21
      %679 = vperm.xlu0 %678, %v339
      %v680 = vpop.permute.xlu0 %679
      %v682 = vperm.slane %v666, 1
      %v683 = vperm.slane %v667, 1
      %v684 = vmul.f32 %v680, %v682
      %v685 = vmul.f32 %v680, %v683
      %v686 = vadd.f32 %v676, %v684
      %v687 = vadd.f32 %v677, %v685
      %688 = vset.pattern.permute.xlu0 22
      %689 = vperm.xlu0 %688, %v339
      %v690 = vpop.permute.xlu0 %689
      %v692 = vperm.slane %v666, 2
      %v693 = vperm.slane %v667, 2
      %v694 = vmul.f32 %v690, %v692
      %v695 = vmul.f32 %v690, %v693
      %v696 = vadd.f32 %v686, %v694
      %v697 = vadd.f32 %v687, %v695
      %698 = vset.pattern.permute.xlu0 23
      %699 = vperm.xlu0 %698, %v339
      %v700 = vpop.permute.xlu0 %699
      %v702 = vperm.slane %v666, 3
      %v703 = vperm.slane %v667, 3
      %v704 = vmul.f32 %v700, %v702
      %v705 = vmul.f32 %v700, %v703
      %v706 = vadd.f32 %v696, %v704
      %v707 = vadd.f32 %v697, %v705
      %vm708 = vcmp.lt.s32.totalorder %v335, 240
      %vm709 = vcmp.lt.s32.totalorder %v336, 240
      %vm710 = vmand %vm356, %vm708
      %vm711 = vmand %vm357, %vm709
      %v712 = vsel %vm710, 1, 0
      %v713 = vsel %vm711, 1, 0
      %vm714 = vcmp.eq.s32.totalorder %v712, 1
      %vm715 = vcmp.eq.s32.totalorder %v713, 1
      %716 = vrot.lane.b32.xlu0 %v349, 113
      %v717 = vpop.permute.xlu0 %716
      %718 = vrot.lane.b32.xlu0 %v350, 113
      %v719 = vpop.permute.xlu0 %718
      %720 = vrot.lane.b32.xlu0 0.0, 113
      %v721 = vpop.permute.xlu0 %720
      %vm722 = vcmask 924672
      %v723 = vsel %vm722, %v717, %v719
      %v724 = vsel %vm722, %v719, %v721
      %v727 = vsel %vm714, %v723, 0.0
      %v728 = vsel %vm715, %v724, 0.0
      %729 = vset.pattern.permute.xlu0 24
      %730 = vperm.xlu0 %729, %v339
      %v731 = vpop.permute.xlu0 %730
      %v733 = vperm.slane %v727, 0
      %v734 = vperm.slane %v728, 0
      %v735 = vmul.f32 %v731, %v733
      %v736 = vmul.f32 %v731, %v734
      %v737 = vadd.f32 %v706, %v735
      %v738 = vadd.f32 %v707, %v736
      %739 = vset.pattern.permute.xlu0 25
      %740 = vperm.xlu0 %739, %v339
      %v741 = vpop.permute.xlu0 %740
      %v743 = vperm.slane %v727, 1
      %v744 = vperm.slane %v728, 1
      %v745 = vmul.f32 %v741, %v743
      %v746 = vmul.f32 %v741, %v744
      %v747 = vadd.f32 %v737, %v745
      %v748 = vadd.f32 %v738, %v746
      %749 = vset.pattern.permute.xlu0 26
      %750 = vperm.xlu0 %749, %v339
      %v751 = vpop.permute.xlu0 %750
      %v753 = vperm.slane %v727, 2
      %v754 = vperm.slane %v728, 2
      %v755 = vmul.f32 %v751, %v753
      %v756 = vmul.f32 %v751, %v754
      %v757 = vadd.f32 %v747, %v755
      %v758 = vadd.f32 %v748, %v756
      %759 = vset.pattern.permute.xlu0 27
      %760 = vperm.xlu0 %759, %v339
      %v761 = vpop.permute.xlu0 %760
      %v763 = vperm.slane %v727, 3
      %v764 = vperm.slane %v728, 3
      %v765 = vmul.f32 %v761, %v763
      %v766 = vmul.f32 %v761, %v764
      %v767 = vadd.f32 %v757, %v765
      %v768 = vadd.f32 %v758, %v766
      %v769 = vsel %vm708, 1, 0
      %v770 = vsel %vm709, 1, 0
      %vm771 = vcmp.eq.s32.totalorder %v769, 1
      %vm772 = vcmp.eq.s32.totalorder %v770, 1
      %773 = vrot.lane.b32.xlu0 %v349, 112
      %v774 = vpop.permute.xlu0 %773
      %775 = vrot.lane.b32.xlu0 %v350, 112
      %v776 = vpop.permute.xlu0 %775
      %777 = vrot.lane.b32.xlu0 0.0, 112
      %v778 = vpop.permute.xlu0 %777
      %vm779 = vcmask 916480
      %v780 = vsel %vm779, %v774, %v776
      %v781 = vsel %vm779, %v776, %v778
      %v784 = vsel %vm771, %v780, 0.0
      %v785 = vsel %vm772, %v781, 0.0
      %786 = vset.pattern.permute.xlu0 28
      %787 = vperm.xlu0 %786, %v339
      %v788 = vpop.permute.xlu0 %787
      %v790 = vperm.slane %v784, 0
      %v791 = vperm.slane %v785, 0
      %v792 = vmul.f32 %v788, %v790
      %v793 = vmul.f32 %v788, %v791
      %v794 = vadd.f32 %v767, %v792
      %v795 = vadd.f32 %v768, %v793
      %796 = vset.pattern.permute.xlu0 29
      %797 = vperm.xlu0 %796, %v339
      %v798 = vpop.permute.xlu0 %797
      %v800 = vperm.slane %v784, 1
      %v801 = vperm.slane %v785, 1
      %v802 = vmul.f32 %v798, %v800
      %v803 = vmul.f32 %v798, %v801
      %v804 = vadd.f32 %v794, %v802
      %v805 = vadd.f32 %v795, %v803
      %806 = vset.pattern.permute.xlu0 30
      %807 = vperm.xlu0 %806, %v339
      %v808 = vpop.permute.xlu0 %807
      %v810 = vperm.slane %v784, 2
      %v811 = vperm.slane %v785, 2
      %v812 = vmul.f32 %v808, %v810
      %v813 = vmul.f32 %v808, %v811
      %v814 = vadd.f32 %v804, %v812
      %v815 = vadd.f32 %v805, %v813
      %816 = vset.pattern.permute.xlu0 31
      %817 = vperm.xlu0 %816, %v339
      %v818 = vpop.permute.xlu0 %817
      %v820 = vperm.slane %v784, 3
      %v821 = vperm.slane %v785, 3
      %v822 = vmul.f32 %v818, %v820
      %v823 = vmul.f32 %v818, %v821
      %v824 = vadd.f32 %v814, %v822
      %v825 = vadd.f32 %v815, %v823
      %vm826 = vmand %vm477, %vm708
      %vm827 = vmand %vm478, %vm709
      %v828 = vsel %vm826, 1, 0
      %v829 = vsel %vm827, 1, 0
      %vm830 = vcmp.eq.s32.totalorder %v828, 1
      %vm831 = vcmp.eq.s32.totalorder %v829, 1
      %832 = vrot.lane.b32.xlu0 %v349, 111
      %v833 = vpop.permute.xlu0 %832
      %834 = vrot.lane.b32.xlu0 %v350, 111
      %v835 = vpop.permute.xlu0 %834
      %836 = vrot.lane.b32.xlu0 0.0, 111
      %v837 = vpop.permute.xlu0 %836
      %vm838 = vcmask 908288
      %v839 = vsel %vm838, %v833, %v835
      %v840 = vsel %vm838, %v835, %v837
      %v843 = vsel %vm830, %v839, 0.0
      %v844 = vsel %vm831, %v840, 0.0
      %845 = vset.pattern.permute.xlu0 32
      %846 = vperm.xlu0 %845, %v339
      %v847 = vpop.permute.xlu0 %846
      %v849 = vperm.slane %v843, 0
      %v850 = vperm.slane %v844, 0
      %v851 = vmul.f32 %v847, %v849
      %v852 = vmul.f32 %v847, %v850
      %v853 = vadd.f32 %v824, %v851
      %v854 = vadd.f32 %v825, %v852
      %855 = vset.pattern.permute.xlu0 33
      %856 = vperm.xlu0 %855, %v339
      %v857 = vpop.permute.xlu0 %856
      %v859 = vperm.slane %v843, 1
      %v860 = vperm.slane %v844, 1
      %v861 = vmul.f32 %v857, %v859
      %v862 = vmul.f32 %v857, %v860
      %v863 = vadd.f32 %v853, %v861
      %v864 = vadd.f32 %v854, %v862
      %865 = vset.pattern.permute.xlu0 34
      %866 = vperm.xlu0 %865, %v339
      %v867 = vpop.permute.xlu0 %866
      %v869 = vperm.slane %v843, 2
      %v870 = vperm.slane %v844, 2
      %v871 = vmul.f32 %v867, %v869
      %v872 = vmul.f32 %v867, %v870
      %v873 = vadd.f32 %v863, %v871
      %v874 = vadd.f32 %v864, %v872
      %875 = vset.pattern.permute.xlu0 35
      %876 = vperm.xlu0 %875, %v339
      %v877 = vpop.permute.xlu0 %876
      %v879 = vperm.slane %v843, 3
      %v880 = vperm.slane %v844, 3
      %v881 = vmul.f32 %v877, %v879
      %v882 = vmul.f32 %v877, %v880
      %v883 = vadd.f32 %v873, %v881
      %v884 = vadd.f32 %v874, %v882
      %v885 = vmax.f32 %v883, 0.0
      %v886 = vmax.f32 %v884, 0.0
      %888 = vset.pattern.permute.xlu0 72
      %889 = vperm.xlu0 %888, %v340
      %v890 = vpop.permute.xlu0 %889
      %894 = vrot.lane.b32.xlu0 %v885, 17
      %v895 = vpop.permute.xlu0 %894
      %896 = vrot.lane.b32.xlu0 %v886, 17
      %v897 = vpop.permute.xlu0 %896
      %v898 = vsel %vm373, %v368, %v895
      %v899 = vsel %vm373, %v895, %v897
      %v902 = vsel %vm364, %v898, 0.0
      %v903 = vsel %vm365, %v899, 0.0
      %904 = vset.pattern.permute.xlu0 0
      %905 = vperm.xlu0 %904, %v340
      %v906 = vpop.permute.xlu0 %905
      %v908 = vperm.slane %v902, 0
      %v909 = vperm.slane %v903, 0
      %v910 = vmul.f32 %v906, %v908
      %v911 = vmul.f32 %v906, %v909
      %v912 = vadd.f32 %v890, %v910
      %v913 = vadd.f32 %v890, %v911
      %914 = vset.pattern.permute.xlu0 1
      %915 = vperm.xlu0 %914, %v340
      %v916 = vpop.permute.xlu0 %915
      %v918 = vperm.slane %v902, 1
      %v919 = vperm.slane %v903, 1
      %v920 = vmul.f32 %v916, %v918
      %v921 = vmul.f32 %v916, %v919
      %v922 = vadd.f32 %v912, %v920
      %v923 = vadd.f32 %v913, %v921
      %924 = vset.pattern.permute.xlu0 2
      %925 = vperm.xlu0 %924, %v340
      %v926 = vpop.permute.xlu0 %925
      %v928 = vperm.slane %v902, 2
      %v929 = vperm.slane %v903, 2
      %v930 = vmul.f32 %v926, %v928
      %v931 = vmul.f32 %v926, %v929
      %v932 = vadd.f32 %v922, %v930
      %v933 = vadd.f32 %v923, %v931
      %934 = vset.pattern.permute.xlu0 3
      %935 = vperm.xlu0 %934, %v340
      %v936 = vpop.permute.xlu0 %935
      %v938 = vperm.slane %v902, 3
      %v939 = vperm.slane %v903, 3
      %v940 = vmul.f32 %v936, %v938
      %v941 = vmul.f32 %v936, %v939
      %v942 = vadd.f32 %v932, %v940
      %v943 = vadd.f32 %v933, %v941
      %944 = vset.pattern.permute.xlu0 4
      %945 = vperm.xlu0 %944, %v340
      %v946 = vpop.permute.xlu0 %945
      %v948 = vperm.slane %v902, 4
      %v949 = vperm.slane %v903, 4
      %v950 = vmul.f32 %v946, %v948
      %v951 = vmul.f32 %v946, %v949
      %v952 = vadd.f32 %v942, %v950
      %v953 = vadd.f32 %v943, %v951
      %954 = vset.pattern.permute.xlu0 5
      %955 = vperm.xlu0 %954, %v340
      %v956 = vpop.permute.xlu0 %955
      %v958 = vperm.slane %v902, 5
      %v959 = vperm.slane %v903, 5
      %v960 = vmul.f32 %v956, %v958
      %v961 = vmul.f32 %v956, %v959
      %v962 = vadd.f32 %v952, %v960
      %v963 = vadd.f32 %v953, %v961
      %964 = vset.pattern.permute.xlu0 6
      %965 = vperm.xlu0 %964, %v340
      %v966 = vpop.permute.xlu0 %965
      %v968 = vperm.slane %v902, 6
      %v969 = vperm.slane %v903, 6
      %v970 = vmul.f32 %v966, %v968
      %v971 = vmul.f32 %v966, %v969
      %v972 = vadd.f32 %v962, %v970
      %v973 = vadd.f32 %v963, %v971
      %974 = vset.pattern.permute.xlu0 7
      %975 = vperm.xlu0 %974, %v340
      %v976 = vpop.permute.xlu0 %975
      %v978 = vperm.slane %v902, 7
      %v979 = vperm.slane %v903, 7
      %v980 = vmul.f32 %v976, %v978
      %v981 = vmul.f32 %v976, %v979
      %v982 = vadd.f32 %v972, %v980
      %v983 = vadd.f32 %v973, %v981
      %984 = vrot.lane.b32.xlu0 %v885, 16
      %v985 = vpop.permute.xlu0 %984
      %986 = vrot.lane.b32.xlu0 %v886, 16
      %v987 = vpop.permute.xlu0 %986
      %v988 = vsel %vm430, %v425, %v985
      %v989 = vsel %vm430, %v985, %v987
      %v992 = vsel %vm422, %v988, 0.0
      %v993 = vsel %vm423, %v989, 0.0
      %994 = vset.pattern.permute.xlu0 8
      %995 = vperm.xlu0 %994, %v340
      %v996 = vpop.permute.xlu0 %995
      %v998 = vperm.slane %v992, 0
      %v999 = vperm.slane %v993, 0
      %v1000 = vmul.f32 %v996, %v998
      %v1001 = vmul.f32 %v996, %v999
      %v1002 = vadd.f32 %v982, %v1000
      %v1003 = vadd.f32 %v983, %v1001
      %1004 = vset.pattern.permute.xlu0 9
      %1005 = vperm.xlu0 %1004, %v340
      %v1006 = vpop.permute.xlu0 %1005
      %v1008 = vperm.slane %v992, 1
      %v1009 = vperm.slane %v993, 1
      %v1010 = vmul.f32 %v1006, %v1008
      %v1011 = vmul.f32 %v1006, %v1009
      %v1012 = vadd.f32 %v1002, %v1010
      %v1013 = vadd.f32 %v1003, %v1011
      %1014 = vset.pattern.permute.xlu0 10
      %1015 = vperm.xlu0 %1014, %v340
      %v1016 = vpop.permute.xlu0 %1015
      %v1018 = vperm.slane %v992, 2
      %v1019 = vperm.slane %v993, 2
      %v1020 = vmul.f32 %v1016, %v1018
      %v1021 = vmul.f32 %v1016, %v1019
      %v1022 = vadd.f32 %v1012, %v1020
      %v1023 = vadd.f32 %v1013, %v1021
      %1024 = vset.pattern.permute.xlu0 11
      %1025 = vperm.xlu0 %1024, %v340
      %v1026 = vpop.permute.xlu0 %1025
      %v1028 = vperm.slane %v992, 3
      %v1029 = vperm.slane %v993, 3
      %v1030 = vmul.f32 %v1026, %v1028
      %v1031 = vmul.f32 %v1026, %v1029
      %v1032 = vadd.f32 %v1022, %v1030
      %v1033 = vadd.f32 %v1023, %v1031
      %1034 = vset.pattern.permute.xlu0 12
      %1035 = vperm.xlu0 %1034, %v340
      %v1036 = vpop.permute.xlu0 %1035
      %v1038 = vperm.slane %v992, 4
      %v1039 = vperm.slane %v993, 4
      %v1040 = vmul.f32 %v1036, %v1038
      %v1041 = vmul.f32 %v1036, %v1039
      %v1042 = vadd.f32 %v1032, %v1040
      %v1043 = vadd.f32 %v1033, %v1041
      %1044 = vset.pattern.permute.xlu0 13
      %1045 = vperm.xlu0 %1044, %v340
      %v1046 = vpop.permute.xlu0 %1045
      %v1048 = vperm.slane %v992, 5
      %v1049 = vperm.slane %v993, 5
      %v1050 = vmul.f32 %v1046, %v1048
      %v1051 = vmul.f32 %v1046, %v1049
      %v1052 = vadd.f32 %v1042, %v1050
      %v1053 = vadd.f32 %v1043, %v1051
      %1054 = vset.pattern.permute.xlu0 14
      %1055 = vperm.xlu0 %1054, %v340
      %v1056 = vpop.permute.xlu0 %1055
      %v1058 = vperm.slane %v992, 6
      %v1059 = vperm.slane %v993, 6
      %v1060 = vmul.f32 %v1056, %v1058
      %v1061 = vmul.f32 %v1056, %v1059
      %v1062 = vadd.f32 %v1052, %v1060
      %v1063 = vadd.f32 %v1053, %v1061
      %1064 = vset.pattern.permute.xlu0 15
      %1065 = vperm.xlu0 %1064, %v340
      %v1066 = vpop.permute.xlu0 %1065
      %v1068 = vperm.slane %v992, 7
      %v1069 = vperm.slane %v993, 7
      %v1070 = vmul.f32 %v1066, %v1068
      %v1071 = vmul.f32 %v1066, %v1069
      %v1072 = vadd.f32 %v1062, %v1070
      %v1073 = vadd.f32 %v1063, %v1071
      %1074 = vrot.lane.b32.xlu0 %v885, 15
      %v1075 = vpop.permute.xlu0 %1074
      %1076 = vrot.lane.b32.xlu0 %v886, 15
      %v1077 = vpop.permute.xlu0 %1076
      %v1078 = vsel %vm491, %v486, %v1075
      %v1079 = vsel %vm491, %v1075, %v1077
      %v1082 = vsel %vm483, %v1078, 0.0
      %v1083 = vsel %vm484, %v1079, 0.0
      %1084 = vset.pattern.permute.xlu0 16
      %1085 = vperm.xlu0 %1084, %v340
      %v1086 = vpop.permute.xlu0 %1085
      %v1088 = vperm.slane %v1082, 0
      %v1089 = vperm.slane %v1083, 0
      %v1090 = vmul.f32 %v1086, %v1088
      %v1091 = vmul.f32 %v1086, %v1089
      %v1092 = vadd.f32 %v1072, %v1090
      %v1093 = vadd.f32 %v1073, %v1091
      %1094 = vset.pattern.permute.xlu0 17
      %1095 = vperm.xlu0 %1094, %v340
      %v1096 = vpop.permute.xlu0 %1095
      %v1098 = vperm.slane %v1082, 1
      %v1099 = vperm.slane %v1083, 1
      %v1100 = vmul.f32 %v1096, %v1098
      %v1101 = vmul.f32 %v1096, %v1099
      %v1102 = vadd.f32 %v1092, %v1100
      %v1103 = vadd.f32 %v1093, %v1101
      %1104 = vset.pattern.permute.xlu0 18
      %1105 = vperm.xlu0 %1104, %v340
      %v1106 = vpop.permute.xlu0 %1105
      %v1108 = vperm.slane %v1082, 2
      %v1109 = vperm.slane %v1083, 2
      %v1110 = vmul.f32 %v1106, %v1108
      %v1111 = vmul.f32 %v1106, %v1109
      %v1112 = vadd.f32 %v1102, %v1110
      %v1113 = vadd.f32 %v1103, %v1111
      %1114 = vset.pattern.permute.xlu0 19
      %1115 = vperm.xlu0 %1114, %v340
      %v1116 = vpop.permute.xlu0 %1115
      %v1118 = vperm.slane %v1082, 3
      %v1119 = vperm.slane %v1083, 3
      %v1120 = vmul.f32 %v1116, %v1118
      %v1121 = vmul.f32 %v1116, %v1119
      %v1122 = vadd.f32 %v1112, %v1120
      %v1123 = vadd.f32 %v1113, %v1121
      %1124 = vset.pattern.permute.xlu0 20
      %1125 = vperm.xlu0 %1124, %v340
      %v1126 = vpop.permute.xlu0 %1125
      %v1128 = vperm.slane %v1082, 4
      %v1129 = vperm.slane %v1083, 4
      %v1130 = vmul.f32 %v1126, %v1128
      %v1131 = vmul.f32 %v1126, %v1129
      %v1132 = vadd.f32 %v1122, %v1130
      %v1133 = vadd.f32 %v1123, %v1131
      %1134 = vset.pattern.permute.xlu0 21
      %1135 = vperm.xlu0 %1134, %v340
      %v1136 = vpop.permute.xlu0 %1135
      %v1138 = vperm.slane %v1082, 5
      %v1139 = vperm.slane %v1083, 5
      %v1140 = vmul.f32 %v1136, %v1138
      %v1141 = vmul.f32 %v1136, %v1139
      %v1142 = vadd.f32 %v1132, %v1140
      %v1143 = vadd.f32 %v1133, %v1141
      %1144 = vset.pattern.permute.xlu0 22
      %1145 = vperm.xlu0 %1144, %v340
      %v1146 = vpop.permute.xlu0 %1145
      %v1148 = vperm.slane %v1082, 6
      %v1149 = vperm.slane %v1083, 6
      %v1150 = vmul.f32 %v1146, %v1148
      %v1151 = vmul.f32 %v1146, %v1149
      %v1152 = vadd.f32 %v1142, %v1150
      %v1153 = vadd.f32 %v1143, %v1151
      %1154 = vset.pattern.permute.xlu0 23
      %1155 = vperm.xlu0 %1154, %v340
      %v1156 = vpop.permute.xlu0 %1155
      %v1158 = vperm.slane %v1082, 7
      %v1159 = vperm.slane %v1083, 7
      %v1160 = vmul.f32 %v1156, %v1158
      %v1161 = vmul.f32 %v1156, %v1159
      %v1162 = vadd.f32 %v1152, %v1160
      %v1163 = vadd.f32 %v1153, %v1161
      %1164 = vrot.lane.b32.xlu0 %v885, 1
      %v1165 = vpop.permute.xlu0 %1164
      %1166 = vrot.lane.b32.xlu0 %v886, 1
      %v1167 = vpop.permute.xlu0 %1166
      %v1168 = vsel %vm548, %v543, %v1165
      %v1169 = vsel %vm548, %v1165, %v1167
      %v1172 = vsel %vm540, %v1168, 0.0
      %v1173 = vsel %vm541, %v1169, 0.0
      %1174 = vset.pattern.permute.xlu0 24
      %1175 = vperm.xlu0 %1174, %v340
      %v1176 = vpop.permute.xlu0 %1175
      %v1178 = vperm.slane %v1172, 0
      %v1179 = vperm.slane %v1173, 0
      %v1180 = vmul.f32 %v1176, %v1178
      %v1181 = vmul.f32 %v1176, %v1179
      %v1182 = vadd.f32 %v1162, %v1180
      %v1183 = vadd.f32 %v1163, %v1181
      %1184 = vset.pattern.permute.xlu0 25
      %1185 = vperm.xlu0 %1184, %v340
      %v1186 = vpop.permute.xlu0 %1185
      %v1188 = vperm.slane %v1172, 1
      %v1189 = vperm.slane %v1173, 1
      %v1190 = vmul.f32 %v1186, %v1188
      %v1191 = vmul.f32 %v1186, %v1189
      %v1192 = vadd.f32 %v1182, %v1190
      %v1193 = vadd.f32 %v1183, %v1191
      %1194 = vset.pattern.permute.xlu0 26
      %1195 = vperm.xlu0 %1194, %v340
      %v1196 = vpop.permute.xlu0 %1195
      %v1198 = vperm.slane %v1172, 2
      %v1199 = vperm.slane %v1173, 2
      %v1200 = vmul.f32 %v1196, %v1198
      %v1201 = vmul.f32 %v1196, %v1199
      %v1202 = vadd.f32 %v1192, %v1200
      %v1203 = vadd.f32 %v1193, %v1201
      %1204 = vset.pattern.permute.xlu0 27
      %1205 = vperm.xlu0 %1204, %v340
      %v1206 = vpop.permute.xlu0 %1205
      %v1208 = vperm.slane %v1172, 3
      %v1209 = vperm.slane %v1173, 3
      %v1210 = vmul.f32 %v1206, %v1208
      %v1211 = vmul.f32 %v1206, %v1209
      %v1212 = vadd.f32 %v1202, %v1210
      %v1213 = vadd.f32 %v1203, %v1211
      %1214 = vset.pattern.permute.xlu0 28
      %1215 = vperm.xlu0 %1214, %v340
      %v1216 = vpop.permute.xlu0 %1215
      %v1218 = vperm.slane %v1172, 4
      %v1219 = vperm.slane %v1173, 4
      %v1220 = vmul.f32 %v1216, %v1218
      %v1221 = vmul.f32 %v1216, %v1219
      %v1222 = vadd.f32 %v1212, %v1220
      %v1223 = vadd.f32 %v1213, %v1221
      %1224 = vset.pattern.permute.xlu0 29
      %1225 = vperm.xlu0 %1224, %v340
      %v1226 = vpop.permute.xlu0 %1225
      %v1228 = vperm.slane %v1172, 5
      %v1229 = vperm.slane %v1173, 5
      %v1230 = vmul.f32 %v1226, %v1228
      %v1231 = vmul.f32 %v1226, %v1229
      %v1232 = vadd.f32 %v1222, %v1230
      %v1233 = vadd.f32 %v1223, %v1231
      %1234 = vset.pattern.permute.xlu0 30
      %1235 = vperm.xlu0 %1234, %v340
      %v1236 = vpop.permute.xlu0 %1235
      %v1238 = vperm.slane %v1172, 6
      %v1239 = vperm.slane %v1173, 6
      %v1240 = vmul.f32 %v1236, %v1238
      %v1241 = vmul.f32 %v1236, %v1239
      %v1242 = vadd.f32 %v1232, %v1240
      %v1243 = vadd.f32 %v1233, %v1241
      %1244 = vset.pattern.permute.xlu0 31
      %1245 = vperm.xlu0 %1244, %v340
      %v1246 = vpop.permute.xlu0 %1245
      %v1248 = vperm.slane %v1172, 7
      %v1249 = vperm.slane %v1173, 7
      %v1250 = vmul.f32 %v1246, %v1248
      %v1251 = vmul.f32 %v1246, %v1249
      %v1252 = vadd.f32 %v1242, %v1250
      %v1253 = vadd.f32 %v1243, %v1251
      %1254 = vset.pattern.permute.xlu0 32
      %1255 = vperm.xlu0 %1254, %v340
      %v1256 = vpop.permute.xlu0 %1255
      %v1258 = vperm.slane %v885, 0
      %v1259 = vperm.slane %v886, 0
      %v1260 = vmul.f32 %v1256, %v1258
      %v1261 = vmul.f32 %v1256, %v1259
      %v1262 = vadd.f32 %v1252, %v1260
      %v1263 = vadd.f32 %v1253, %v1261
      %1264 = vset.pattern.permute.xlu0 33
      %1265 = vperm.xlu0 %1264, %v340
      %v1266 = vpop.permute.xlu0 %1265
      %v1268 = vperm.slane %v885, 1
      %v1269 = vperm.slane %v886, 1
      %v1270 = vmul.f32 %v1266, %v1268
      %v1271 = vmul.f32 %v1266, %v1269
      %v1272 = vadd.f32 %v1262, %v1270
      %v1273 = vadd.f32 %v1263, %v1271
      %1274 = vset.pattern.permute.xlu0 34
      %1275 = vperm.xlu0 %1274, %v340
      %v1276 = vpop.permute.xlu0 %1275
      %v1278 = vperm.slane %v885, 2
      %v1279 = vperm.slane %v886, 2
      %v1280 = vmul.f32 %v1276, %v1278
      %v1281 = vmul.f32 %v1276, %v1279
      %v1282 = vadd.f32 %v1272, %v1280
      %v1283 = vadd.f32 %v1273, %v1281
      %1284 = vset.pattern.permute.xlu0 35
      %1285 = vperm.xlu0 %1284, %v340
      %v1286 = vpop.permute.xlu0 %1285
      %v1288 = vperm.slane %v885, 3
      %v1289 = vperm.slane %v886, 3
      %v1290 = vmul.f32 %v1286, %v1288
      %v1291 = vmul.f32 %v1286, %v1289
      %v1292 = vadd.f32 %v1282, %v1290
      %v1293 = vadd.f32 %v1283, %v1291
      %1294 = vset.pattern.permute.xlu0 36
      %1295 = vperm.xlu0 %1294, %v340
      %v1296 = vpop.permute.xlu0 %1295
      %v1298 = vperm.slane %v885, 4
      %v1299 = vperm.slane %v886, 4
      %v1300 = vmul.f32 %v1296, %v1298
      %v1301 = vmul.f32 %v1296, %v1299
      %v1302 = vadd.f32 %v1292, %v1300
      %v1303 = vadd.f32 %v1293, %v1301
      %1304 = vset.pattern.permute.xlu0 37
      %1305 = vperm.xlu0 %1304, %v340
      %v1306 = vpop.permute.xlu0 %1305
      %v1308 = vperm.slane %v885, 5
      %v1309 = vperm.slane %v886, 5
      %v1310 = vmul.f32 %v1306, %v1308
      %v1311 = vmul.f32 %v1306, %v1309
      %v1312 = vadd.f32 %v1302, %v1310
      %v1313 = vadd.f32 %v1303, %v1311
      %1314 = vset.pattern.permute.xlu0 38
      %1315 = vperm.xlu0 %1314, %v340
      %v1316 = vpop.permute.xlu0 %1315
      %v1318 = vperm.slane %v885, 6
      %v1319 = vperm.slane %v886, 6
      %v1320 = vmul.f32 %v1316, %v1318
      %v1321 = vmul.f32 %v1316, %v1319
      %v1322 = vadd.f32 %v1312, %v1320
      %v1323 = vadd.f32 %v1313, %v1321
      %1324 = vset.pattern.permute.xlu0 39
      %1325 = vperm.xlu0 %1324, %v340
      %v1326 = vpop.permute.xlu0 %1325
      %v1328 = vperm.slane %v885, 7
      %v1329 = vperm.slane %v886, 7
      %v1330 = vmul.f32 %v1326, %v1328
      %v1331 = vmul.f32 %v1326, %v1329
      %v1332 = vadd.f32 %v1322, %v1330
      %v1333 = vadd.f32 %v1323, %v1331
      %1334 = vrot.lane.b32.xlu0 %v885, 127
      %v1335 = vpop.permute.xlu0 %1334
      %1336 = vrot.lane.b32.xlu0 %v886, 127
      %v1337 = vpop.permute.xlu0 %1336
      %v1338 = vsel %vm661, %v1335, %v1337
      %v1339 = vsel %vm661, %v1337, %v660
      %v1342 = vsel %vm653, %v1338, 0.0
      %v1343 = vsel %vm654, %v1339, 0.0
      %1344 = vset.pattern.permute.xlu0 40
      %1345 = vperm.xlu0 %1344, %v340
      %v1346 = vpop.permute.xlu0 %1345
      %v1348 = vperm.slane %v1342, 0
      %v1349 = vperm.slane %v1343, 0
      %v1350 = vmul.f32 %v1346, %v1348
      %v1351 = vmul.f32 %v1346, %v1349
      %v1352 = vadd.f32 %v1332, %v1350
      %v1353 = vadd.f32 %v1333, %v1351
      %1354 = vset.pattern.permute.xlu0 41
      %1355 = vperm.xlu0 %1354, %v340
      %v1356 = vpop.permute.xlu0 %1355
      %v1358 = vperm.slane %v1342, 1
      %v1359 = vperm.slane %v1343, 1
      %v1360 = vmul.f32 %v1356, %v1358
      %v1361 = vmul.f32 %v1356, %v1359
      %v1362 = vadd.f32 %v1352, %v1360
      %v1363 = vadd.f32 %v1353, %v1361
      %1364 = vset.pattern.permute.xlu0 42
      %1365 = vperm.xlu0 %1364, %v340
      %v1366 = vpop.permute.xlu0 %1365
      %v1368 = vperm.slane %v1342, 2
      %v1369 = vperm.slane %v1343, 2
      %v1370 = vmul.f32 %v1366, %v1368
      %v1371 = vmul.f32 %v1366, %v1369
      %v1372 = vadd.f32 %v1362, %v1370
      %v1373 = vadd.f32 %v1363, %v1371
      %1374 = vset.pattern.permute.xlu0 43
      %1375 = vperm.xlu0 %1374, %v340
      %v1376 = vpop.permute.xlu0 %1375
      %v1378 = vperm.slane %v1342, 3
      %v1379 = vperm.slane %v1343, 3
      %v1380 = vmul.f32 %v1376, %v1378
      %v1381 = vmul.f32 %v1376, %v1379
      %v1382 = vadd.f32 %v1372, %v1380
      %v1383 = vadd.f32 %v1373, %v1381
      %1384 = vset.pattern.permute.xlu0 44
      %1385 = vperm.xlu0 %1384, %v340
      %v1386 = vpop.permute.xlu0 %1385
      %v1388 = vperm.slane %v1342, 4
      %v1389 = vperm.slane %v1343, 4
      %v1390 = vmul.f32 %v1386, %v1388
      %v1391 = vmul.f32 %v1386, %v1389
      %v1392 = vadd.f32 %v1382, %v1390
      %v1393 = vadd.f32 %v1383, %v1391
      %1394 = vset.pattern.permute.xlu0 45
      %1395 = vperm.xlu0 %1394, %v340
      %v1396 = vpop.permute.xlu0 %1395
      %v1398 = vperm.slane %v1342, 5
      %v1399 = vperm.slane %v1343, 5
      %v1400 = vmul.f32 %v1396, %v1398
      %v1401 = vmul.f32 %v1396, %v1399
      %v1402 = vadd.f32 %v1392, %v1400
      %v1403 = vadd.f32 %v1393, %v1401
      %1404 = vset.pattern.permute.xlu0 46
      %1405 = vperm.xlu0 %1404, %v340
      %v1406 = vpop.permute.xlu0 %1405
      %v1408 = vperm.slane %v1342, 6
      %v1409 = vperm.slane %v1343, 6
      %v1410 = vmul.f32 %v1406, %v1408
      %v1411 = vmul.f32 %v1406, %v1409
      %v1412 = vadd.f32 %v1402, %v1410
      %v1413 = vadd.f32 %v1403, %v1411
      %1414 = vset.pattern.permute.xlu0 47
      %1415 = vperm.xlu0 %1414, %v340
      %v1416 = vpop.permute.xlu0 %1415
      %v1418 = vperm.slane %v1342, 7
      %v1419 = vperm.slane %v1343, 7
      %v1420 = vmul.f32 %v1416, %v1418
      %v1421 = vmul.f32 %v1416, %v1419
      %v1422 = vadd.f32 %v1412, %v1420
      %v1423 = vadd.f32 %v1413, %v1421
      %1424 = vrot.lane.b32.xlu0 %v885, 113
      %v1425 = vpop.permute.xlu0 %1424
      %1426 = vrot.lane.b32.xlu0 %v886, 113
      %v1427 = vpop.permute.xlu0 %1426
      %v1428 = vsel %vm722, %v1425, %v1427
      %v1429 = vsel %vm722, %v1427, %v721
      %v1432 = vsel %vm714, %v1428, 0.0
      %v1433 = vsel %vm715, %v1429, 0.0
      %1434 = vset.pattern.permute.xlu0 48
      %1435 = vperm.xlu0 %1434, %v340
      %v1436 = vpop.permute.xlu0 %1435
      %v1438 = vperm.slane %v1432, 0
      %v1439 = vperm.slane %v1433, 0
      %v1440 = vmul.f32 %v1436, %v1438
      %v1441 = vmul.f32 %v1436, %v1439
      %v1442 = vadd.f32 %v1422, %v1440
      %v1443 = vadd.f32 %v1423, %v1441
      %1444 = vset.pattern.permute.xlu0 49
      %1445 = vperm.xlu0 %1444, %v340
      %v1446 = vpop.permute.xlu0 %1445
      %v1448 = vperm.slane %v1432, 1
      %v1449 = vperm.slane %v1433, 1
      %v1450 = vmul.f32 %v1446, %v1448
      %v1451 = vmul.f32 %v1446, %v1449
      %v1452 = vadd.f32 %v1442, %v1450
      %v1453 = vadd.f32 %v1443, %v1451
      %1454 = vset.pattern.permute.xlu0 50
      %1455 = vperm.xlu0 %1454, %v340
      %v1456 = vpop.permute.xlu0 %1455
      %v1458 = vperm.slane %v1432, 2
      %v1459 = vperm.slane %v1433, 2
      %v1460 = vmul.f32 %v1456, %v1458
      %v1461 = vmul.f32 %v1456, %v1459
      %v1462 = vadd.f32 %v1452, %v1460
      %v1463 = vadd.f32 %v1453, %v1461
      %1464 = vset.pattern.permute.xlu0 51
      %1465 = vperm.xlu0 %1464, %v340
      %v1466 = vpop.permute.xlu0 %1465
      %v1468 = vperm.slane %v1432, 3
      %v1469 = vperm.slane %v1433, 3
      %v1470 = vmul.f32 %v1466, %v1468
      %v1471 = vmul.f32 %v1466, %v1469
      %v1472 = vadd.f32 %v1462, %v1470
      %v1473 = vadd.f32 %v1463, %v1471
      %1474 = vset.pattern.permute.xlu0 52
      %1475 = vperm.xlu0 %1474, %v340
      %v1476 = vpop.permute.xlu0 %1475
      %v1478 = vperm.slane %v1432, 4
      %v1479 = vperm.slane %v1433, 4
      %v1480 = vmul.f32 %v1476, %v1478
      %v1481 = vmul.f32 %v1476, %v1479
      %v1482 = vadd.f32 %v1472, %v1480
      %v1483 = vadd.f32 %v1473, %v1481
      %1484 = vset.pattern.permute.xlu0 53
      %1485 = vperm.xlu0 %1484, %v340
      %v1486 = vpop.permute.xlu0 %1485
      %v1488 = vperm.slane %v1432, 5
      %v1489 = vperm.slane %v1433, 5
      %v1490 = vmul.f32 %v1486, %v1488
      %v1491 = vmul.f32 %v1486, %v1489
      %v1492 = vadd.f32 %v1482, %v1490
      %v1493 = vadd.f32 %v1483, %v1491
      %1494 = vset.pattern.permute.xlu0 54
      %1495 = vperm.xlu0 %1494, %v340
      %v1496 = vpop.permute.xlu0 %1495
      %v1498 = vperm.slane %v1432, 6
      %v1499 = vperm.slane %v1433, 6
      %v1500 = vmul.f32 %v1496, %v1498
      %v1501 = vmul.f32 %v1496, %v1499
      %v1502 = vadd.f32 %v1492, %v1500
      %v1503 = vadd.f32 %v1493, %v1501
      %1504 = vset.pattern.permute.xlu0 55
      %1505 = vperm.xlu0 %1504, %v340
      %v1506 = vpop.permute.xlu0 %1505
      %v1508 = vperm.slane %v1432, 7
      %v1509 = vperm.slane %v1433, 7
      %v1510 = vmul.f32 %v1506, %v1508
      %v1511 = vmul.f32 %v1506, %v1509
      %v1512 = vadd.f32 %v1502, %v1510
      %v1513 = vadd.f32 %v1503, %v1511
      %1514 = vrot.lane.b32.xlu0 %v885, 112
      %v1515 = vpop.permute.xlu0 %1514
      %1516 = vrot.lane.b32.xlu0 %v886, 112
      %v1517 = vpop.permute.xlu0 %1516
      %v1518 = vsel %vm779, %v1515, %v1517
      %v1519 = vsel %vm779, %v1517, %v778
      %v1522 = vsel %vm771, %v1518, 0.0
      %v1523 = vsel %vm772, %v1519, 0.0
      %1524 = vset.pattern.permute.xlu0 56
      %1525 = vperm.xlu0 %1524, %v340
      %v1526 = vpop.permute.xlu0 %1525
      %v1528 = vperm.slane %v1522, 0
      %v1529 = vperm.slane %v1523, 0
      %v1530 = vmul.f32 %v1526, %v1528
      %v1531 = vmul.f32 %v1526, %v1529
      %v1532 = vadd.f32 %v1512, %v1530
      %v1533 = vadd.f32 %v1513, %v1531
      %1534 = vset.pattern.permute.xlu0 57
      %1535 = vperm.xlu0 %1534, %v340
      %v1536 = vpop.permute.xlu0 %1535
      %v1538 = vperm.slane %v1522, 1
      %v1539 = vperm.slane %v1523, 1
      %v1540 = vmul.f32 %v1536, %v1538
      %v1541 = vmul.f32 %v1536, %v1539
      %v1542 = vadd.f32 %v1532, %v1540
      %v1543 = vadd.f32 %v1533, %v1541
      %1544 = vset.pattern.permute.xlu0 58
      %1545 = vperm.xlu0 %1544, %v340
      %v1546 = vpop.permute.xlu0 %1545
      %v1548 = vperm.slane %v1522, 2
      %v1549 = vperm.slane %v1523, 2
      %v1550 = vmul.f32 %v1546, %v1548
      %v1551 = vmul.f32 %v1546, %v1549
      %v1552 = vadd.f32 %v1542, %v1550
      %v1553 = vadd.f32 %v1543, %v1551
      %1554 = vset.pattern.permute.xlu0 59
      %1555 = vperm.xlu0 %1554, %v340
      %v1556 = vpop.permute.xlu0 %1555
      %v1558 = vperm.slane %v1522, 3
      %v1559 = vperm.slane %v1523, 3
      %v1560 = vmul.f32 %v1556, %v1558
      %v1561 = vmul.f32 %v1556, %v1559
      %v1562 = vadd.f32 %v1552, %v1560
      %v1563 = vadd.f32 %v1553, %v1561
      %1564 = vset.pattern.permute.xlu0 60
      %1565 = vperm.xlu0 %1564, %v340
      %v1566 = vpop.permute.xlu0 %1565
      %v1568 = vperm.slane %v1522, 4
      %v1569 = vperm.slane %v1523, 4
      %v1570 = vmul.f32 %v1566, %v1568
      %v1571 = vmul.f32 %v1566, %v1569
      %v1572 = vadd.f32 %v1562, %v1570
      %v1573 = vadd.f32 %v1563, %v1571
      %1574 = vset.pattern.permute.xlu0 61
      %1575 = vperm.xlu0 %1574, %v340
      %v1576 = vpop.permute.xlu0 %1575
      %v1578 = vperm.slane %v1522, 5
      %v1579 = vperm.slane %v1523, 5
      %v1580 = vmul.f32 %v1576, %v1578
      %v1581 = vmul.f32 %v1576, %v1579
      %v1582 = vadd.f32 %v1572, %v1580
      %v1583 = vadd.f32 %v1573, %v1581
      %1584 = vset.pattern.permute.xlu0 62
      %1585 = vperm.xlu0 %1584, %v340
      %v1586 = vpop.permute.xlu0 %1585
      %v1588 = vperm.slane %v1522, 6
      %v1589 = vperm.slane %v1523, 6
      %v1590 = vmul.f32 %v1586, %v1588
      %v1591 = vmul.f32 %v1586, %v1589
      %v1592 = vadd.f32 %v1582, %v1590
      %v1593 = vadd.f32 %v1583, %v1591
      %1594 = vset.pattern.permute.xlu0 63
      %1595 = vperm.xlu0 %1594, %v340
      %v1596 = vpop.permute.xlu0 %1595
      %v1598 = vperm.slane %v1522, 7
      %v1599 = vperm.slane %v1523, 7
      %v1600 = vmul.f32 %v1596, %v1598
      %v1601 = vmul.f32 %v1596, %v1599
      %v1602 = vadd.f32 %v1592, %v1600
      %v1603 = vadd.f32 %v1593, %v1601
      %1604 = vrot.lane.b32.xlu0 %v885, 111
      %v1605 = vpop.permute.xlu0 %1604
      %1606 = vrot.lane.b32.xlu0 %v886, 111
      %v1607 = vpop.permute.xlu0 %1606
      %v1608 = vsel %vm838, %v1605, %v1607
      %v1609 = vsel %vm838, %v1607, %v837
      %v1612 = vsel %vm830, %v1608, 0.0
      %v1613 = vsel %vm831, %v1609, 0.0
      %1614 = vset.pattern.permute.xlu0 64
      %1615 = vperm.xlu0 %1614, %v340
      %v1616 = vpop.permute.xlu0 %1615
      %v1618 = vperm.slane %v1612, 0
      %v1619 = vperm.slane %v1613, 0
      %v1620 = vmul.f32 %v1616, %v1618
      %v1621 = vmul.f32 %v1616, %v1619
      %v1622 = vadd.f32 %v1602, %v1620
      %v1623 = vadd.f32 %v1603, %v1621
      %1624 = vset.pattern.permute.xlu0 65
      %1625 = vperm.xlu0 %1624, %v340
      %v1626 = vpop.permute.xlu0 %1625
      %v1628 = vperm.slane %v1612, 1
      %v1629 = vperm.slane %v1613, 1
      %v1630 = vmul.f32 %v1626, %v1628
      %v1631 = vmul.f32 %v1626, %v1629
      %v1632 = vadd.f32 %v1622, %v1630
      %v1633 = vadd.f32 %v1623, %v1631
      %1634 = vset.pattern.permute.xlu0 66
      %1635 = vperm.xlu0 %1634, %v340
      %v1636 = vpop.permute.xlu0 %1635
      %v1638 = vperm.slane %v1612, 2
      %v1639 = vperm.slane %v1613, 2
      %v1640 = vmul.f32 %v1636, %v1638
      %v1641 = vmul.f32 %v1636, %v1639
      %v1642 = vadd.f32 %v1632, %v1640
      %v1643 = vadd.f32 %v1633, %v1641
      %1644 = vset.pattern.permute.xlu0 67
      %1645 = vperm.xlu0 %1644, %v340
      %v1646 = vpop.permute.xlu0 %1645
      %v1648 = vperm.slane %v1612, 3
      %v1649 = vperm.slane %v1613, 3
      %v1650 = vmul.f32 %v1646, %v1648
      %v1651 = vmul.f32 %v1646, %v1649
      %v1652 = vadd.f32 %v1642, %v1650
      %v1653 = vadd.f32 %v1643, %v1651
      %1654 = vset.pattern.permute.xlu0 68
      %1655 = vperm.xlu0 %1654, %v340
      %v1656 = vpop.permute.xlu0 %1655
      %v1658 = vperm.slane %v1612, 4
      %v1659 = vperm.slane %v1613, 4
      %v1660 = vmul.f32 %v1656, %v1658
      %v1661 = vmul.f32 %v1656, %v1659
      %v1662 = vadd.f32 %v1652, %v1660
      %v1663 = vadd.f32 %v1653, %v1661
      %1664 = vset.pattern.permute.xlu0 69
      %1665 = vperm.xlu0 %1664, %v340
      %v1666 = vpop.permute.xlu0 %1665
      %v1668 = vperm.slane %v1612, 5
      %v1669 = vperm.slane %v1613, 5
      %v1670 = vmul.f32 %v1666, %v1668
      %v1671 = vmul.f32 %v1666, %v1669
      %v1672 = vadd.f32 %v1662, %v1670
      %v1673 = vadd.f32 %v1663, %v1671
      %1674 = vset.pattern.permute.xlu0 70
      %1675 = vperm.xlu0 %1674, %v340
      %v1676 = vpop.permute.xlu0 %1675
      %v1678 = vperm.slane %v1612, 6
      %v1679 = vperm.slane %v1613, 6
      %v1680 = vmul.f32 %v1676, %v1678
      %v1681 = vmul.f32 %v1676, %v1679
      %v1682 = vadd.f32 %v1672, %v1680
      %v1683 = vadd.f32 %v1673, %v1681
      %1684 = vset.pattern.permute.xlu0 71
      %1685 = vperm.xlu0 %1684, %v340
      %v1686 = vpop.permute.xlu0 %1685
      %v1688 = vperm.slane %v1612, 7
      %v1689 = vperm.slane %v1613, 7
      %v1690 = vmul.f32 %v1686, %v1688
      %v1691 = vmul.f32 %v1686, %v1689
      %v1692 = vadd.f32 %v1682, %v1690
      %v1693 = vadd.f32 %v1683, %v1691
      %v1694 = vmax.f32 %v1692, 0.0
      %v1695 = vmax.f32 %v1693, 0.0
      %1697 = vset.pattern.permute.xlu0 8
      %1698 = vperm.xlu0 %1697, %v343
      %v1699 = vpop.permute.xlu0 %1698
      %1701 = vset.pattern.permute.xlu0 0
      %1702 = vperm.xlu0 %1701, %v343
      %v1703 = vpop.permute.xlu0 %1702
      %v1705 = vperm.slane %v1694, 0
      %v1706 = vperm.slane %v1695, 0
      %v1707 = vmul.f32 %v1703, %v1705
      %v1708 = vmul.f32 %v1703, %v1706
      %v1709 = vadd.f32 %v1699, %v1707
      %v1710 = vadd.f32 %v1699, %v1708
      %1711 = vset.pattern.permute.xlu0 1
      %1712 = vperm.xlu0 %1711, %v343
      %v1713 = vpop.permute.xlu0 %1712
      %v1715 = vperm.slane %v1694, 1
      %v1716 = vperm.slane %v1695, 1
      %v1717 = vmul.f32 %v1713, %v1715
      %v1718 = vmul.f32 %v1713, %v1716
      %v1719 = vadd.f32 %v1709, %v1717
      %v1720 = vadd.f32 %v1710, %v1718
      %1721 = vset.pattern.permute.xlu0 2
      %1722 = vperm.xlu0 %1721, %v343
      %v1723 = vpop.permute.xlu0 %1722
      %v1725 = vperm.slane %v1694, 2
      %v1726 = vperm.slane %v1695, 2
      %v1727 = vmul.f32 %v1723, %v1725
      %v1728 = vmul.f32 %v1723, %v1726
      %v1729 = vadd.f32 %v1719, %v1727
      %v1730 = vadd.f32 %v1720, %v1728
      %1731 = vset.pattern.permute.xlu0 3
      %1732 = vperm.xlu0 %1731, %v343
      %v1733 = vpop.permute.xlu0 %1732
      %v1735 = vperm.slane %v1694, 3
      %v1736 = vperm.slane %v1695, 3
      %v1737 = vmul.f32 %v1733, %v1735
      %v1738 = vmul.f32 %v1733, %v1736
      %v1739 = vadd.f32 %v1729, %v1737
      %v1740 = vadd.f32 %v1730, %v1738
      %1741 = vset.pattern.permute.xlu0 4
      %1742 = vperm.xlu0 %1741, %v343
      %v1743 = vpop.permute.xlu0 %1742
      %v1745 = vperm.slane %v1694, 4
      %v1746 = vperm.slane %v1695, 4
      %v1747 = vmul.f32 %v1743, %v1745
      %v1748 = vmul.f32 %v1743, %v1746
      %v1749 = vadd.f32 %v1739, %v1747
      %v1750 = vadd.f32 %v1740, %v1748
      %1751 = vset.pattern.permute.xlu0 5
      %1752 = vperm.xlu0 %1751, %v343
      %v1753 = vpop.permute.xlu0 %1752
      %v1755 = vperm.slane %v1694, 5
      %v1756 = vperm.slane %v1695, 5
      %v1757 = vmul.f32 %v1753, %v1755
      %v1758 = vmul.f32 %v1753, %v1756
      %v1759 = vadd.f32 %v1749, %v1757
      %v1760 = vadd.f32 %v1750, %v1758
      %1761 = vset.pattern.permute.xlu0 6
      %1762 = vperm.xlu0 %1761, %v343
      %v1763 = vpop.permute.xlu0 %1762
      %v1765 = vperm.slane %v1694, 6
      %v1766 = vperm.slane %v1695, 6
      %v1767 = vmul.f32 %v1763, %v1765
      %v1768 = vmul.f32 %v1763, %v1766
      %v1769 = vadd.f32 %v1759, %v1767
      %v1770 = vadd.f32 %v1760, %v1768
      %1771 = vset.pattern.permute.xlu0 7
      %1772 = vperm.xlu0 %1771, %v343
      %v1773 = vpop.permute.xlu0 %1772
      %v1775 = vperm.slane %v1694, 7
      %v1776 = vperm.slane %v1695, 7
      %v1777 = vmul.f32 %v1773, %v1775
      %v1778 = vmul.f32 %v1773, %v1776
      %v1779 = vadd.f32 %v1769, %v1777
      %v1780 = vadd.f32 %v1770, %v1778
      %1781 = vst [vmem:[#allocation1] ss:$2 sm:$0xff] %v333
      %v1782 = vld.sshfl [vmem:[#allocation1] sm:$0xff pattern:$0x75316420]
      %v1783 = vld.sshfl [vmem:[#allocation1 + $0x8] sm:$0xff pattern:$0x75316420]
      %v1786 = vadd.f32 %v1779, %v1782
      %v1787 = vadd.f32 %v1780, %v1783
      %v1788 = vmax.f32 %v1786, 0.0
      %v1789 = vmax.f32 %v1787, 0.0
      %1791 = vset.pattern.permute.xlu0 100
      %1792 = vperm.xlu0 %1791, %v341
      %v1793 = vpop.permute.xlu0 %1792
      %vm1795 = vcmp.ge.s32.totalorder %v337, 2
      %vm1796 = vcmp.ge.s32.totalorder %v338, 2
      %vm1797 = vcmp.ge.s32.totalorder %v335, 32
      %vm1798 = vcmp.ge.s32.totalorder %v336, 32
      %vm1799 = vmand %vm1795, %vm1797
      %vm1800 = vmand %vm1796, %vm1798
      %v1801 = vsel %vm1799, 1, 0
      %v1802 = vsel %vm1800, 1, 0
      %vm1803 = vcmp.eq.s32.totalorder %v1801, 1
      %vm1804 = vcmp.eq.s32.totalorder %v1802, 1
      %1805 = vrot.lane.b32.xlu0 0.0, 34
      %v1806 = vpop.permute.xlu0 %1805
      %1807 = vrot.lane.b32.xlu0 %v349, 34
      %v1808 = vpop.permute.xlu0 %1807
      %1809 = vrot.lane.b32.xlu0 %v350, 34
      %v1810 = vpop.permute.xlu0 %1809
      %vm1811 = vcmask 277504
      %v1812 = vsel %vm1811, %v1806, %v1808
      %v1813 = vsel %vm1811, %v1808, %v1810
      %v1816 = vsel %vm1803, %v1812, 0.0
      %v1817 = vsel %vm1804, %v1813, 0.0
      %1818 = vset.pattern.permute.xlu0 0
      %1819 = vperm.xlu0 %1818, %v341
      %v1820 = vpop.permute.xlu0 %1819
      %v1822 = vperm.slane %v1816, 0
      %v1823 = vperm.slane %v1817, 0
      %v1824 = vmul.f32 %v1820, %v1822
      %v1825 = vmul.f32 %v1820, %v1823
      %v1826 = vadd.f32 %v1793, %v1824
      %v1827 = vadd.f32 %v1793, %v1825
      %1828 = vset.pattern.permute.xlu0 1
      %1829 = vperm.xlu0 %1828, %v341
      %v1830 = vpop.permute.xlu0 %1829
      %v1832 = vperm.slane %v1816, 1
      %v1833 = vperm.slane %v1817, 1
      %v1834 = vmul.f32 %v1830, %v1832
      %v1835 = vmul.f32 %v1830, %v1833
      %v1836 = vadd.f32 %v1826, %v1834
      %v1837 = vadd.f32 %v1827, %v1835
      %1838 = vset.pattern.permute.xlu0 2
      %1839 = vperm.xlu0 %1838, %v341
      %v1840 = vpop.permute.xlu0 %1839
      %v1842 = vperm.slane %v1816, 2
      %v1843 = vperm.slane %v1817, 2
      %v1844 = vmul.f32 %v1840, %v1842
      %v1845 = vmul.f32 %v1840, %v1843
      %v1846 = vadd.f32 %v1836, %v1844
      %v1847 = vadd.f32 %v1837, %v1845
      %1848 = vset.pattern.permute.xlu0 3
      %1849 = vperm.xlu0 %1848, %v341
      %v1850 = vpop.permute.xlu0 %1849
      %v1852 = vperm.slane %v1816, 3
      %v1853 = vperm.slane %v1817, 3
      %v1854 = vmul.f32 %v1850, %v1852
      %v1855 = vmul.f32 %v1850, %v1853
      %v1856 = vadd.f32 %v1846, %v1854
      %v1857 = vadd.f32 %v1847, %v1855
      %vm1858 = vmand %vm356, %vm1797
      %vm1859 = vmand %vm357, %vm1798
      %v1860 = vsel %vm1858, 1, 0
      %v1861 = vsel %vm1859, 1, 0
      %vm1862 = vcmp.eq.s32.totalorder %v1860, 1
      %vm1863 = vcmp.eq.s32.totalorder %v1861, 1
      %1864 = vrot.lane.b32.xlu0 0.0, 33
      %v1865 = vpop.permute.xlu0 %1864
      %1866 = vrot.lane.b32.xlu0 %v349, 33
      %v1867 = vpop.permute.xlu0 %1866
      %1868 = vrot.lane.b32.xlu0 %v350, 33
      %v1869 = vpop.permute.xlu0 %1868
      %vm1870 = vcmask 269312
      %v1871 = vsel %vm1870, %v1865, %v1867
      %v1872 = vsel %vm1870, %v1867, %v1869
      %v1875 = vsel %vm1862, %v1871, 0.0
      %v1876 = vsel %vm1863, %v1872, 0.0
      %1877 = vset.pattern.permute.xlu0 4
      %1878 = vperm.xlu0 %1877, %v341
      %v1879 = vpop.permute.xlu0 %1878
      %v1881 = vperm.slane %v1875, 0
      %v1882 = vperm.slane %v1876, 0
      %v1883 = vmul.f32 %v1879, %v1881
      %v1884 = vmul.f32 %v1879, %v1882
      %v1885 = vadd.f32 %v1856, %v1883
      %v1886 = vadd.f32 %v1857, %v1884
      %1887 = vset.pattern.permute.xlu0 5
      %1888 = vperm.xlu0 %1887, %v341
      %v1889 = vpop.permute.xlu0 %1888
      %v1891 = vperm.slane %v1875, 1
      %v1892 = vperm.slane %v1876, 1
      %v1893 = vmul.f32 %v1889, %v1891
      %v1894 = vmul.f32 %v1889, %v1892
      %v1895 = vadd.f32 %v1885, %v1893
      %v1896 = vadd.f32 %v1886, %v1894
      %1897 = vset.pattern.permute.xlu0 6
      %1898 = vperm.xlu0 %1897, %v341
      %v1899 = vpop.permute.xlu0 %1898
      %v1901 = vperm.slane %v1875, 2
      %v1902 = vperm.slane %v1876, 2
      %v1903 = vmul.f32 %v1899, %v1901
      %v1904 = vmul.f32 %v1899, %v1902
      %v1905 = vadd.f32 %v1895, %v1903
      %v1906 = vadd.f32 %v1896, %v1904
      %1907 = vset.pattern.permute.xlu0 7
      %1908 = vperm.xlu0 %1907, %v341
      %v1909 = vpop.permute.xlu0 %1908
      %v1911 = vperm.slane %v1875, 3
      %v1912 = vperm.slane %v1876, 3
      %v1913 = vmul.f32 %v1909, %v1911
      %v1914 = vmul.f32 %v1909, %v1912
      %v1915 = vadd.f32 %v1905, %v1913
      %v1916 = vadd.f32 %v1906, %v1914
      %v1917 = vsel %vm1797, 1, 0
      %v1918 = vsel %vm1798, 1, 0
      %vm1919 = vcmp.eq.s32.totalorder %v1917, 1
      %vm1920 = vcmp.eq.s32.totalorder %v1918, 1
      %1921 = vrot.lane.b32.xlu0 0.0, 32
      %v1922 = vpop.permute.xlu0 %1921
      %1923 = vrot.lane.b32.xlu0 %v349, 32
      %v1924 = vpop.permute.xlu0 %1923
      %1925 = vrot.lane.b32.xlu0 %v350, 32
      %v1926 = vpop.permute.xlu0 %1925
      %vm1927 = vcmask 261120
      %v1928 = vsel %vm1927, %v1922, %v1924
      %v1929 = vsel %vm1927, %v1924, %v1926
      %v1932 = vsel %vm1919, %v1928, 0.0
      %v1933 = vsel %vm1920, %v1929, 0.0
      %1934 = vset.pattern.permute.xlu0 8
      %1935 = vperm.xlu0 %1934, %v341
      %v1936 = vpop.permute.xlu0 %1935
      %v1938 = vperm.slane %v1932, 0
      %v1939 = vperm.slane %v1933, 0
      %v1940 = vmul.f32 %v1936, %v1938
      %v1941 = vmul.f32 %v1936, %v1939
      %v1942 = vadd.f32 %v1915, %v1940
      %v1943 = vadd.f32 %v1916, %v1941
      %1944 = vset.pattern.permute.xlu0 9
      %1945 = vperm.xlu0 %1944, %v341
      %v1946 = vpop.permute.xlu0 %1945
      %v1948 = vperm.slane %v1932, 1
      %v1949 = vperm.slane %v1933, 1
      %v1950 = vmul.f32 %v1946, %v1948
      %v1951 = vmul.f32 %v1946, %v1949
      %v1952 = vadd.f32 %v1942, %v1950
      %v1953 = vadd.f32 %v1943, %v1951
      %1954 = vset.pattern.permute.xlu0 10
      %1955 = vperm.xlu0 %1954, %v341
      %v1956 = vpop.permute.xlu0 %1955
      %v1958 = vperm.slane %v1932, 2
      %v1959 = vperm.slane %v1933, 2
      %v1960 = vmul.f32 %v1956, %v1958
      %v1961 = vmul.f32 %v1956, %v1959
      %v1962 = vadd.f32 %v1952, %v1960
      %v1963 = vadd.f32 %v1953, %v1961
      %1964 = vset.pattern.permute.xlu0 11
      %1965 = vperm.xlu0 %1964, %v341
      %v1966 = vpop.permute.xlu0 %1965
      %v1968 = vperm.slane %v1932, 3
      %v1969 = vperm.slane %v1933, 3
      %v1970 = vmul.f32 %v1966, %v1968
      %v1971 = vmul.f32 %v1966, %v1969
      %v1972 = vadd.f32 %v1962, %v1970
      %v1973 = vadd.f32 %v1963, %v1971
      %vm1974 = vmand %vm477, %vm1797
      %vm1975 = vmand %vm478, %vm1798
      %v1976 = vsel %vm1974, 1, 0
      %v1977 = vsel %vm1975, 1, 0
      %vm1978 = vcmp.eq.s32.totalorder %v1976, 1
      %vm1979 = vcmp.eq.s32.totalorder %v1977, 1
      %1980 = vrot.lane.b32.xlu0 0.0, 31
      %v1981 = vpop.permute.xlu0 %1980
      %1982 = vrot.lane.b32.xlu0 %v349, 31
      %v1983 = vpop.permute.xlu0 %1982
      %1984 = vrot.lane.b32.xlu0 %v350, 31
      %v1985 = vpop.permute.xlu0 %1984
      %vm1986 = vcmask 252928
      %v1987 = vsel %vm1986, %v1981, %v1983
      %v1988 = vsel %vm1986, %v1983, %v1985
      %v1991 = vsel %vm1978, %v1987, 0.0
      %v1992 = vsel %vm1979, %v1988, 0.0
      %1993 = vset.pattern.permute.xlu0 12
      %1994 = vperm.xlu0 %1993, %v341
      %v1995 = vpop.permute.xlu0 %1994
      %v1997 = vperm.slane %v1991, 0
      %v1998 = vperm.slane %v1992, 0
      %v1999 = vmul.f32 %v1995, %v1997
      %v2000 = vmul.f32 %v1995, %v1998
      %v2001 = vadd.f32 %v1972, %v1999
      %v2002 = vadd.f32 %v1973, %v2000
      %2003 = vset.pattern.permute.xlu0 13
      %2004 = vperm.xlu0 %2003, %v341
      %v2005 = vpop.permute.xlu0 %2004
      %v2007 = vperm.slane %v1991, 1
      %v2008 = vperm.slane %v1992, 1
      %v2009 = vmul.f32 %v2005, %v2007
      %v2010 = vmul.f32 %v2005, %v2008
      %v2011 = vadd.f32 %v2001, %v2009
      %v2012 = vadd.f32 %v2002, %v2010
      %2013 = vset.pattern.permute.xlu0 14
      %2014 = vperm.xlu0 %2013, %v341
      %v2015 = vpop.permute.xlu0 %2014
      %v2017 = vperm.slane %v1991, 2
      %v2018 = vperm.slane %v1992, 2
      %v2019 = vmul.f32 %v2015, %v2017
      %v2020 = vmul.f32 %v2015, %v2018
      %v2021 = vadd.f32 %v2011, %v2019
      %v2022 = vadd.f32 %v2012, %v2020
      %2023 = vset.pattern.permute.xlu0 15
      %2024 = vperm.xlu0 %2023, %v341
      %v2025 = vpop.permute.xlu0 %2024
      %v2027 = vperm.slane %v1991, 3
      %v2028 = vperm.slane %v1992, 3
      %v2029 = vmul.f32 %v2025, %v2027
      %v2030 = vmul.f32 %v2025, %v2028
      %v2031 = vadd.f32 %v2021, %v2029
      %v2032 = vadd.f32 %v2022, %v2030
      %vm2033 = vcmp.lt.s32.totalorder %v337, 14
      %vm2034 = vcmp.lt.s32.totalorder %v338, 14
      %vm2035 = vmand %vm2033, %vm1797
      %vm2036 = vmand %vm2034, %vm1798
      %v2037 = vsel %vm2035, 1, 0
      %v2038 = vsel %vm2036, 1, 0
      %vm2039 = vcmp.eq.s32.totalorder %v2037, 1
      %vm2040 = vcmp.eq.s32.totalorder %v2038, 1
      %2041 = vrot.lane.b32.xlu0 0.0, 30
      %v2042 = vpop.permute.xlu0 %2041
      %2043 = vrot.lane.b32.xlu0 %v349, 30
      %v2044 = vpop.permute.xlu0 %2043
      %2045 = vrot.lane.b32.xlu0 %v350, 30
      %v2046 = vpop.permute.xlu0 %2045
      %vm2047 = vcmask 244736
      %v2048 = vsel %vm2047, %v2042, %v2044
      %v2049 = vsel %vm2047, %v2044, %v2046
      %v2052 = vsel %vm2039, %v2048, 0.0
      %v2053 = vsel %vm2040, %v2049, 0.0
      %2054 = vset.pattern.permute.xlu0 16
      %2055 = vperm.xlu0 %2054, %v341
      %v2056 = vpop.permute.xlu0 %2055
      %v2058 = vperm.slane %v2052, 0
      %v2059 = vperm.slane %v2053, 0
      %v2060 = vmul.f32 %v2056, %v2058
      %v2061 = vmul.f32 %v2056, %v2059
      %v2062 = vadd.f32 %v2031, %v2060
      %v2063 = vadd.f32 %v2032, %v2061
      %2064 = vset.pattern.permute.xlu0 17
      %2065 = vperm.xlu0 %2064, %v341
      %v2066 = vpop.permute.xlu0 %2065
      %v2068 = vperm.slane %v2052, 1
      %v2069 = vperm.slane %v2053, 1
      %v2070 = vmul.f32 %v2066, %v2068
      %v2071 = vmul.f32 %v2066, %v2069
      %v2072 = vadd.f32 %v2062, %v2070
      %v2073 = vadd.f32 %v2063, %v2071
      %2074 = vset.pattern.permute.xlu0 18
      %2075 = vperm.xlu0 %2074, %v341
      %v2076 = vpop.permute.xlu0 %2075
      %v2078 = vperm.slane %v2052, 2
      %v2079 = vperm.slane %v2053, 2
      %v2080 = vmul.f32 %v2076, %v2078
      %v2081 = vmul.f32 %v2076, %v2079
      %v2082 = vadd.f32 %v2072, %v2080
      %v2083 = vadd.f32 %v2073, %v2081
      %2084 = vset.pattern.permute.xlu0 19
      %2085 = vperm.xlu0 %2084, %v341
      %v2086 = vpop.permute.xlu0 %2085
      %v2088 = vperm.slane %v2052, 3
      %v2089 = vperm.slane %v2053, 3
      %v2090 = vmul.f32 %v2086, %v2088
      %v2091 = vmul.f32 %v2086, %v2089
      %v2092 = vadd.f32 %v2082, %v2090
      %v2093 = vadd.f32 %v2083, %v2091
      %vm2094 = vmand %vm1795, %vm358
      %vm2095 = vmand %vm1796, %vm359
      %v2096 = vsel %vm2094, 1, 0
      %v2097 = vsel %vm2095, 1, 0
      %vm2098 = vcmp.eq.s32.totalorder %v2096, 1
      %vm2099 = vcmp.eq.s32.totalorder %v2097, 1
      %2100 = vrot.lane.b32.xlu0 0.0, 18
      %v2101 = vpop.permute.xlu0 %2100
      %2102 = vrot.lane.b32.xlu0 %v349, 18
      %v2103 = vpop.permute.xlu0 %2102
      %2104 = vrot.lane.b32.xlu0 %v350, 18
      %v2105 = vpop.permute.xlu0 %2104
      %vm2106 = vcmask 146432
      %v2107 = vsel %vm2106, %v2101, %v2103
      %v2108 = vsel %vm2106, %v2103, %v2105
      %v2111 = vsel %vm2098, %v2107, 0.0
      %v2112 = vsel %vm2099, %v2108, 0.0
      %2113 = vset.pattern.permute.xlu0 20
      %2114 = vperm.xlu0 %2113, %v341
      %v2115 = vpop.permute.xlu0 %2114
      %v2117 = vperm.slane %v2111, 0
      %v2118 = vperm.slane %v2112, 0
      %v2119 = vmul.f32 %v2115, %v2117
      %v2120 = vmul.f32 %v2115, %v2118
      %v2121 = vadd.f32 %v2092, %v2119
      %v2122 = vadd.f32 %v2093, %v2120
      %2123 = vset.pattern.permute.xlu0 21
      %2124 = vperm.xlu0 %2123, %v341
      %v2125 = vpop.permute.xlu0 %2124
      %v2127 = vperm.slane %v2111, 1
      %v2128 = vperm.slane %v2112, 1
      %v2129 = vmul.f32 %v2125, %v2127
      %v2130 = vmul.f32 %v2125, %v2128
      %v2131 = vadd.f32 %v2121, %v2129
      %v2132 = vadd.f32 %v2122, %v2130
      %2133 = vset.pattern.permute.xlu0 22
      %2134 = vperm.xlu0 %2133, %v341
      %v2135 = vpop.permute.xlu0 %2134
      %v2137 = vperm.slane %v2111, 2
      %v2138 = vperm.slane %v2112, 2
      %v2139 = vmul.f32 %v2135, %v2137
      %v2140 = vmul.f32 %v2135, %v2138
      %v2141 = vadd.f32 %v2131, %v2139
      %v2142 = vadd.f32 %v2132, %v2140
      %2143 = vset.pattern.permute.xlu0 23
      %2144 = vperm.xlu0 %2143, %v341
      %v2145 = vpop.permute.xlu0 %2144
      %v2147 = vperm.slane %v2111, 3
      %v2148 = vperm.slane %v2112, 3
      %v2149 = vmul.f32 %v2145, %v2147
      %v2150 = vmul.f32 %v2145, %v2148
      %v2151 = vadd.f32 %v2141, %v2149
      %v2152 = vadd.f32 %v2142, %v2150
      %2153 = vset.pattern.permute.xlu0 24
      %2154 = vperm.xlu0 %2153, %v341
      %v2155 = vpop.permute.xlu0 %2154
      %v2157 = vmul.f32 %v2155, %v384
      %v2158 = vmul.f32 %v2155, %v385
      %v2159 = vadd.f32 %v2151, %v2157
      %v2160 = vadd.f32 %v2152, %v2158
      %2161 = vset.pattern.permute.xlu0 25
      %2162 = vperm.xlu0 %2161, %v341
      %v2163 = vpop.permute.xlu0 %2162
      %v2165 = vmul.f32 %v2163, %v394
      %v2166 = vmul.f32 %v2163, %v395
      %v2167 = vadd.f32 %v2159, %v2165
      %v2168 = vadd.f32 %v2160, %v2166
      %2169 = vset.pattern.permute.xlu0 26
      %2170 = vperm.xlu0 %2169, %v341
      %v2171 = vpop.permute.xlu0 %2170
      %v2173 = vmul.f32 %v2171, %v404
      %v2174 = vmul.f32 %v2171, %v405
      %v2175 = vadd.f32 %v2167, %v2173
      %v2176 = vadd.f32 %v2168, %v2174
      %2177 = vset.pattern.permute.xlu0 27
      %2178 = vperm.xlu0 %2177, %v341
      %v2179 = vpop.permute.xlu0 %2178
      %v2181 = vmul.f32 %v2179, %v414
      %v2182 = vmul.f32 %v2179, %v415
      %v2183 = vadd.f32 %v2175, %v2181
      %v2184 = vadd.f32 %v2176, %v2182
      %2185 = vset.pattern.permute.xlu0 28
      %2186 = vperm.xlu0 %2185, %v341
      %v2187 = vpop.permute.xlu0 %2186
      %v2189 = vmul.f32 %v2187, %v441
      %v2190 = vmul.f32 %v2187, %v442
      %v2191 = vadd.f32 %v2183, %v2189
      %v2192 = vadd.f32 %v2184, %v2190
      %2193 = vset.pattern.permute.xlu0 29
      %2194 = vperm.xlu0 %2193, %v341
      %v2195 = vpop.permute.xlu0 %2194
      %v2197 = vmul.f32 %v2195, %v451
      %v2198 = vmul.f32 %v2195, %v452
      %v2199 = vadd.f32 %v2191, %v2197
      %v2200 = vadd.f32 %v2192, %v2198
      %2201 = vset.pattern.permute.xlu0 30
      %2202 = vperm.xlu0 %2201, %v341
      %v2203 = vpop.permute.xlu0 %2202
      %v2205 = vmul.f32 %v2203, %v461
      %v2206 = vmul.f32 %v2203, %v462
      %v2207 = vadd.f32 %v2199, %v2205
      %v2208 = vadd.f32 %v2200, %v2206
      %2209 = vset.pattern.permute.xlu0 31
      %2210 = vperm.xlu0 %2209, %v341
      %v2211 = vpop.permute.xlu0 %2210
      %v2213 = vmul.f32 %v2211, %v471
      %v2214 = vmul.f32 %v2211, %v472
      %v2215 = vadd.f32 %v2207, %v2213
      %v2216 = vadd.f32 %v2208, %v2214
      %2217 = vset.pattern.permute.xlu0 32
      %2218 = vperm.xlu0 %2217, %v341
      %v2219 = vpop.permute.xlu0 %2218
      %v2221 = vmul.f32 %v2219, %v502
      %v2222 = vmul.f32 %v2219, %v503
      %v2223 = vadd.f32 %v2215, %v2221
      %v2224 = vadd.f32 %v2216, %v2222
      %2225 = vset.pattern.permute.xlu0 33
      %2226 = vperm.xlu0 %2225, %v341
      %v2227 = vpop.permute.xlu0 %2226
      %v2229 = vmul.f32 %v2227, %v512
      %v2230 = vmul.f32 %v2227, %v513
      %v2231 = vadd.f32 %v2223, %v2229
      %v2232 = vadd.f32 %v2224, %v2230
      %2233 = vset.pattern.permute.xlu0 34
      %2234 = vperm.xlu0 %2233, %v341
      %v2235 = vpop.permute.xlu0 %2234
      %v2237 = vmul.f32 %v2235, %v522
      %v2238 = vmul.f32 %v2235, %v523
      %v2239 = vadd.f32 %v2231, %v2237
      %v2240 = vadd.f32 %v2232, %v2238
      %2241 = vset.pattern.permute.xlu0 35
      %2242 = vperm.xlu0 %2241, %v341
      %v2243 = vpop.permute.xlu0 %2242
      %v2245 = vmul.f32 %v2243, %v532
      %v2246 = vmul.f32 %v2243, %v533
      %v2247 = vadd.f32 %v2239, %v2245
      %v2248 = vadd.f32 %v2240, %v2246
      %vm2249 = vmand %vm2033, %vm358
      %vm2250 = vmand %vm2034, %vm359
      %v2251 = vsel %vm2249, 1, 0
      %v2252 = vsel %vm2250, 1, 0
      %vm2253 = vcmp.eq.s32.totalorder %v2251, 1
      %vm2254 = vcmp.eq.s32.totalorder %v2252, 1
      %2255 = vrot.lane.b32.xlu0 0.0, 14
      %v2256 = vpop.permute.xlu0 %2255
      %2257 = vrot.lane.b32.xlu0 %v349, 14
      %v2258 = vpop.permute.xlu0 %2257
      %2259 = vrot.lane.b32.xlu0 %v350, 14
      %v2260 = vpop.permute.xlu0 %2259
      %vm2261 = vcmask 113664
      %v2262 = vsel %vm2261, %v2256, %v2258
      %v2263 = vsel %vm2261, %v2258, %v2260
      %v2266 = vsel %vm2253, %v2262, 0.0
      %v2267 = vsel %vm2254, %v2263, 0.0
      %2268 = vset.pattern.permute.xlu0 36
      %2269 = vperm.xlu0 %2268, %v341
      %v2270 = vpop.permute.xlu0 %2269
      %v2272 = vperm.slane %v2266, 0
      %v2273 = vperm.slane %v2267, 0
      %v2274 = vmul.f32 %v2270, %v2272
      %v2275 = vmul.f32 %v2270, %v2273
      %v2276 = vadd.f32 %v2247, %v2274
      %v2277 = vadd.f32 %v2248, %v2275
      %2278 = vset.pattern.permute.xlu0 37
      %2279 = vperm.xlu0 %2278, %v341
      %v2280 = vpop.permute.xlu0 %2279
      %v2282 = vperm.slane %v2266, 1
      %v2283 = vperm.slane %v2267, 1
      %v2284 = vmul.f32 %v2280, %v2282
      %v2285 = vmul.f32 %v2280, %v2283
      %v2286 = vadd.f32 %v2276, %v2284
      %v2287 = vadd.f32 %v2277, %v2285
      %2288 = vset.pattern.permute.xlu0 38
      %2289 = vperm.xlu0 %2288, %v341
      %v2290 = vpop.permute.xlu0 %2289
      %v2292 = vperm.slane %v2266, 2
      %v2293 = vperm.slane %v2267, 2
      %v2294 = vmul.f32 %v2290, %v2292
      %v2295 = vmul.f32 %v2290, %v2293
      %v2296 = vadd.f32 %v2286, %v2294
      %v2297 = vadd.f32 %v2287, %v2295
      %2298 = vset.pattern.permute.xlu0 39
      %2299 = vperm.xlu0 %2298, %v341
      %v2300 = vpop.permute.xlu0 %2299
      %v2302 = vperm.slane %v2266, 3
      %v2303 = vperm.slane %v2267, 3
      %v2304 = vmul.f32 %v2300, %v2302
      %v2305 = vmul.f32 %v2300, %v2303
      %v2306 = vadd.f32 %v2296, %v2304
      %v2307 = vadd.f32 %v2297, %v2305
      %v2308 = vsel %vm1795, 1, 0
      %v2309 = vsel %vm1796, 1, 0
      %vm2310 = vcmp.eq.s32.totalorder %v2308, 1
      %vm2311 = vcmp.eq.s32.totalorder %v2309, 1
      %2312 = vrot.lane.b32.xlu0 0.0, 2
      %v2313 = vpop.permute.xlu0 %2312
      %2314 = vrot.lane.b32.xlu0 %v349, 2
      %v2315 = vpop.permute.xlu0 %2314
      %2316 = vrot.lane.b32.xlu0 %v350, 2
      %v2317 = vpop.permute.xlu0 %2316
      %vm2318 = vcmask 15360
      %v2319 = vsel %vm2318, %v2313, %v2315
      %v2320 = vsel %vm2318, %v2315, %v2317
      %v2323 = vsel %vm2310, %v2319, 0.0
      %v2324 = vsel %vm2311, %v2320, 0.0
      %2325 = vset.pattern.permute.xlu0 40
      %2326 = vperm.xlu0 %2325, %v341
      %v2327 = vpop.permute.xlu0 %2326
      %v2329 = vperm.slane %v2323, 0
      %v2330 = vperm.slane %v2324, 0
      %v2331 = vmul.f32 %v2327, %v2329
      %v2332 = vmul.f32 %v2327, %v2330
      %v2333 = vadd.f32 %v2306, %v2331
      %v2334 = vadd.f32 %v2307, %v2332
      %2335 = vset.pattern.permute.xlu0 41
      %2336 = vperm.xlu0 %2335, %v341
      %v2337 = vpop.permute.xlu0 %2336
      %v2339 = vperm.slane %v2323, 1
      %v2340 = vperm.slane %v2324, 1
      %v2341 = vmul.f32 %v2337, %v2339
      %v2342 = vmul.f32 %v2337, %v2340
      %v2343 = vadd.f32 %v2333, %v2341
      %v2344 = vadd.f32 %v2334, %v2342
      %2345 = vset.pattern.permute.xlu0 42
      %2346 = vperm.xlu0 %2345, %v341
      %v2347 = vpop.permute.xlu0 %2346
      %v2349 = vperm.slane %v2323, 2
      %v2350 = vperm.slane %v2324, 2
      %v2351 = vmul.f32 %v2347, %v2349
      %v2352 = vmul.f32 %v2347, %v2350
      %v2353 = vadd.f32 %v2343, %v2351
      %v2354 = vadd.f32 %v2344, %v2352
      %2355 = vset.pattern.permute.xlu0 43
      %2356 = vperm.xlu0 %2355, %v341
      %v2357 = vpop.permute.xlu0 %2356
      %v2359 = vperm.slane %v2323, 3
      %v2360 = vperm.slane %v2324, 3
      %v2361 = vmul.f32 %v2357, %v2359
      %v2362 = vmul.f32 %v2357, %v2360
      %v2363 = vadd.f32 %v2353, %v2361
      %v2364 = vadd.f32 %v2354, %v2362
      %2365 = vset.pattern.permute.xlu0 44
      %2366 = vperm.xlu0 %2365, %v341
      %v2367 = vpop.permute.xlu0 %2366
      %v2369 = vmul.f32 %v2367, %v559
      %v2370 = vmul.f32 %v2367, %v560
      %v2371 = vadd.f32 %v2363, %v2369
      %v2372 = vadd.f32 %v2364, %v2370
      %2373 = vset.pattern.permute.xlu0 45
      %2374 = vperm.xlu0 %2373, %v341
      %v2375 = vpop.permute.xlu0 %2374
      %v2377 = vmul.f32 %v2375, %v569
      %v2378 = vmul.f32 %v2375, %v570
      %v2379 = vadd.f32 %v2371, %v2377
      %v2380 = vadd.f32 %v2372, %v2378
      %2381 = vset.pattern.permute.xlu0 46
      %2382 = vperm.xlu0 %2381, %v341
      %v2383 = vpop.permute.xlu0 %2382
      %v2385 = vmul.f32 %v2383, %v579
      %v2386 = vmul.f32 %v2383, %v580
      %v2387 = vadd.f32 %v2379, %v2385
      %v2388 = vadd.f32 %v2380, %v2386
      %2389 = vset.pattern.permute.xlu0 47
      %2390 = vperm.xlu0 %2389, %v341
      %v2391 = vpop.permute.xlu0 %2390
      %v2393 = vmul.f32 %v2391, %v589
      %v2394 = vmul.f32 %v2391, %v590
      %v2395 = vadd.f32 %v2387, %v2393
      %v2396 = vadd.f32 %v2388, %v2394
      %2397 = vset.pattern.permute.xlu0 48
      %2398 = vperm.xlu0 %2397, %v341
      %v2399 = vpop.permute.xlu0 %2398
      %v2401 = vmul.f32 %v2399, %v603
      %v2402 = vmul.f32 %v2399, %v604
      %v2403 = vadd.f32 %v2395, %v2401
      %v2404 = vadd.f32 %v2396, %v2402
      %2405 = vset.pattern.permute.xlu0 49
      %2406 = vperm.xlu0 %2405, %v341
      %v2407 = vpop.permute.xlu0 %2406
      %v2409 = vmul.f32 %v2407, %v617
      %v2410 = vmul.f32 %v2407, %v618
      %v2411 = vadd.f32 %v2403, %v2409
      %v2412 = vadd.f32 %v2404, %v2410
      %2413 = vset.pattern.permute.xlu0 50
      %2414 = vperm.xlu0 %2413, %v341
      %v2415 = vpop.permute.xlu0 %2414
      %v2417 = vmul.f32 %v2415, %v631
      %v2418 = vmul.f32 %v2415, %v632
      %v2419 = vadd.f32 %v2411, %v2417
      %v2420 = vadd.f32 %v2412, %v2418
      %2421 = vset.pattern.permute.xlu0 51
      %2422 = vperm.xlu0 %2421, %v341
      %v2423 = vpop.permute.xlu0 %2422
      %v2425 = vmul.f32 %v2423, %v645
      %v2426 = vmul.f32 %v2423, %v646
      %v2427 = vadd.f32 %v2419, %v2425
      %v2428 = vadd.f32 %v2420, %v2426
      %2429 = vset.pattern.permute.xlu0 52
      %2430 = vperm.xlu0 %2429, %v341
      %v2431 = vpop.permute.xlu0 %2430
      %v2433 = vmul.f32 %v2431, %v672
      %v2434 = vmul.f32 %v2431, %v673
      %v2435 = vadd.f32 %v2427, %v2433
      %v2436 = vadd.f32 %v2428, %v2434
      %2437 = vset.pattern.permute.xlu0 53
      %2438 = vperm.xlu0 %2437, %v341
      %v2439 = vpop.permute.xlu0 %2438
      %v2441 = vmul.f32 %v2439, %v682
      %v2442 = vmul.f32 %v2439, %v683
      %v2443 = vadd.f32 %v2435, %v2441
      %v2444 = vadd.f32 %v2436, %v2442
      %2445 = vset.pattern.permute.xlu0 54
      %2446 = vperm.xlu0 %2445, %v341
      %v2447 = vpop.permute.xlu0 %2446
      %v2449 = vmul.f32 %v2447, %v692
      %v2450 = vmul.f32 %v2447, %v693
      %v2451 = vadd.f32 %v2443, %v2449
      %v2452 = vadd.f32 %v2444, %v2450
      %2453 = vset.pattern.permute.xlu0 55
      %2454 = vperm.xlu0 %2453, %v341
      %v2455 = vpop.permute.xlu0 %2454
      %v2457 = vmul.f32 %v2455, %v702
      %v2458 = vmul.f32 %v2455, %v703
      %v2459 = vadd.f32 %v2451, %v2457
      %v2460 = vadd.f32 %v2452, %v2458
      %v2461 = vsel %vm2033, 1, 0
      %v2462 = vsel %vm2034, 1, 0
      %vm2463 = vcmp.eq.s32.totalorder %v2461, 1
      %vm2464 = vcmp.eq.s32.totalorder %v2462, 1
      %2465 = vrot.lane.b32.xlu0 %v349, 126
      %v2466 = vpop.permute.xlu0 %2465
      %2467 = vrot.lane.b32.xlu0 %v350, 126
      %v2468 = vpop.permute.xlu0 %2467
      %2469 = vrot.lane.b32.xlu0 0.0, 126
      %v2470 = vpop.permute.xlu0 %2469
      %vm2471 = vcmask 1031168
      %v2472 = vsel %vm2471, %v2466, %v2468
      %v2473 = vsel %vm2471, %v2468, %v2470
      %v2476 = vsel %vm2463, %v2472, 0.0
      %v2477 = vsel %vm2464, %v2473, 0.0
      %2478 = vset.pattern.permute.xlu0 56
      %2479 = vperm.xlu0 %2478, %v341
      %v2480 = vpop.permute.xlu0 %2479
      %v2482 = vperm.slane %v2476, 0
      %v2483 = vperm.slane %v2477, 0
      %v2484 = vmul.f32 %v2480, %v2482
      %v2485 = vmul.f32 %v2480, %v2483
      %v2486 = vadd.f32 %v2459, %v2484
      %v2487 = vadd.f32 %v2460, %v2485
      %2488 = vset.pattern.permute.xlu0 57
      %2489 = vperm.xlu0 %2488, %v341
      %v2490 = vpop.permute.xlu0 %2489
      %v2492 = vperm.slane %v2476, 1
      %v2493 = vperm.slane %v2477, 1
      %v2494 = vmul.f32 %v2490, %v2492
      %v2495 = vmul.f32 %v2490, %v2493
      %v2496 = vadd.f32 %v2486, %v2494
      %v2497 = vadd.f32 %v2487, %v2495
      %2498 = vset.pattern.permute.xlu0 58
      %2499 = vperm.xlu0 %2498, %v341
      %v2500 = vpop.permute.xlu0 %2499
      %v2502 = vperm.slane %v2476, 2
      %v2503 = vperm.slane %v2477, 2
      %v2504 = vmul.f32 %v2500, %v2502
      %v2505 = vmul.f32 %v2500, %v2503
      %v2506 = vadd.f32 %v2496, %v2504
      %v2507 = vadd.f32 %v2497, %v2505
      %2508 = vset.pattern.permute.xlu0 59
      %2509 = vperm.xlu0 %2508, %v341
      %v2510 = vpop.permute.xlu0 %2509
      %v2512 = vperm.slane %v2476, 3
      %v2513 = vperm.slane %v2477, 3
      %v2514 = vmul.f32 %v2510, %v2512
      %v2515 = vmul.f32 %v2510, %v2513
      %v2516 = vadd.f32 %v2506, %v2514
      %v2517 = vadd.f32 %v2507, %v2515
      %vm2518 = vmand %vm1795, %vm708
      %vm2519 = vmand %vm1796, %vm709
      %v2520 = vsel %vm2518, 1, 0
      %v2521 = vsel %vm2519, 1, 0
      %vm2522 = vcmp.eq.s32.totalorder %v2520, 1
      %vm2523 = vcmp.eq.s32.totalorder %v2521, 1
      %2524 = vrot.lane.b32.xlu0 %v349, 114
      %v2525 = vpop.permute.xlu0 %2524
      %2526 = vrot.lane.b32.xlu0 %v350, 114
      %v2527 = vpop.permute.xlu0 %2526
      %2528 = vrot.lane.b32.xlu0 0.0, 114
      %v2529 = vpop.permute.xlu0 %2528
      %vm2530 = vcmask 932864
      %v2531 = vsel %vm2530, %v2525, %v2527
      %v2532 = vsel %vm2530, %v2527, %v2529
      %v2535 = vsel %vm2522, %v2531, 0.0
      %v2536 = vsel %vm2523, %v2532, 0.0
      %2537 = vset.pattern.permute.xlu0 60
      %2538 = vperm.xlu0 %2537, %v341
      %v2539 = vpop.permute.xlu0 %2538
      %v2541 = vperm.slane %v2535, 0
      %v2542 = vperm.slane %v2536, 0
      %v2543 = vmul.f32 %v2539, %v2541
      %v2544 = vmul.f32 %v2539, %v2542
      %v2545 = vadd.f32 %v2516, %v2543
      %v2546 = vadd.f32 %v2517, %v2544
      %2547 = vset.pattern.permute.xlu0 61
      %2548 = vperm.xlu0 %2547, %v341
      %v2549 = vpop.permute.xlu0 %2548
      %v2551 = vperm.slane %v2535, 1
      %v2552 = vperm.slane %v2536, 1
      %v2553 = vmul.f32 %v2549, %v2551
      %v2554 = vmul.f32 %v2549, %v2552
      %v2555 = vadd.f32 %v2545, %v2553
      %v2556 = vadd.f32 %v2546, %v2554
      %2557 = vset.pattern.permute.xlu0 62
      %2558 = vperm.xlu0 %2557, %v341
      %v2559 = vpop.permute.xlu0 %2558
      %v2561 = vperm.slane %v2535, 2
      %v2562 = vperm.slane %v2536, 2
      %v2563 = vmul.f32 %v2559, %v2561
      %v2564 = vmul.f32 %v2559, %v2562
      %v2565 = vadd.f32 %v2555, %v2563
      %v2566 = vadd.f32 %v2556, %v2564
      %2567 = vset.pattern.permute.xlu0 63
      %2568 = vperm.xlu0 %2567, %v341
      %v2569 = vpop.permute.xlu0 %2568
      %v2571 = vperm.slane %v2535, 3
      %v2572 = vperm.slane %v2536, 3
      %v2573 = vmul.f32 %v2569, %v2571
      %v2574 = vmul.f32 %v2569, %v2572
      %v2575 = vadd.f32 %v2565, %v2573
      %v2576 = vadd.f32 %v2566, %v2574
      %2577 = vset.pattern.permute.xlu0 64
      %2578 = vperm.xlu0 %2577, %v341
      %v2579 = vpop.permute.xlu0 %2578
      %v2581 = vmul.f32 %v2579, %v733
      %v2582 = vmul.f32 %v2579, %v734
      %v2583 = vadd.f32 %v2575, %v2581
      %v2584 = vadd.f32 %v2576, %v2582
      %2585 = vset.pattern.permute.xlu0 65
      %2586 = vperm.xlu0 %2585, %v341
      %v2587 = vpop.permute.xlu0 %2586
      %v2589 = vmul.f32 %v2587, %v743
      %v2590 = vmul.f32 %v2587, %v744
      %v2591 = vadd.f32 %v2583, %v2589
      %v2592 = vadd.f32 %v2584, %v2590
      %2593 = vset.pattern.permute.xlu0 66
      %2594 = vperm.xlu0 %2593, %v341
      %v2595 = vpop.permute.xlu0 %2594
      %v2597 = vmul.f32 %v2595, %v753
      %v2598 = vmul.f32 %v2595, %v754
      %v2599 = vadd.f32 %v2591, %v2597
      %v2600 = vadd.f32 %v2592, %v2598
      %2601 = vset.pattern.permute.xlu0 67
      %2602 = vperm.xlu0 %2601, %v341
      %v2603 = vpop.permute.xlu0 %2602
      %v2605 = vmul.f32 %v2603, %v763
      %v2606 = vmul.f32 %v2603, %v764
      %v2607 = vadd.f32 %v2599, %v2605
      %v2608 = vadd.f32 %v2600, %v2606
      %2609 = vset.pattern.permute.xlu0 68
      %2610 = vperm.xlu0 %2609, %v341
      %v2611 = vpop.permute.xlu0 %2610
      %v2613 = vmul.f32 %v2611, %v790
      %v2614 = vmul.f32 %v2611, %v791
      %v2615 = vadd.f32 %v2607, %v2613
      %v2616 = vadd.f32 %v2608, %v2614
      %2617 = vset.pattern.permute.xlu0 69
      %2618 = vperm.xlu0 %2617, %v341
      %v2619 = vpop.permute.xlu0 %2618
      %v2621 = vmul.f32 %v2619, %v800
      %v2622 = vmul.f32 %v2619, %v801
      %v2623 = vadd.f32 %v2615, %v2621
      %v2624 = vadd.f32 %v2616, %v2622
      %2625 = vset.pattern.permute.xlu0 70
      %2626 = vperm.xlu0 %2625, %v341
      %v2627 = vpop.permute.xlu0 %2626
      %v2629 = vmul.f32 %v2627, %v810
      %v2630 = vmul.f32 %v2627, %v811
      %v2631 = vadd.f32 %v2623, %v2629
      %v2632 = vadd.f32 %v2624, %v2630
      %2633 = vset.pattern.permute.xlu0 71
      %2634 = vperm.xlu0 %2633, %v341
      %v2635 = vpop.permute.xlu0 %2634
      %v2637 = vmul.f32 %v2635, %v820
      %v2638 = vmul.f32 %v2635, %v821
      %v2639 = vadd.f32 %v2631, %v2637
      %v2640 = vadd.f32 %v2632, %v2638
      %2641 = vset.pattern.permute.xlu0 72
      %2642 = vperm.xlu0 %2641, %v341
      %v2643 = vpop.permute.xlu0 %2642
      %v2645 = vmul.f32 %v2643, %v849
      %v2646 = vmul.f32 %v2643, %v850
      %v2647 = vadd.f32 %v2639, %v2645
      %v2648 = vadd.f32 %v2640, %v2646
      %2649 = vset.pattern.permute.xlu0 73
      %2650 = vperm.xlu0 %2649, %v341
      %v2651 = vpop.permute.xlu0 %2650
      %v2653 = vmul.f32 %v2651, %v859
      %v2654 = vmul.f32 %v2651, %v860
      %v2655 = vadd.f32 %v2647, %v2653
      %v2656 = vadd.f32 %v2648, %v2654
      %2657 = vset.pattern.permute.xlu0 74
      %2658 = vperm.xlu0 %2657, %v341
      %v2659 = vpop.permute.xlu0 %2658
      %v2661 = vmul.f32 %v2659, %v869
      %v2662 = vmul.f32 %v2659, %v870
      %v2663 = vadd.f32 %v2655, %v2661
      %v2664 = vadd.f32 %v2656, %v2662
      %2665 = vset.pattern.permute.xlu0 75
      %2666 = vperm.xlu0 %2665, %v341
      %v2667 = vpop.permute.xlu0 %2666
      %v2669 = vmul.f32 %v2667, %v879
      %v2670 = vmul.f32 %v2667, %v880
      %v2671 = vadd.f32 %v2663, %v2669
      %v2672 = vadd.f32 %v2664, %v2670
      %vm2673 = vmand %vm2033, %vm708
      %vm2674 = vmand %vm2034, %vm709
      %v2675 = vsel %vm2673, 1, 0
      %v2676 = vsel %vm2674, 1, 0
      %vm2677 = vcmp.eq.s32.totalorder %v2675, 1
      %vm2678 = vcmp.eq.s32.totalorder %v2676, 1
      %2679 = vrot.lane.b32.xlu0 %v349, 110
      %v2680 = vpop.permute.xlu0 %2679
      %2681 = vrot.lane.b32.xlu0 %v350, 110
      %v2682 = vpop.permute.xlu0 %2681
      %2683 = vrot.lane.b32.xlu0 0.0, 110
      %v2684 = vpop.permute.xlu0 %2683
      %vm2685 = vcmask 900096
      %v2686 = vsel %vm2685, %v2680, %v2682
      %v2687 = vsel %vm2685, %v2682, %v2684
      %v2690 = vsel %vm2677, %v2686, 0.0
      %v2691 = vsel %vm2678, %v2687, 0.0
      %2692 = vset.pattern.permute.xlu0 76
      %2693 = vperm.xlu0 %2692, %v341
      %v2694 = vpop.permute.xlu0 %2693
      %v2696 = vperm.slane %v2690, 0
      %v2697 = vperm.slane %v2691, 0
      %v2698 = vmul.f32 %v2694, %v2696
      %v2699 = vmul.f32 %v2694, %v2697
      %v2700 = vadd.f32 %v2671, %v2698
      %v2701 = vadd.f32 %v2672, %v2699
      %2702 = vset.pattern.permute.xlu0 77
      %2703 = vperm.xlu0 %2702, %v341
      %v2704 = vpop.permute.xlu0 %2703
      %v2706 = vperm.slane %v2690, 1
      %v2707 = vperm.slane %v2691, 1
      %v2708 = vmul.f32 %v2704, %v2706
      %v2709 = vmul.f32 %v2704, %v2707
      %v2710 = vadd.f32 %v2700, %v2708
      %v2711 = vadd.f32 %v2701, %v2709
      %2712 = vset.pattern.permute.xlu0 78
      %2713 = vperm.xlu0 %2712, %v341
      %v2714 = vpop.permute.xlu0 %2713
      %v2716 = vperm.slane %v2690, 2
      %v2717 = vperm.slane %v2691, 2
      %v2718 = vmul.f32 %v2714, %v2716
      %v2719 = vmul.f32 %v2714, %v2717
      %v2720 = vadd.f32 %v2710, %v2718
      %v2721 = vadd.f32 %v2711, %v2719
      %2722 = vset.pattern.permute.xlu0 79
      %2723 = vperm.xlu0 %2722, %v341
      %v2724 = vpop.permute.xlu0 %2723
      %v2726 = vperm.slane %v2690, 3
      %v2727 = vperm.slane %v2691, 3
      %v2728 = vmul.f32 %v2724, %v2726
      %v2729 = vmul.f32 %v2724, %v2727
      %v2730 = vadd.f32 %v2720, %v2728
      %v2731 = vadd.f32 %v2721, %v2729
      %vm2732 = vcmp.lt.s32.totalorder %v335, 224
      %vm2733 = vcmp.lt.s32.totalorder %v336, 224
      %vm2734 = vmand %vm1795, %vm2732
      %vm2735 = vmand %vm1796, %vm2733
      %v2736 = vsel %vm2734, 1, 0
      %v2737 = vsel %vm2735, 1, 0
      %vm2738 = vcmp.eq.s32.totalorder %v2736, 1
      %vm2739 = vcmp.eq.s32.totalorder %v2737, 1
      %2740 = vrot.lane.b32.xlu0 %v349, 98
      %v2741 = vpop.permute.xlu0 %2740
      %2742 = vrot.lane.b32.xlu0 %v350, 98
      %v2743 = vpop.permute.xlu0 %2742
      %2744 = vrot.lane.b32.xlu0 0.0, 98
      %v2745 = vpop.permute.xlu0 %2744
      %vm2746 = vcmask 801792
      %v2747 = vsel %vm2746, %v2741, %v2743
      %v2748 = vsel %vm2746, %v2743, %v2745
      %v2751 = vsel %vm2738, %v2747, 0.0
      %v2752 = vsel %vm2739, %v2748, 0.0
      %2753 = vset.pattern.permute.xlu0 80
      %2754 = vperm.xlu0 %2753, %v341
      %v2755 = vpop.permute.xlu0 %2754
      %v2757 = vperm.slane %v2751, 0
      %v2758 = vperm.slane %v2752, 0
      %v2759 = vmul.f32 %v2755, %v2757
      %v2760 = vmul.f32 %v2755, %v2758
      %v2761 = vadd.f32 %v2730, %v2759
      %v2762 = vadd.f32 %v2731, %v2760
      %2763 = vset.pattern.permute.xlu0 81
      %2764 = vperm.xlu0 %2763, %v341
      %v2765 = vpop.permute.xlu0 %2764
      %v2767 = vperm.slane %v2751, 1
      %v2768 = vperm.slane %v2752, 1
      %v2769 = vmul.f32 %v2765, %v2767
      %v2770 = vmul.f32 %v2765, %v2768
      %v2771 = vadd.f32 %v2761, %v2769
      %v2772 = vadd.f32 %v2762, %v2770
      %2773 = vset.pattern.permute.xlu0 82
      %2774 = vperm.xlu0 %2773, %v341
      %v2775 = vpop.permute.xlu0 %2774
      %v2777 = vperm.slane %v2751, 2
      %v2778 = vperm.slane %v2752, 2
      %v2779 = vmul.f32 %v2775, %v2777
      %v2780 = vmul.f32 %v2775, %v2778
      %v2781 = vadd.f32 %v2771, %v2779
      %v2782 = vadd.f32 %v2772, %v2780
      %2783 = vset.pattern.permute.xlu0 83
      %2784 = vperm.xlu0 %2783, %v341
      %v2785 = vpop.permute.xlu0 %2784
      %v2787 = vperm.slane %v2751, 3
      %v2788 = vperm.slane %v2752, 3
      %v2789 = vmul.f32 %v2785, %v2787
      %v2790 = vmul.f32 %v2785, %v2788
      %v2791 = vadd.f32 %v2781, %v2789
      %v2792 = vadd.f32 %v2782, %v2790
      %vm2793 = vmand %vm356, %vm2732
      %vm2794 = vmand %vm357, %vm2733
      %v2795 = vsel %vm2793, 1, 0
      %v2796 = vsel %vm2794, 1, 0
      %vm2797 = vcmp.eq.s32.totalorder %v2795, 1
      %vm2798 = vcmp.eq.s32.totalorder %v2796, 1
      %2799 = vrot.lane.b32.xlu0 %v349, 97
      %v2800 = vpop.permute.xlu0 %2799
      %2801 = vrot.lane.b32.xlu0 %v350, 97
      %v2802 = vpop.permute.xlu0 %2801
      %2803 = vrot.lane.b32.xlu0 0.0, 97
      %v2804 = vpop.permute.xlu0 %2803
      %vm2805 = vcmask 793600
      %v2806 = vsel %vm2805, %v2800, %v2802
      %v2807 = vsel %vm2805, %v2802, %v2804
      %v2810 = vsel %vm2797, %v2806, 0.0
      %v2811 = vsel %vm2798, %v2807, 0.0
      %2812 = vset.pattern.permute.xlu0 84
      %2813 = vperm.xlu0 %2812, %v341
      %v2814 = vpop.permute.xlu0 %2813
      %v2816 = vperm.slane %v2810, 0
      %v2817 = vperm.slane %v2811, 0
      %v2818 = vmul.f32 %v2814, %v2816
      %v2819 = vmul.f32 %v2814, %v2817
      %v2820 = vadd.f32 %v2791, %v2818
      %v2821 = vadd.f32 %v2792, %v2819
      %2822 = vset.pattern.permute.xlu0 85
      %2823 = vperm.xlu0 %2822, %v341
      %v2824 = vpop.permute.xlu0 %2823
      %v2826 = vperm.slane %v2810, 1
      %v2827 = vperm.slane %v2811, 1
      %v2828 = vmul.f32 %v2824, %v2826
      %v2829 = vmul.f32 %v2824, %v2827
      %v2830 = vadd.f32 %v2820, %v2828
      %v2831 = vadd.f32 %v2821, %v2829
      %2832 = vset.pattern.permute.xlu0 86
      %2833 = vperm.xlu0 %2832, %v341
      %v2834 = vpop.permute.xlu0 %2833
      %v2836 = vperm.slane %v2810, 2
      %v2837 = vperm.slane %v2811, 2
      %v2838 = vmul.f32 %v2834, %v2836
      %v2839 = vmul.f32 %v2834, %v2837
      %v2840 = vadd.f32 %v2830, %v2838
      %v2841 = vadd.f32 %v2831, %v2839
      %2842 = vset.pattern.permute.xlu0 87
      %2843 = vperm.xlu0 %2842, %v341
      %v2844 = vpop.permute.xlu0 %2843
      %v2846 = vperm.slane %v2810, 3
      %v2847 = vperm.slane %v2811, 3
      %v2848 = vmul.f32 %v2844, %v2846
      %v2849 = vmul.f32 %v2844, %v2847
      %v2850 = vadd.f32 %v2840, %v2848
      %v2851 = vadd.f32 %v2841, %v2849
      %v2852 = vsel %vm2732, 1, 0
      %v2853 = vsel %vm2733, 1, 0
      %vm2854 = vcmp.eq.s32.totalorder %v2852, 1
      %vm2855 = vcmp.eq.s32.totalorder %v2853, 1
      %2856 = vrot.lane.b32.xlu0 %v349, 96
      %v2857 = vpop.permute.xlu0 %2856
      %2858 = vrot.lane.b32.xlu0 %v350, 96
      %v2859 = vpop.permute.xlu0 %2858
      %2860 = vrot.lane.b32.xlu0 0.0, 96
      %v2861 = vpop.permute.xlu0 %2860
      %vm2862 = vcmask 785408
      %v2863 = vsel %vm2862, %v2857, %v2859
      %v2864 = vsel %vm2862, %v2859, %v2861
      %v2867 = vsel %vm2854, %v2863, 0.0
      %v2868 = vsel %vm2855, %v2864, 0.0
      %2869 = vset.pattern.permute.xlu0 88
      %2870 = vperm.xlu0 %2869, %v341
      %v2871 = vpop.permute.xlu0 %2870
      %v2873 = vperm.slane %v2867, 0
      %v2874 = vperm.slane %v2868, 0
      %v2875 = vmul.f32 %v2871, %v2873
      %v2876 = vmul.f32 %v2871, %v2874
      %v2877 = vadd.f32 %v2850, %v2875
      %v2878 = vadd.f32 %v2851, %v2876
      %2879 = vset.pattern.permute.xlu0 89
      %2880 = vperm.xlu0 %2879, %v341
      %v2881 = vpop.permute.xlu0 %2880
      %v2883 = vperm.slane %v2867, 1
      %v2884 = vperm.slane %v2868, 1
      %v2885 = vmul.f32 %v2881, %v2883
      %v2886 = vmul.f32 %v2881, %v2884
      %v2887 = vadd.f32 %v2877, %v2885
      %v2888 = vadd.f32 %v2878, %v2886
      %2889 = vset.pattern.permute.xlu0 90
      %2890 = vperm.xlu0 %2889, %v341
      %v2891 = vpop.permute.xlu0 %2890
      %v2893 = vperm.slane %v2867, 2
      %v2894 = vperm.slane %v2868, 2
      %v2895 = vmul.f32 %v2891, %v2893
      %v2896 = vmul.f32 %v2891, %v2894
      %v2897 = vadd.f32 %v2887, %v2895
      %v2898 = vadd.f32 %v2888, %v2896
      %2899 = vset.pattern.permute.xlu0 91
      %2900 = vperm.xlu0 %2899, %v341
      %v2901 = vpop.permute.xlu0 %2900
      %v2903 = vperm.slane %v2867, 3
      %v2904 = vperm.slane %v2868, 3
      %v2905 = vmul.f32 %v2901, %v2903
      %v2906 = vmul.f32 %v2901, %v2904
      %v2907 = vadd.f32 %v2897, %v2905
      %v2908 = vadd.f32 %v2898, %v2906
      %vm2909 = vmand %vm477, %vm2732
      %vm2910 = vmand %vm478, %vm2733
      %v2911 = vsel %vm2909, 1, 0
      %v2912 = vsel %vm2910, 1, 0
      %vm2913 = vcmp.eq.s32.totalorder %v2911, 1
      %vm2914 = vcmp.eq.s32.totalorder %v2912, 1
      %2915 = vrot.lane.b32.xlu0 %v349, 95
      %v2916 = vpop.permute.xlu0 %2915
      %2917 = vrot.lane.b32.xlu0 %v350, 95
      %v2918 = vpop.permute.xlu0 %2917
      %2919 = vrot.lane.b32.xlu0 0.0, 95
      %v2920 = vpop.permute.xlu0 %2919
      %vm2921 = vcmask 777216
      %v2922 = vsel %vm2921, %v2916, %v2918
      %v2923 = vsel %vm2921, %v2918, %v2920
      %v2926 = vsel %vm2913, %v2922, 0.0
      %v2927 = vsel %vm2914, %v2923, 0.0
      %2928 = vset.pattern.permute.xlu0 92
      %2929 = vperm.xlu0 %2928, %v341
      %v2930 = vpop.permute.xlu0 %2929
      %v2932 = vperm.slane %v2926, 0
      %v2933 = vperm.slane %v2927, 0
      %v2934 = vmul.f32 %v2930, %v2932
      %v2935 = vmul.f32 %v2930, %v2933
      %v2936 = vadd.f32 %v2907, %v2934
      %v2937 = vadd.f32 %v2908, %v2935
      %2938 = vset.pattern.permute.xlu0 93
      %2939 = vperm.xlu0 %2938, %v341
      %v2940 = vpop.permute.xlu0 %2939
      %v2942 = vperm.slane %v2926, 1
      %v2943 = vperm.slane %v2927, 1
      %v2944 = vmul.f32 %v2940, %v2942
      %v2945 = vmul.f32 %v2940, %v2943
      %v2946 = vadd.f32 %v2936, %v2944
      %v2947 = vadd.f32 %v2937, %v2945
      %2948 = vset.pattern.permute.xlu0 94
      %2949 = vperm.xlu0 %2948, %v341
      %v2950 = vpop.permute.xlu0 %2949
      %v2952 = vperm.slane %v2926, 2
      %v2953 = vperm.slane %v2927, 2
      %v2954 = vmul.f32 %v2950, %v2952
      %v2955 = vmul.f32 %v2950, %v2953
      %v2956 = vadd.f32 %v2946, %v2954
      %v2957 = vadd.f32 %v2947, %v2955
      %2958 = vset.pattern.permute.xlu0 95
      %2959 = vperm.xlu0 %2958, %v341
      %v2960 = vpop.permute.xlu0 %2959
      %v2962 = vperm.slane %v2926, 3
      %v2963 = vperm.slane %v2927, 3
      %v2964 = vmul.f32 %v2960, %v2962
      %v2965 = vmul.f32 %v2960, %v2963
      %v2966 = vadd.f32 %v2956, %v2964
      %v2967 = vadd.f32 %v2957, %v2965
      %vm2968 = vmand %vm2033, %vm2732
      %vm2969 = vmand %vm2034, %vm2733
      %v2970 = vsel %vm2968, 1, 0
      %v2971 = vsel %vm2969, 1, 0
      %vm2972 = vcmp.eq.s32.totalorder %v2970, 1
      %vm2973 = vcmp.eq.s32.totalorder %v2971, 1
      %2974 = vrot.lane.b32.xlu0 %v349, 94
      %v2975 = vpop.permute.xlu0 %2974
      %2976 = vrot.lane.b32.xlu0 %v350, 94
      %v2977 = vpop.permute.xlu0 %2976
      %2978 = vrot.lane.b32.xlu0 0.0, 94
      %v2979 = vpop.permute.xlu0 %2978
      %vm2980 = vcmask 769024
      %v2981 = vsel %vm2980, %v2975, %v2977
      %v2982 = vsel %vm2980, %v2977, %v2979
      %v2985 = vsel %vm2972, %v2981, 0.0
      %v2986 = vsel %vm2973, %v2982, 0.0
      %2987 = vset.pattern.permute.xlu0 96
      %2988 = vperm.xlu0 %2987, %v341
      %v2989 = vpop.permute.xlu0 %2988
      %v2991 = vperm.slane %v2985, 0
      %v2992 = vperm.slane %v2986, 0
      %v2993 = vmul.f32 %v2989, %v2991
      %v2994 = vmul.f32 %v2989, %v2992
      %v2995 = vadd.f32 %v2966, %v2993
      %v2996 = vadd.f32 %v2967, %v2994
      %2997 = vset.pattern.permute.xlu0 97
      %2998 = vperm.xlu0 %2997, %v341
      %v2999 = vpop.permute.xlu0 %2998
      %v3001 = vperm.slane %v2985, 1
      %v3002 = vperm.slane %v2986, 1
      %v3003 = vmul.f32 %v2999, %v3001
      %v3004 = vmul.f32 %v2999, %v3002
      %v3005 = vadd.f32 %v2995, %v3003
      %v3006 = vadd.f32 %v2996, %v3004
      %3007 = vset.pattern.permute.xlu0 98
      %3008 = vperm.xlu0 %3007, %v341
      %v3009 = vpop.permute.xlu0 %3008
      %v3011 = vperm.slane %v2985, 2
      %v3012 = vperm.slane %v2986, 2
      %v3013 = vmul.f32 %v3009, %v3011
      %v3014 = vmul.f32 %v3009, %v3012
      %v3015 = vadd.f32 %v3005, %v3013
      %v3016 = vadd.f32 %v3006, %v3014
      %3017 = vset.pattern.permute.xlu0 99
      %3018 = vperm.xlu0 %3017, %v341
      %v3019 = vpop.permute.xlu0 %3018
      %v3021 = vperm.slane %v2985, 3
      %v3022 = vperm.slane %v2986, 3
      %v3023 = vmul.f32 %v3019, %v3021
      %v3024 = vmul.f32 %v3019, %v3022
      %v3025 = vadd.f32 %v3015, %v3023
      %v3026 = vadd.f32 %v3016, %v3024
      %v3027 = vmax.f32 %v3025, 0.0
      %v3028 = vmax.f32 %v3026, 0.0
      %3030 = vset.pattern.permute.xlu0 8
      %3031 = vperm.xlu0 %3030, %v344
      %v3032 = vpop.permute.xlu0 %3031
      %3034 = vset.pattern.permute.xlu0 0
      %3035 = vperm.xlu0 %3034, %v344
      %v3036 = vpop.permute.xlu0 %3035
      %v3038 = vperm.slane %v3027, 0
      %v3039 = vperm.slane %v3028, 0
      %v3040 = vmul.f32 %v3036, %v3038
      %v3041 = vmul.f32 %v3036, %v3039
      %v3042 = vadd.f32 %v3032, %v3040
      %v3043 = vadd.f32 %v3032, %v3041
      %3044 = vset.pattern.permute.xlu0 1
      %3045 = vperm.xlu0 %3044, %v344
      %v3046 = vpop.permute.xlu0 %3045
      %v3048 = vperm.slane %v3027, 1
      %v3049 = vperm.slane %v3028, 1
      %v3050 = vmul.f32 %v3046, %v3048
      %v3051 = vmul.f32 %v3046, %v3049
      %v3052 = vadd.f32 %v3042, %v3050
      %v3053 = vadd.f32 %v3043, %v3051
      %3054 = vset.pattern.permute.xlu0 2
      %3055 = vperm.xlu0 %3054, %v344
      %v3056 = vpop.permute.xlu0 %3055
      %v3058 = vperm.slane %v3027, 2
      %v3059 = vperm.slane %v3028, 2
      %v3060 = vmul.f32 %v3056, %v3058
      %v3061 = vmul.f32 %v3056, %v3059
      %v3062 = vadd.f32 %v3052, %v3060
      %v3063 = vadd.f32 %v3053, %v3061
      %3064 = vset.pattern.permute.xlu0 3
      %3065 = vperm.xlu0 %3064, %v344
      %v3066 = vpop.permute.xlu0 %3065
      %v3068 = vperm.slane %v3027, 3
      %v3069 = vperm.slane %v3028, 3
      %v3070 = vmul.f32 %v3066, %v3068
      %v3071 = vmul.f32 %v3066, %v3069
      %v3072 = vadd.f32 %v3062, %v3070
      %v3073 = vadd.f32 %v3063, %v3071
      %3074 = vset.pattern.permute.xlu0 4
      %3075 = vperm.xlu0 %3074, %v344
      %v3076 = vpop.permute.xlu0 %3075
      %v3078 = vperm.slane %v3027, 4
      %v3079 = vperm.slane %v3028, 4
      %v3080 = vmul.f32 %v3076, %v3078
      %v3081 = vmul.f32 %v3076, %v3079
      %v3082 = vadd.f32 %v3072, %v3080
      %v3083 = vadd.f32 %v3073, %v3081
      %3084 = vset.pattern.permute.xlu0 5
      %3085 = vperm.xlu0 %3084, %v344
      %v3086 = vpop.permute.xlu0 %3085
      %v3088 = vperm.slane %v3027, 5
      %v3089 = vperm.slane %v3028, 5
      %v3090 = vmul.f32 %v3086, %v3088
      %v3091 = vmul.f32 %v3086, %v3089
      %v3092 = vadd.f32 %v3082, %v3090
      %v3093 = vadd.f32 %v3083, %v3091
      %3094 = vset.pattern.permute.xlu0 6
      %3095 = vperm.xlu0 %3094, %v344
      %v3096 = vpop.permute.xlu0 %3095
      %v3098 = vperm.slane %v3027, 6
      %v3099 = vperm.slane %v3028, 6
      %v3100 = vmul.f32 %v3096, %v3098
      %v3101 = vmul.f32 %v3096, %v3099
      %v3102 = vadd.f32 %v3092, %v3100
      %v3103 = vadd.f32 %v3093, %v3101
      %3104 = vset.pattern.permute.xlu0 7
      %3105 = vperm.xlu0 %3104, %v344
      %v3106 = vpop.permute.xlu0 %3105
      %v3108 = vperm.slane %v3027, 7
      %v3109 = vperm.slane %v3028, 7
      %v3110 = vmul.f32 %v3106, %v3108
      %v3111 = vmul.f32 %v3106, %v3109
      %v3112 = vadd.f32 %v3102, %v3110
      %v3113 = vadd.f32 %v3103, %v3111
      %3114 = vst [vmem:[#allocation1] ss:$2 sm:$0xff] %v333
      %v3115 = vld.sshfl [vmem:[#allocation1] sm:$0xff pattern:$0x75316420]
      %v3116 = vld.sshfl [vmem:[#allocation1 + $0x8] sm:$0xff pattern:$0x75316420]
      %v3119 = vadd.f32 %v3112, %v3115
      %v3120 = vadd.f32 %v3113, %v3116
      %v3121 = vmax.f32 %v3119, 0.0
      %v3122 = vmax.f32 %v3120, 0.0
      %3124 = vset.pattern.permute.xlu0 4
      %3125 = vperm.xlu0 %3124, %v342
      %v3126 = vpop.permute.xlu0 %3125
      %3128 = vset.pattern.permute.xlu0 0
      %3129 = vperm.xlu0 %3128, %v342
      %v3130 = vpop.permute.xlu0 %3129
      %v3132 = vmul.f32 %v3130, %v603
      %v3133 = vmul.f32 %v3130, %v604
      %v3134 = vadd.f32 %v3126, %v3132
      %v3135 = vadd.f32 %v3126, %v3133
      %3136 = vset.pattern.permute.xlu0 1
      %3137 = vperm.xlu0 %3136, %v342
      %v3138 = vpop.permute.xlu0 %3137
      %v3140 = vmul.f32 %v3138, %v617
      %v3141 = vmul.f32 %v3138, %v618
      %v3142 = vadd.f32 %v3134, %v3140
      %v3143 = vadd.f32 %v3135, %v3141
      %3144 = vset.pattern.permute.xlu0 2
      %3145 = vperm.xlu0 %3144, %v342
      %v3146 = vpop.permute.xlu0 %3145
      %v3148 = vmul.f32 %v3146, %v631
      %v3149 = vmul.f32 %v3146, %v632
      %v3150 = vadd.f32 %v3142, %v3148
      %v3151 = vadd.f32 %v3143, %v3149
      %3152 = vset.pattern.permute.xlu0 3
      %3153 = vperm.xlu0 %3152, %v342
      %v3154 = vpop.permute.xlu0 %3153
      %v3156 = vmul.f32 %v3154, %v645
      %v3157 = vmul.f32 %v3154, %v646
      %v3158 = vadd.f32 %v3150, %v3156
      %v3159 = vadd.f32 %v3151, %v3157
      %3161 = vset.pattern.permute.xlu0 12
      %3162 = vperm.xlu0 %3161, %v345
      %v3163 = vpop.permute.xlu0 %3162
      %3165 = vset.pattern.permute.xlu0 0
      %3166 = vperm.xlu0 %3165, %v345
      %v3167 = vpop.permute.xlu0 %3166
      %v3169 = vperm.slane %v1788, 0
      %v3170 = vperm.slane %v1789, 0
      %v3171 = vmul.f32 %v3167, %v3169
      %v3172 = vmul.f32 %v3167, %v3170
      %v3173 = vadd.f32 %v3163, %v3171
      %v3174 = vadd.f32 %v3163, %v3172
      %3175 = vset.pattern.permute.xlu0 1
      %3176 = vperm.xlu0 %3175, %v345
      %v3177 = vpop.permute.xlu0 %3176
      %v3179 = vperm.slane %v1788, 1
      %v3180 = vperm.slane %v1789, 1
      %v3181 = vmul.f32 %v3177, %v3179
      %v3182 = vmul.f32 %v3177, %v3180
      %v3183 = vadd.f32 %v3173, %v3181
      %v3184 = vadd.f32 %v3174, %v3182
      %3185 = vset.pattern.permute.xlu0 2
      %3186 = vperm.xlu0 %3185, %v345
      %v3187 = vpop.permute.xlu0 %3186
      %v3189 = vperm.slane %v1788, 2
      %v3190 = vperm.slane %v1789, 2
      %v3191 = vmul.f32 %v3187, %v3189
      %v3192 = vmul.f32 %v3187, %v3190
      %v3193 = vadd.f32 %v3183, %v3191
      %v3194 = vadd.f32 %v3184, %v3192
      %3195 = vset.pattern.permute.xlu0 3
      %3196 = vperm.xlu0 %3195, %v345
      %v3197 = vpop.permute.xlu0 %3196
      %v3199 = vperm.slane %v1788, 3
      %v3200 = vperm.slane %v1789, 3
      %v3201 = vmul.f32 %v3197, %v3199
      %v3202 = vmul.f32 %v3197, %v3200
      %v3203 = vadd.f32 %v3193, %v3201
      %v3204 = vadd.f32 %v3194, %v3202
      %3205 = vset.pattern.permute.xlu0 4
      %3206 = vperm.xlu0 %3205, %v345
      %v3207 = vpop.permute.xlu0 %3206
      %v3209 = vperm.slane %v3121, 0
      %v3210 = vperm.slane %v3122, 0
      %v3211 = vmul.f32 %v3207, %v3209
      %v3212 = vmul.f32 %v3207, %v3210
      %v3213 = vadd.f32 %v3203, %v3211
      %v3214 = vadd.f32 %v3204, %v3212
      %3215 = vset.pattern.permute.xlu0 5
      %3216 = vperm.xlu0 %3215, %v345
      %v3217 = vpop.permute.xlu0 %3216
      %v3219 = vperm.slane %v3121, 1
      %v3220 = vperm.slane %v3122, 1
      %v3221 = vmul.f32 %v3217, %v3219
      %v3222 = vmul.f32 %v3217, %v3220
      %v3223 = vadd.f32 %v3213, %v3221
      %v3224 = vadd.f32 %v3214, %v3222
      %3225 = vset.pattern.permute.xlu0 6
      %3226 = vperm.xlu0 %3225, %v345
      %v3227 = vpop.permute.xlu0 %3226
      %v3229 = vperm.slane %v3121, 2
      %v3230 = vperm.slane %v3122, 2
      %v3231 = vmul.f32 %v3227, %v3229
      %v3232 = vmul.f32 %v3227, %v3230
      %v3233 = vadd.f32 %v3223, %v3231
      %v3234 = vadd.f32 %v3224, %v3232
      %3235 = vset.pattern.permute.xlu0 7
      %3236 = vperm.xlu0 %3235, %v345
      %v3237 = vpop.permute.xlu0 %3236
      %v3239 = vperm.slane %v3121, 3
      %v3240 = vperm.slane %v3122, 3
      %v3241 = vmul.f32 %v3237, %v3239
      %v3242 = vmul.f32 %v3237, %v3240
      %v3243 = vadd.f32 %v3233, %v3241
      %v3244 = vadd.f32 %v3234, %v3242
      %3245 = vset.pattern.permute.xlu0 8
      %3246 = vperm.xlu0 %3245, %v345
      %v3247 = vpop.permute.xlu0 %3246
      %v3249 = vperm.slane %v3158, 0
      %v3250 = vperm.slane %v3159, 0
      %v3251 = vmul.f32 %v3247, %v3249
      %v3252 = vmul.f32 %v3247, %v3250
      %v3253 = vadd.f32 %v3243, %v3251
      %v3254 = vadd.f32 %v3244, %v3252
      %3255 = vset.pattern.permute.xlu0 9
      %3256 = vperm.xlu0 %3255, %v345
      %v3257 = vpop.permute.xlu0 %3256
      %v3259 = vperm.slane %v3158, 1
      %v3260 = vperm.slane %v3159, 1
      %v3261 = vmul.f32 %v3257, %v3259
      %v3262 = vmul.f32 %v3257, %v3260
      %v3263 = vadd.f32 %v3253, %v3261
      %v3264 = vadd.f32 %v3254, %v3262
      %3265 = vset.pattern.permute.xlu0 10
      %3266 = vperm.xlu0 %3265, %v345
      %v3267 = vpop.permute.xlu0 %3266
      %v3269 = vperm.slane %v3158, 2
      %v3270 = vperm.slane %v3159, 2
      %v3271 = vmul.f32 %v3267, %v3269
      %v3272 = vmul.f32 %v3267, %v3270
      %v3273 = vadd.f32 %v3263, %v3271
      %v3274 = vadd.f32 %v3264, %v3272
      %3275 = vset.pattern.permute.xlu0 11
      %3276 = vperm.xlu0 %3275, %v345
      %v3277 = vpop.permute.xlu0 %3276
      %v3279 = vperm.slane %v3158, 3
      %v3280 = vperm.slane %v3159, 3
      %v3281 = vmul.f32 %v3277, %v3279
      %v3282 = vmul.f32 %v3277, %v3280
      %v3283 = vadd.f32 %v3273, %v3281
      %v3284 = vadd.f32 %v3274, %v3282
      %3285 = vst [vmem:[#allocation1] ss:$2 sm:$0xff] %v333
      %v3286 = vld.sshfl [vmem:[#allocation1] sm:$0xff pattern:$0x75316420]
      %v3287 = vld.sshfl [vmem:[#allocation1 + $0x8] sm:$0xff pattern:$0x75316420]
      %v3290 = vadd.f32 %v3283, %v3286
      %v3291 = vadd.f32 %v3284, %v3287
      %v3292 = vmax.f32 %v3290, 0.0
      %v3293 = vmax.f32 %v3291, 0.0
      %3295 = vset.pattern.permute.xlu0 4
      %3296 = vperm.xlu0 %3295, %v346
      %v3297 = vpop.permute.xlu0 %3296
      %3299 = vset.pattern.permute.xlu0 0
      %3300 = vperm.xlu0 %3299, %v346
      %v3301 = vpop.permute.xlu0 %3300
      %v3303 = vperm.slane %v3292, 0
      %v3304 = vperm.slane %v3293, 0
      %v3305 = vmul.f32 %v3301, %v3303
      %v3306 = vmul.f32 %v3301, %v3304
      %v3307 = vadd.f32 %v3297, %v3305
      %v3308 = vadd.f32 %v3297, %v3306
      %3309 = vset.pattern.permute.xlu0 1
      %3310 = vperm.xlu0 %3309, %v346
      %v3311 = vpop.permute.xlu0 %3310
      %v3313 = vperm.slane %v3292, 1
      %v3314 = vperm.slane %v3293, 1
      %v3315 = vmul.f32 %v3311, %v3313
      %v3316 = vmul.f32 %v3311, %v3314
      %v3317 = vadd.f32 %v3307, %v3315
      %v3318 = vadd.f32 %v3308, %v3316
      %3319 = vset.pattern.permute.xlu0 2
      %3320 = vperm.xlu0 %3319, %v346
      %v3321 = vpop.permute.xlu0 %3320
      %v3323 = vperm.slane %v3292, 2
      %v3324 = vperm.slane %v3293, 2
      %v3325 = vmul.f32 %v3321, %v3323
      %v3326 = vmul.f32 %v3321, %v3324
      %v3327 = vadd.f32 %v3317, %v3325
      %v3328 = vadd.f32 %v3318, %v3326
      %3329 = vset.pattern.permute.xlu0 3
      %3330 = vperm.xlu0 %3329, %v346
      %v3331 = vpop.permute.xlu0 %3330
      %v3333 = vperm.slane %v3292, 3
      %v3334 = vperm.slane %v3293, 3
      %v3335 = vmul.f32 %v3331, %v3333
      %v3336 = vmul.f32 %v3331, %v3334
      %v3337 = vadd.f32 %v3327, %v3335
      %v3338 = vadd.f32 %v3328, %v3336
      %3339 = vst [vmem:[%s332] sm:$0xff] %v3337
      %3340 = vst [vmem:[%s332 + $0x8] sm:$0xff] %v3338
      %p3341 = scmp.lt.s32.totalorder %s20, 1
      %s3342 = scalar_select %p3341, %s20, 1
      %s3343 = smul.addr %s3342, 2
      %s3344 = smul.addr %s3343, 8
      %s3345 = scalar_lea.vmem %s9, %s3344
      // Predicated region
      $region57: #{twobranches_conv.1} parent=55 // pred_check
        %p3346 = pneg %p232
      $region58: #{twobranches_conv.1} parent=55 // pred_check_branch
        %3348 = sbr.rel (%p3346) target = $region60
      $region59: #{twobranches_conv.1} parent=55 // pred_region
        _
      $region60: #{twobranches_conv.1} parent=55 // pred_fallthru
        _
    $region56: #{twobranches_conv.1} parent=5 // pred_fallthru
      _
    %p3349 = scmp.le.s32.totalorder 2, %s15
    // Predicated region
    $region61: #{twobranches_conv.1} parent=5 // pred_check
      %p3350 = pneg %p3349
    $region62: #{twobranches_conv.1} parent=5 // pred_check_branch
      %3352 = sbr.rel (%p3350) target = $region64
    $region63: #{twobranches_conv.1} parent=5 // pred_region
      %s3353 = ssub.s32 %s15, 2
      // Predicated region
      $region65: #{twobranches_conv.1} parent=63 // pred_check
        %p3354 = pneg %p238
      $region66: #{twobranches_conv.1} parent=63 // pred_check_branch
        %3356 = sbr.rel (%p3354) target = $region68
      $region67: #{twobranches_conv.1} parent=63 // pred_region
        %p3357 = scmp.lt.s32.totalorder %s21, 1
        %s3358 = scalar_select %p3357, %s21, 1
        %s3359 = smul.addr %s3358, 2
        %s3360 = smul.addr %s3359, 8
        %s3361 = scalar_lea.vmem %s9, %s3360
      $region68: #{twobranches_conv.1} parent=63 // pred_fallthru
        _
    $region64: #{twobranches_conv.1} parent=5 // pred_fallthru
      _
  $region6: #{twobranches_conv.1} parent=0 // loop_footer
    %s19 = sadd.s32 1, %s15
  $region7: #{twobranches_conv.1} parent=0 // loop_footer_branch
    %14 = sbr.rel target = $region3
  $region8: #{twobranches_conv.1} parent=0 // loop_exit
    _

</llo_original>
